<compile_context>
chip_gen: v7x
topology: tpu7x:2x2x1
jax: 0.10.0
libtpu: 0.0.40
codegen_flags: <defaults>
</compile_context>

<pallas_src>
import functools

import jax
import jax.numpy as jnp
import numpy as np
from jax import lax
from jax.experimental import pallas as pl
from jax.experimental.pallas import tpu as pltpu

K = 7          # conv kernel size
PAD = 3        # 'same' padding for k=7, stride=1
BN_EPS = 1e-5
LANE = 128


def _round_up(x, m):
    return (x + m - 1) // m * m


def backend_kernel(x_ref, w_ref, b_ref, o_ref, xf_ref, slab_ref, *,
                   nb, cin, wp, lout):
    """One block of `nb` images.

    x_ref    : (nb, cin, Lp)        bf16  zero-padded, flattened, lane-padded imgs
    w_ref    : (Cout, K*K*cin)      bf16  conv weights with BN scale folded in
    b_ref    : (Cout, 1)            f32   folded bias = (conv_b - mean)*scale + beta
    o_ref    : (nb, Cout, lout)     f32   output, lane p == h*Wp + w
    xf_ref   : (nb, cin, Lp)        f32   scratch: upcast image
    slab_ref : (nb, K*K*cin, lout)  bf16  scratch: in-kernel im2col slab
    """
    # Upcast once; all lane-offset tap slices below are taken from this f32 copy.
    xf_ref[...] = x_ref[...].astype(jnp.float32)

    # Build the patch slab: rows [(kh*K+kw)*cin : +cin] hold x[:, :, p + kh*Wp + kw]
    # for every output lane p (a conv tap is a pure static lane shift in the
    # flattened padded coordinates).
    tap = 0
    for kh in range(K):
        for kw in range(K):
            toff = kh * wp + kw
            slab_ref[:, tap * cin:(tap + 1) * cin, :] = (
                xf_ref[:, :, toff:toff + lout].astype(jnp.bfloat16))
            tap += 1

    w = w_ref[...]
    b = b_ref[...]
    for n in range(nb):  # short static unroll; one deep MXU dot per image
        acc = jnp.dot(w, slab_ref[n], preferred_element_type=jnp.float32)
        o_ref[n] = jnp.tanh(acc + b)          # f32 epilogue (VPU add + EUP tanh)


def backend_forward(imgs_nchw, w_oihw, conv_bias, gamma, beta,
                    run_mean, run_var, eps=BN_EPS, block_n=None):
    """NCHW in -> NCHW out; conv + folded BN (eval) + tanh in the Pallas kernel."""
    N, Cin, H, W = imgs_nchw.shape
    Cout = w_oihw.shape[0]
    Hp, Wp = H + 2 * PAD, W + 2 * PAD
    Lfull = Hp * Wp
    KKC = K * K * Cin

    # Output lanes cover p = h*Wp + w for all valid (h, w); round up to a
    # multiple of 128 so stores stay unmasked lane-dense.
    Lout = _round_up((H - 1) * Wp + W, LANE)
    max_toff = (K - 1) * Wp + (K - 1)
    # Input lane dim must cover every slice [toff, toff + Lout).
    Lp = _round_up(max(Lfull, max_toff + Lout), LANE)

    # Images per grid step: amortize per-step overhead, keep >= 2 grid steps
    # (two v7x TensorCores), cap NB so the bf16 slab stays small in VMEM.
    if block_n is None:
        block_n = 1 if N <= 1 else min(4, max(1, N // 2))
    NB = int(block_n)
    G = pl.cdiv(N, NB)
    Np = G * NB

    # Zero padding (padding_mode='zeros'), flatten spatial, pad lanes & batch.
    x = imgs_nchw.astype(jnp.float32)
    xpad = jnp.pad(x, ((0, 0), (0, 0), (PAD, PAD), (PAD, PAD)))
    xflat = xpad.reshape(N, Cin, Lfull)
    xflat = jnp.pad(xflat, ((0, Np - N), (0, 0), (0, Lp - Lfull)))
    xflat = xflat.astype(jnp.bfloat16)

    # Fold BatchNorm (eval, running stats) into the conv weights/bias.
    scale = (gamma / jnp.sqrt(run_var + eps)).astype(jnp.float32)
    # OIHW -> (Cout, kh, kw, Cin) -> (Cout, K*K*Cin): matches slab row ordering.
    w2 = jnp.transpose(w_oihw, (0, 2, 3, 1)).reshape(Cout, KKC).astype(jnp.float32)
    w2 = (w2 * scale[:, None]).astype(jnp.bfloat16)
    bias = ((conv_bias - run_mean) * scale + beta).reshape(Cout, 1).astype(jnp.float32)

    kernel = functools.partial(backend_kernel, nb=NB, cin=Cin, wp=Wp, lout=Lout)

    out = pl.pallas_call(
        kernel,
        out_shape=jax.ShapeDtypeStruct((Np, Cout, Lout), jnp.float32),
        grid_spec=pltpu.PrefetchScalarGridSpec(
            num_scalar_prefetch=0,
            grid=(G,),
            in_specs=[
                pl.BlockSpec((NB, Cin, Lp), lambda g: (g, 0, 0)),
                pl.BlockSpec((Cout, KKC), lambda g: (0, 0)),
                pl.BlockSpec((Cout, 1), lambda g: (0, 0)),
            ],
            out_specs=pl.BlockSpec((NB, Cout, Lout), lambda g: (g, 0, 0)),
            scratch_shapes=[
                pltpu.VMEM((NB, Cin, Lp), jnp.float32),       # upcast image
                pltpu.VMEM((NB, KKC, Lout), jnp.bfloat16),    # im2col slab
            ],
        ),
        compiler_params=pltpu.CompilerParams(
            dimension_semantics=("parallel",)),
        cost_estimate=pl.CostEstimate(
            flops=2 * Np * Cout * Lout * KKC,
            transcendentals=Np * Cout * Lout,
            bytes_accessed=(2 * Np * Cin * Lp       # bf16 images in
                            + 2 * Cout * KKC        # bf16 weights
                            + 4 * Cout              # f32 bias
                            + 4 * Np * Cout * Lout  # f32 out
                            )),
    )(xflat, w2, bias)

    # Crop: out[:, :, h*Wp + w] is the conv+BN+tanh result at (h, w).
    out = out[:N, :, :H * Wp].reshape(N, Cout, H, Wp)[:, :, :, :W]
    return out


if __name__ == "__main__":
    # Small shapes consistent with BackEnd's forward: imgs has hidden_dim channels.
    N, hidden_dim, out_channels = 2, 16, 2
    H = W = 16

    key = jax.random.PRNGKey(0)
    k_x, k_w, k_b = jax.random.split(key, 3)

    imgs = jax.random.normal(k_x, (N, hidden_dim, H, W), dtype=jnp.float32)

    # Conv2d(hidden_dim, out_channels, 7) parameters, deterministic init.
    fan_in = hidden_dim * K * K
    bound = 1.0 / np.sqrt(fan_in)
    w_oihw = jax.random.uniform(k_w, (out_channels, hidden_dim, K, K),
                                minval=-bound, maxval=bound, dtype=jnp.float32)
    conv_bias = jax.random.uniform(k_b, (out_channels,),
                                   minval=-bound, maxval=bound, dtype=jnp.float32)

    # BatchNorm2d(out_channels) parameters (PyTorch defaults), eval mode.
    gamma = jnp.ones((out_channels,), jnp.float32)
    beta = jnp.zeros((out_channels,), jnp.float32)
    run_mean = jnp.zeros((out_channels,), jnp.float32)
    run_var = jnp.ones((out_channels,), jnp.float32)

    out = backend_forward(imgs, w_oihw, conv_bias, gamma, beta, run_mean, run_var)
    out = jax.block_until_ready(out)

    # Pure-JAX f32 reference for correctness of the kernel.
    ref = lax.conv_general_dilated(
        imgs, w_oihw, window_strides=(1, 1),
        padding=((PAD, PAD), (PAD, PAD)),
        dimension_numbers=("NCHW", "OIHW", "NCHW"))
    ref = ref + conv_bias[None, :, None, None]
    s = gamma / jnp.sqrt(run_var + BN_EPS)
    ref = (ref - run_mean[None, :, None, None]) * s[None, :, None, None] \
          + beta[None, :, None, None]
    ref = jnp.tanh(ref)

    # bf16 matmul operands (f32 accumulation + f32 epilogue) -> loosened tolerance.
    np.testing.assert_allclose(np.asarray(out), np.asarray(ref),
                               rtol=2e-2, atol=2e-2)
    print("KERNEL_OK")
</pallas_src>

<mosaic_0001>
module attributes {stable_mosaic.version = 11 : i64} {
  func.func @backend_kernel(%arg0: i32, %arg1: memref<1x16x640xbf16, #tpu.memory_space<vmem>>, %arg2: memref<2x784xbf16, #tpu.memory_space<vmem>>, %arg3: memref<2x1xf32, #tpu.memory_space<vmem>>, %arg4: memref<1x2x384xf32, #tpu.memory_space<vmem>>, %arg5: memref<1x16x640xf32, #tpu.memory_space<vmem>>, %arg6: memref<1x784x384xbf16, #tpu.memory_space<vmem>>) attributes {dimension_semantics = [#tpu.dimension_semantics<parallel>], iteration_bounds = array<i64: 2>, scalar_prefetch = 0 : i64, scratch_operands = 2 : i64, tpu.core_type = #tpu.core_type<tc>, window_params = [{transform_indices = @transform_0, window_bounds = array<i64: 1, 16, 640>}, {pipeline_mode = #tpu.pipeline_mode<synchronous>, transform_indices = @transform_1, window_bounds = array<i64: 2, 784>}, {pipeline_mode = #tpu.pipeline_mode<synchronous>, transform_indices = @transform_2, window_bounds = array<i64: 2, 1>}, {transform_indices = @transform_3, window_bounds = array<i64: 1, 2, 384>}]} {
    %c0 = arith.constant 0 : index
    %c0_0 = arith.constant 0 : index
    %c0_1 = arith.constant 0 : index
    %0 = vector.load %arg1[%c0, %c0_0, %c0_1] : memref<1x16x640xbf16, #tpu.memory_space<vmem>>, vector<1x16x640xbf16>
    %1 = arith.extf %0 : vector<1x16x640xbf16> to vector<1x16x640xf32>
    %c0_2 = arith.constant 0 : index
    %c0_3 = arith.constant 0 : index
    %c0_4 = arith.constant 0 : index
    %2 = vector.load %arg5[%c0_2, %c0_3, %c0_4] : memref<1x16x640xf32, #tpu.memory_space<vmem>>, vector<1x16x640xf32>
    tpu.vector_store %arg5[%c0_2, %c0_3, %c0_4], %1 {strides = array<i32>} : memref<1x16x640xf32, #tpu.memory_space<vmem>>, vector<1x16x640xf32>,
    %c0_5 = arith.constant 0 : index
    %c0_6 = arith.constant 0 : index
    %c0_7 = arith.constant 0 : index
    %3 = vector.load %arg5[%c0_5, %c0_6, %c0_7] : memref<1x16x640xf32, #tpu.memory_space<vmem>>, vector<1x16x384xf32>
    %4 = arith.truncf %3 : vector<1x16x384xf32> to vector<1x16x384xbf16>
    %c0_8 = arith.constant 0 : index
    %c0_9 = arith.constant 0 : index
    %c0_10 = arith.constant 0 : index
    %5 = vector.load %arg6[%c0_8, %c0_9, %c0_10] : memref<1x784x384xbf16, #tpu.memory_space<vmem>>, vector<1x16x384xbf16>
    tpu.vector_store %arg6[%c0_8, %c0_9, %c0_10], %4 {strides = array<i32>} : memref<1x784x384xbf16, #tpu.memory_space<vmem>>, vector<1x16x384xbf16>,
    %c0_11 = arith.constant 0 : index
    %c0_12 = arith.constant 0 : index
    %c1 = arith.constant 1 : index
    %6 = vector.load %arg5[%c0_11, %c0_12, %c1] : memref<1x16x640xf32, #tpu.memory_space<vmem>>, vector<1x16x384xf32>
    %7 = arith.truncf %6 : vector<1x16x384xf32> to vector<1x16x384xbf16>
    %c0_13 = arith.constant 0 : index
    %c16 = arith.constant 16 : index
    %c0_14 = arith.constant 0 : index
    %8 = vector.load %arg6[%c0_13, %c16, %c0_14] : memref<1x784x384xbf16, #tpu.memory_space<vmem>>, vector<1x16x384xbf16>
    tpu.vector_store %arg6[%c0_13, %c16, %c0_14], %7 {strides = array<i32>} : memref<1x784x384xbf16, #tpu.memory_space<vmem>>, vector<1x16x384xbf16>,
    %c0_15 = arith.constant 0 : index
    %c0_16 = arith.constant 0 : index
    %c2 = arith.constant 2 : index
    %9 = vector.load %arg5[%c0_15, %c0_16, %c2] : memref<1x16x640xf32, #tpu.memory_space<vmem>>, vector<1x16x384xf32>
    %10 = arith.truncf %9 : vector<1x16x384xf32> to vector<1x16x384xbf16>
    %c0_17 = arith.constant 0 : index
    %c32 = arith.constant 32 : index
    %c0_18 = arith.constant 0 : index
    %11 = vector.load %arg6[%c0_17, %c32, %c0_18] : memref<1x784x384xbf16, #tpu.memory_space<vmem>>, vector<1x16x384xbf16>
    tpu.vector_store %arg6[%c0_17, %c32, %c0_18], %10 {strides = array<i32>} : memref<1x784x384xbf16, #tpu.memory_space<vmem>>, vector<1x16x384xbf16>,
    %c0_19 = arith.constant 0 : index
    %c0_20 = arith.constant 0 : index
    %c3 = arith.constant 3 : index
    %12 = vector.load %arg5[%c0_19, %c0_20, %c3] : memref<1x16x640xf32, #tpu.memory_space<vmem>>, vector<1x16x384xf32>
    %13 = arith.truncf %12 : vector<1x16x384xf32> to vector<1x16x384xbf16>
    %c0_21 = arith.constant 0 : index
    %c48 = arith.constant 48 : index
    %c0_22 = arith.constant 0 : index
    %14 = vector.load %arg6[%c0_21, %c48, %c0_22] : memref<1x784x384xbf16, #tpu.memory_space<vmem>>, vector<1x16x384xbf16>
    tpu.vector_store %arg6[%c0_21, %c48, %c0_22], %13 {strides = array<i32>} : memref<1x784x384xbf16, #tpu.memory_space<vmem>>, vector<1x16x384xbf16>,
    %c0_23 = arith.constant 0 : index
    %c0_24 = arith.constant 0 : index
    %c4 = arith.constant 4 : index
    %15 = vector.load %arg5[%c0_23, %c0_24, %c4] : memref<1x16x640xf32, #tpu.memory_space<vmem>>, vector<1x16x384xf32>
    %16 = arith.truncf %15 : vector<1x16x384xf32> to vector<1x16x384xbf16>
    %c0_25 = arith.constant 0 : index
    %c64 = arith.constant 64 : index
    %c0_26 = arith.constant 0 : index
    %17 = vector.load %arg6[%c0_25, %c64, %c0_26] : memref<1x784x384xbf16, #tpu.memory_space<vmem>>, vector<1x16x384xbf16>
    tpu.vector_store %arg6[%c0_25, %c64, %c0_26], %16 {strides = array<i32>} : memref<1x784x384xbf16, #tpu.memory_space<vmem>>, vector<1x16x384xbf16>,
    %c0_27 = arith.constant 0 : index
    %c0_28 = arith.constant 0 : index
    %c5 = arith.constant 5 : index
    %18 = vector.load %arg5[%c0_27, %c0_28, %c5] : memref<1x16x640xf32, #tpu.memory_space<vmem>>, vector<1x16x384xf32>
    %19 = arith.truncf %18 : vector<1x16x384xf32> to vector<1x16x384xbf16>
    %c0_29 = arith.constant 0 : index
    %c80 = arith.constant 80 : index
    %c0_30 = arith.constant 0 : index
    %20 = vector.load %arg6[%c0_29, %c80, %c0_30] : memref<1x784x384xbf16, #tpu.memory_space<vmem>>, vector<1x16x384xbf16>
    tpu.vector_store %arg6[%c0_29, %c80, %c0_30], %19 {strides = array<i32>} : memref<1x784x384xbf16, #tpu.memory_space<vmem>>, vector<1x16x384xbf16>,
    %c0_31 = arith.constant 0 : index
    %c0_32 = arith.constant 0 : index
    %c6 = arith.constant 6 : index
    %21 = vector.load %arg5[%c0_31, %c0_32, %c6] : memref<1x16x640xf32, #tpu.memory_space<vmem>>, vector<1x16x384xf32>
    %22 = arith.truncf %21 : vector<1x16x384xf32> to vector<1x16x384xbf16>
    %c0_33 = arith.constant 0 : index
    %c96 = arith.constant 96 : index
    %c0_34 = arith.constant 0 : index
    %23 = vector.load %arg6[%c0_33, %c96, %c0_34] : memref<1x784x384xbf16, #tpu.memory_space<vmem>>, vector<1x16x384xbf16>
    tpu.vector_store %arg6[%c0_33, %c96, %c0_34], %22 {strides = array<i32>} : memref<1x784x384xbf16, #tpu.memory_space<vmem>>, vector<1x16x384xbf16>,
    %c0_35 = arith.constant 0 : index
    %c0_36 = arith.constant 0 : index
    %c22 = arith.constant 22 : index
    %24 = vector.load %arg5[%c0_35, %c0_36, %c22] : memref<1x16x640xf32, #tpu.memory_space<vmem>>, vector<1x16x384xf32>
    %25 = arith.truncf %24 : vector<1x16x384xf32> to vector<1x16x384xbf16>
    %c0_37 = arith.constant 0 : index
    %c112 = arith.constant 112 : index
    %c0_38 = arith.constant 0 : index
    %26 = vector.load %arg6[%c0_37, %c112, %c0_38] : memref<1x784x384xbf16, #tpu.memory_space<vmem>>, vector<1x16x384xbf16>
    tpu.vector_store %arg6[%c0_37, %c112, %c0_38], %25 {strides = array<i32>} : memref<1x784x384xbf16, #tpu.memory_space<vmem>>, vector<1x16x384xbf16>,
    %c0_39 = arith.constant 0 : index
    %c0_40 = arith.constant 0 : index
    %c23 = arith.constant 23 : index
    %27 = vector.load %arg5[%c0_39, %c0_40, %c23] : memref<1x16x640xf32, #tpu.memory_space<vmem>>, vector<1x16x384xf32>
    %28 = arith.truncf %27 : vector<1x16x384xf32> to vector<1x16x384xbf16>
    %c0_41 = arith.constant 0 : index
    %c128 = arith.constant 128 : index
    %c0_42 = arith.constant 0 : index
    %29 = vector.load %arg6[%c0_41, %c128, %c0_42] : memref<1x784x384xbf16, #tpu.memory_space<vmem>>, vector<1x16x384xbf16>
    tpu.vector_store %arg6[%c0_41, %c128, %c0_42], %28 {strides = array<i32>} : memref<1x784x384xbf16, #tpu.memory_space<vmem>>, vector<1x16x384xbf16>,
    %c0_43 = arith.constant 0 : index
    %c0_44 = arith.constant 0 : index
    %c24 = arith.constant 24 : index
    %30 = vector.load %arg5[%c0_43, %c0_44, %c24] : memref<1x16x640xf32, #tpu.memory_space<vmem>>, vector<1x16x384xf32>
    %31 = arith.truncf %30 : vector<1x16x384xf32> to vector<1x16x384xbf16>
    %c0_45 = arith.constant 0 : index
    %c144 = arith.constant 144 : index
    %c0_46 = arith.constant 0 : index
    %32 = vector.load %arg6[%c0_45, %c144, %c0_46] : memref<1x784x384xbf16, #tpu.memory_space<vmem>>, vector<1x16x384xbf16>
    tpu.vector_store %arg6[%c0_45, %c144, %c0_46], %31 {strides = array<i32>} : memref<1x784x384xbf16, #tpu.memory_space<vmem>>, vector<1x16x384xbf16>,
    %c0_47 = arith.constant 0 : index
    %c0_48 = arith.constant 0 : index
    %c25 = arith.constant 25 : index
    %33 = vector.load %arg5[%c0_47, %c0_48, %c25] : memref<1x16x640xf32, #tpu.memory_space<vmem>>, vector<1x16x384xf32>
    %34 = arith.truncf %33 : vector<1x16x384xf32> to vector<1x16x384xbf16>
    %c0_49 = arith.constant 0 : index
    %c160 = arith.constant 160 : index
    %c0_50 = arith.constant 0 : index
    %35 = vector.load %arg6[%c0_49, %c160, %c0_50] : memref<1x784x384xbf16, #tpu.memory_space<vmem>>, vector<1x16x384xbf16>
    tpu.vector_store %arg6[%c0_49, %c160, %c0_50], %34 {strides = array<i32>} : memref<1x784x384xbf16, #tpu.memory_space<vmem>>, vector<1x16x384xbf16>,
    %c0_51 = arith.constant 0 : index
    %c0_52 = arith.constant 0 : index
    %c26 = arith.constant 26 : index
    %36 = vector.load %arg5[%c0_51, %c0_52, %c26] : memref<1x16x640xf32, #tpu.memory_space<vmem>>, vector<1x16x384xf32>
    %37 = arith.truncf %36 : vector<1x16x384xf32> to vector<1x16x384xbf16>
    %c0_53 = arith.constant 0 : index
    %c176 = arith.constant 176 : index
    %c0_54 = arith.constant 0 : index
    %38 = vector.load %arg6[%c0_53, %c176, %c0_54] : memref<1x784x384xbf16, #tpu.memory_space<vmem>>, vector<1x16x384xbf16>
    tpu.vector_store %arg6[%c0_53, %c176, %c0_54], %37 {strides = array<i32>} : memref<1x784x384xbf16, #tpu.memory_space<vmem>>, vector<1x16x384xbf16>,
    %c0_55 = arith.constant 0 : index
    %c0_56 = arith.constant 0 : index
    %c27 = arith.constant 27 : index
    %39 = vector.load %arg5[%c0_55, %c0_56, %c27] : memref<1x16x640xf32, #tpu.memory_space<vmem>>, vector<1x16x384xf32>
    %40 = arith.truncf %39 : vector<1x16x384xf32> to vector<1x16x384xbf16>
    %c0_57 = arith.constant 0 : index
    %c192 = arith.constant 192 : index
    %c0_58 = arith.constant 0 : index
    %41 = vector.load %arg6[%c0_57, %c192, %c0_58] : memref<1x784x384xbf16, #tpu.memory_space<vmem>>, vector<1x16x384xbf16>
    tpu.vector_store %arg6[%c0_57, %c192, %c0_58], %40 {strides = array<i32>} : memref<1x784x384xbf16, #tpu.memory_space<vmem>>, vector<1x16x384xbf16>,
    %c0_59 = arith.constant 0 : index
    %c0_60 = arith.constant 0 : index
    %c28 = arith.constant 28 : index
    %42 = vector.load %arg5[%c0_59, %c0_60, %c28] : memref<1x16x640xf32, #tpu.memory_space<vmem>>, vector<1x16x384xf32>
    %43 = arith.truncf %42 : vector<1x16x384xf32> to vector<1x16x384xbf16>
    %c0_61 = arith.constant 0 : index
    %c208 = arith.constant 208 : index
    %c0_62 = arith.constant 0 : index
    %44 = vector.load %arg6[%c0_61, %c208, %c0_62] : memref<1x784x384xbf16, #tpu.memory_space<vmem>>, vector<1x16x384xbf16>
    tpu.vector_store %arg6[%c0_61, %c208, %c0_62], %43 {strides = array<i32>} : memref<1x784x384xbf16, #tpu.memory_space<vmem>>, vector<1x16x384xbf16>,
    %c0_63 = arith.constant 0 : index
    %c0_64 = arith.constant 0 : index
    %c44 = arith.constant 44 : index
    %45 = vector.load %arg5[%c0_63, %c0_64, %c44] : memref<1x16x640xf32, #tpu.memory_space<vmem>>, vector<1x16x384xf32>
    %46 = arith.truncf %45 : vector<1x16x384xf32> to vector<1x16x384xbf16>
    %c0_65 = arith.constant 0 : index
    %c224 = arith.constant 224 : index
    %c0_66 = arith.constant 0 : index
    %47 = vector.load %arg6[%c0_65, %c224, %c0_66] : memref<1x784x384xbf16, #tpu.memory_space<vmem>>, vector<1x16x384xbf16>
    tpu.vector_store %arg6[%c0_65, %c224, %c0_66], %46 {strides = array<i32>} : memref<1x784x384xbf16, #tpu.memory_space<vmem>>, vector<1x16x384xbf16>,
    %c0_67 = arith.constant 0 : index
    %c0_68 = arith.constant 0 : index
    %c45 = arith.constant 45 : index
    %48 = vector.load %arg5[%c0_67, %c0_68, %c45] : memref<1x16x640xf32, #tpu.memory_space<vmem>>, vector<1x16x384xf32>
    %49 = arith.truncf %48 : vector<1x16x384xf32> to vector<1x16x384xbf16>
    %c0_69 = arith.constant 0 : index
    %c240 = arith.constant 240 : index
    %c0_70 = arith.constant 0 : index
    %50 = vector.load %arg6[%c0_69, %c240, %c0_70] : memref<1x784x384xbf16, #tpu.memory_space<vmem>>, vector<1x16x384xbf16>
    tpu.vector_store %arg6[%c0_69, %c240, %c0_70], %49 {strides = array<i32>} : memref<1x784x384xbf16, #tpu.memory_space<vmem>>, vector<1x16x384xbf16>,
    %c0_71 = arith.constant 0 : index
    %c0_72 = arith.constant 0 : index
    %c46 = arith.constant 46 : index
    %51 = vector.load %arg5[%c0_71, %c0_72, %c46] : memref<1x16x640xf32, #tpu.memory_space<vmem>>, vector<1x16x384xf32>
    %52 = arith.truncf %51 : vector<1x16x384xf32> to vector<1x16x384xbf16>
    %c0_73 = arith.constant 0 : index
    %c256 = arith.constant 256 : index
    %c0_74 = arith.constant 0 : index
    %53 = vector.load %arg6[%c0_73, %c256, %c0_74] : memref<1x784x384xbf16, #tpu.memory_space<vmem>>, vector<1x16x384xbf16>
    tpu.vector_store %arg6[%c0_73, %c256, %c0_74], %52 {strides = array<i32>} : memref<1x784x384xbf16, #tpu.memory_space<vmem>>, vector<1x16x384xbf16>,
    %c0_75 = arith.constant 0 : index
    %c0_76 = arith.constant 0 : index
    %c47 = arith.constant 47 : index
    %54 = vector.load %arg5[%c0_75, %c0_76, %c47] : memref<1x16x640xf32, #tpu.memory_space<vmem>>, vector<1x16x384xf32>
    %55 = arith.truncf %54 : vector<1x16x384xf32> to vector<1x16x384xbf16>
    %c0_77 = arith.constant 0 : index
    %c272 = arith.constant 272 : index
    %c0_78 = arith.constant 0 : index
    %56 = vector.load %arg6[%c0_77, %c272, %c0_78] : memref<1x784x384xbf16, #tpu.memory_space<vmem>>, vector<1x16x384xbf16>
    tpu.vector_store %arg6[%c0_77, %c272, %c0_78], %55 {strides = array<i32>} : memref<1x784x384xbf16, #tpu.memory_space<vmem>>, vector<1x16x384xbf16>,
    %c0_79 = arith.constant 0 : index
    %c0_80 = arith.constant 0 : index
    %c48_81 = arith.constant 48 : index
    %57 = vector.load %arg5[%c0_79, %c0_80, %c48_81] : memref<1x16x640xf32, #tpu.memory_space<vmem>>, vector<1x16x384xf32>
    %58 = arith.truncf %57 : vector<1x16x384xf32> to vector<1x16x384xbf16>
    %c0_82 = arith.constant 0 : index
    %c288 = arith.constant 288 : index
    %c0_83 = arith.constant 0 : index
    %59 = vector.load %arg6[%c0_82, %c288, %c0_83] : memref<1x784x384xbf16, #tpu.memory_space<vmem>>, vector<1x16x384xbf16>
    tpu.vector_store %arg6[%c0_82, %c288, %c0_83], %58 {strides = array<i32>} : memref<1x784x384xbf16, #tpu.memory_space<vmem>>, vector<1x16x384xbf16>,
    %c0_84 = arith.constant 0 : index
    %c0_85 = arith.constant 0 : index
    %c49 = arith.constant 49 : index
    %60 = vector.load %arg5[%c0_84, %c0_85, %c49] : memref<1x16x640xf32, #tpu.memory_space<vmem>>, vector<1x16x384xf32>
    %61 = arith.truncf %60 : vector<1x16x384xf32> to vector<1x16x384xbf16>
    %c0_86 = arith.constant 0 : index
    %c304 = arith.constant 304 : index
    %c0_87 = arith.constant 0 : index
    %62 = vector.load %arg6[%c0_86, %c304, %c0_87] : memref<1x784x384xbf16, #tpu.memory_space<vmem>>, vector<1x16x384xbf16>
    tpu.vector_store %arg6[%c0_86, %c304, %c0_87], %61 {strides = array<i32>} : memref<1x784x384xbf16, #tpu.memory_space<vmem>>, vector<1x16x384xbf16>,
    %c0_88 = arith.constant 0 : index
    %c0_89 = arith.constant 0 : index
    %c50 = arith.constant 50 : index
    %63 = vector.load %arg5[%c0_88, %c0_89, %c50] : memref<1x16x640xf32, #tpu.memory_space<vmem>>, vector<1x16x384xf32>
    %64 = arith.truncf %63 : vector<1x16x384xf32> to vector<1x16x384xbf16>
    %c0_90 = arith.constant 0 : index
    %c320 = arith.constant 320 : index
    %c0_91 = arith.constant 0 : index
    %65 = vector.load %arg6[%c0_90, %c320, %c0_91] : memref<1x784x384xbf16, #tpu.memory_space<vmem>>, vector<1x16x384xbf16>
    tpu.vector_store %arg6[%c0_90, %c320, %c0_91], %64 {strides = array<i32>} : memref<1x784x384xbf16, #tpu.memory_space<vmem>>, vector<1x16x384xbf16>,
    %c0_92 = arith.constant 0 : index
    %c0_93 = arith.constant 0 : index
    %c66 = arith.constant 66 : index
    %66 = vector.load %arg5[%c0_92, %c0_93, %c66] : memref<1x16x640xf32, #tpu.memory_space<vmem>>, vector<1x16x384xf32>
    %67 = arith.truncf %66 : vector<1x16x384xf32> to vector<1x16x384xbf16>
    %c0_94 = arith.constant 0 : index
    %c336 = arith.constant 336 : index
    %c0_95 = arith.constant 0 : index
    %68 = vector.load %arg6[%c0_94, %c336, %c0_95] : memref<1x784x384xbf16, #tpu.memory_space<vmem>>, vector<1x16x384xbf16>
    tpu.vector_store %arg6[%c0_94, %c336, %c0_95], %67 {strides = array<i32>} : memref<1x784x384xbf16, #tpu.memory_space<vmem>>, vector<1x16x384xbf16>,
    %c0_96 = arith.constant 0 : index
    %c0_97 = arith.constant 0 : index
    %c67 = arith.constant 67 : index
    %69 = vector.load %arg5[%c0_96, %c0_97, %c67] : memref<1x16x640xf32, #tpu.memory_space<vmem>>, vector<1x16x384xf32>
    %70 = arith.truncf %69 : vector<1x16x384xf32> to vector<1x16x384xbf16>
    %c0_98 = arith.constant 0 : index
    %c352 = arith.constant 352 : index
    %c0_99 = arith.constant 0 : index
    %71 = vector.load %arg6[%c0_98, %c352, %c0_99] : memref<1x784x384xbf16, #tpu.memory_space<vmem>>, vector<1x16x384xbf16>
    tpu.vector_store %arg6[%c0_98, %c352, %c0_99], %70 {strides = array<i32>} : memref<1x784x384xbf16, #tpu.memory_space<vmem>>, vector<1x16x384xbf16>,
    %c0_100 = arith.constant 0 : index
    %c0_101 = arith.constant 0 : index
    %c68 = arith.constant 68 : index
    %72 = vector.load %arg5[%c0_100, %c0_101, %c68] : memref<1x16x640xf32, #tpu.memory_space<vmem>>, vector<1x16x384xf32>
    %73 = arith.truncf %72 : vector<1x16x384xf32> to vector<1x16x384xbf16>
    %c0_102 = arith.constant 0 : index
    %c368 = arith.constant 368 : index
    %c0_103 = arith.constant 0 : index
    %74 = vector.load %arg6[%c0_102, %c368, %c0_103] : memref<1x784x384xbf16, #tpu.memory_space<vmem>>, vector<1x16x384xbf16>
    tpu.vector_store %arg6[%c0_102, %c368, %c0_103], %73 {strides = array<i32>} : memref<1x784x384xbf16, #tpu.memory_space<vmem>>, vector<1x16x384xbf16>,
    %c0_104 = arith.constant 0 : index
    %c0_105 = arith.constant 0 : index
    %c69 = arith.constant 69 : index
    %75 = vector.load %arg5[%c0_104, %c0_105, %c69] : memref<1x16x640xf32, #tpu.memory_space<vmem>>, vector<1x16x384xf32>
    %76 = arith.truncf %75 : vector<1x16x384xf32> to vector<1x16x384xbf16>
    %c0_106 = arith.constant 0 : index
    %c384 = arith.constant 384 : index
    %c0_107 = arith.constant 0 : index
    %77 = vector.load %arg6[%c0_106, %c384, %c0_107] : memref<1x784x384xbf16, #tpu.memory_space<vmem>>, vector<1x16x384xbf16>
    tpu.vector_store %arg6[%c0_106, %c384, %c0_107], %76 {strides = array<i32>} : memref<1x784x384xbf16, #tpu.memory_space<vmem>>, vector<1x16x384xbf16>,
    %c0_108 = arith.constant 0 : index
    %c0_109 = arith.constant 0 : index
    %c70 = arith.constant 70 : index
    %78 = vector.load %arg5[%c0_108, %c0_109, %c70] : memref<1x16x640xf32, #tpu.memory_space<vmem>>, vector<1x16x384xf32>
    %79 = arith.truncf %78 : vector<1x16x384xf32> to vector<1x16x384xbf16>
    %c0_110 = arith.constant 0 : index
    %c400 = arith.constant 400 : index
    %c0_111 = arith.constant 0 : index
    %80 = vector.load %arg6[%c0_110, %c400, %c0_111] : memref<1x784x384xbf16, #tpu.memory_space<vmem>>, vector<1x16x384xbf16>
    tpu.vector_store %arg6[%c0_110, %c400, %c0_111], %79 {strides = array<i32>} : memref<1x784x384xbf16, #tpu.memory_space<vmem>>, vector<1x16x384xbf16>,
    %c0_112 = arith.constant 0 : index
    %c0_113 = arith.constant 0 : index
    %c71 = arith.constant 71 : index
    %81 = vector.load %arg5[%c0_112, %c0_113, %c71] : memref<1x16x640xf32, #tpu.memory_space<vmem>>, vector<1x16x384xf32>
    %82 = arith.truncf %81 : vector<1x16x384xf32> to vector<1x16x384xbf16>
    %c0_114 = arith.constant 0 : index
    %c416 = arith.constant 416 : index
    %c0_115 = arith.constant 0 : index
    %83 = vector.load %arg6[%c0_114, %c416, %c0_115] : memref<1x784x384xbf16, #tpu.memory_space<vmem>>, vector<1x16x384xbf16>
    tpu.vector_store %arg6[%c0_114, %c416, %c0_115], %82 {strides = array<i32>} : memref<1x784x384xbf16, #tpu.memory_space<vmem>>, vector<1x16x384xbf16>,
    %c0_116 = arith.constant 0 : index
    %c0_117 = arith.constant 0 : index
    %c72 = arith.constant 72 : index
    %84 = vector.load %arg5[%c0_116, %c0_117, %c72] : memref<1x16x640xf32, #tpu.memory_space<vmem>>, vector<1x16x384xf32>
    %85 = arith.truncf %84 : vector<1x16x384xf32> to vector<1x16x384xbf16>
    %c0_118 = arith.constant 0 : index
    %c432 = arith.constant 432 : index
    %c0_119 = arith.constant 0 : index
    %86 = vector.load %arg6[%c0_118, %c432, %c0_119] : memref<1x784x384xbf16, #tpu.memory_space<vmem>>, vector<1x16x384xbf16>
    tpu.vector_store %arg6[%c0_118, %c432, %c0_119], %85 {strides = array<i32>} : memref<1x784x384xbf16, #tpu.memory_space<vmem>>, vector<1x16x384xbf16>,
    %c0_120 = arith.constant 0 : index
    %c0_121 = arith.constant 0 : index
    %c88 = arith.constant 88 : index
    %87 = vector.load %arg5[%c0_120, %c0_121, %c88] : memref<1x16x640xf32, #tpu.memory_space<vmem>>, vector<1x16x384xf32>
    %88 = arith.truncf %87 : vector<1x16x384xf32> to vector<1x16x384xbf16>
    %c0_122 = arith.constant 0 : index
    %c448 = arith.constant 448 : index
    %c0_123 = arith.constant 0 : index
    %89 = vector.load %arg6[%c0_122, %c448, %c0_123] : memref<1x784x384xbf16, #tpu.memory_space<vmem>>, vector<1x16x384xbf16>
    tpu.vector_store %arg6[%c0_122, %c448, %c0_123], %88 {strides = array<i32>} : memref<1x784x384xbf16, #tpu.memory_space<vmem>>, vector<1x16x384xbf16>,
    %c0_124 = arith.constant 0 : index
    %c0_125 = arith.constant 0 : index
    %c89 = arith.constant 89 : index
    %90 = vector.load %arg5[%c0_124, %c0_125, %c89] : memref<1x16x640xf32, #tpu.memory_space<vmem>>, vector<1x16x384xf32>
    %91 = arith.truncf %90 : vector<1x16x384xf32> to vector<1x16x384xbf16>
    %c0_126 = arith.constant 0 : index
    %c464 = arith.constant 464 : index
    %c0_127 = arith.constant 0 : index
    %92 = vector.load %arg6[%c0_126, %c464, %c0_127] : memref<1x784x384xbf16, #tpu.memory_space<vmem>>, vector<1x16x384xbf16>
    tpu.vector_store %arg6[%c0_126, %c464, %c0_127], %91 {strides = array<i32>} : memref<1x784x384xbf16, #tpu.memory_space<vmem>>, vector<1x16x384xbf16>,
    %c0_128 = arith.constant 0 : index
    %c0_129 = arith.constant 0 : index
    %c90 = arith.constant 90 : index
    %93 = vector.load %arg5[%c0_128, %c0_129, %c90] : memref<1x16x640xf32, #tpu.memory_space<vmem>>, vector<1x16x384xf32>
    %94 = arith.truncf %93 : vector<1x16x384xf32> to vector<1x16x384xbf16>
    %c0_130 = arith.constant 0 : index
    %c480 = arith.constant 480 : index
    %c0_131 = arith.constant 0 : index
    %95 = vector.load %arg6[%c0_130, %c480, %c0_131] : memref<1x784x384xbf16, #tpu.memory_space<vmem>>, vector<1x16x384xbf16>
    tpu.vector_store %arg6[%c0_130, %c480, %c0_131], %94 {strides = array<i32>} : memref<1x784x384xbf16, #tpu.memory_space<vmem>>, vector<1x16x384xbf16>,
    %c0_132 = arith.constant 0 : index
    %c0_133 = arith.constant 0 : index
    %c91 = arith.constant 91 : index
    %96 = vector.load %arg5[%c0_132, %c0_133, %c91] : memref<1x16x640xf32, #tpu.memory_space<vmem>>, vector<1x16x384xf32>
    %97 = arith.truncf %96 : vector<1x16x384xf32> to vector<1x16x384xbf16>
    %c0_134 = arith.constant 0 : index
    %c496 = arith.constant 496 : index
    %c0_135 = arith.constant 0 : index
    %98 = vector.load %arg6[%c0_134, %c496, %c0_135] : memref<1x784x384xbf16, #tpu.memory_space<vmem>>, vector<1x16x384xbf16>
    tpu.vector_store %arg6[%c0_134, %c496, %c0_135], %97 {strides = array<i32>} : memref<1x784x384xbf16, #tpu.memory_space<vmem>>, vector<1x16x384xbf16>,
    %c0_136 = arith.constant 0 : index
    %c0_137 = arith.constant 0 : index
    %c92 = arith.constant 92 : index
    %99 = vector.load %arg5[%c0_136, %c0_137, %c92] : memref<1x16x640xf32, #tpu.memory_space<vmem>>, vector<1x16x384xf32>
    %100 = arith.truncf %99 : vector<1x16x384xf32> to vector<1x16x384xbf16>
    %c0_138 = arith.constant 0 : index
    %c512 = arith.constant 512 : index
    %c0_139 = arith.constant 0 : index
    %101 = vector.load %arg6[%c0_138, %c512, %c0_139] : memref<1x784x384xbf16, #tpu.memory_space<vmem>>, vector<1x16x384xbf16>
    tpu.vector_store %arg6[%c0_138, %c512, %c0_139], %100 {strides = array<i32>} : memref<1x784x384xbf16, #tpu.memory_space<vmem>>, vector<1x16x384xbf16>,
    %c0_140 = arith.constant 0 : index
    %c0_141 = arith.constant 0 : index
    %c93 = arith.constant 93 : index
    %102 = vector.load %arg5[%c0_140, %c0_141, %c93] : memref<1x16x640xf32, #tpu.memory_space<vmem>>, vector<1x16x384xf32>
    %103 = arith.truncf %102 : vector<1x16x384xf32> to vector<1x16x384xbf16>
    %c0_142 = arith.constant 0 : index
    %c528 = arith.constant 528 : index
    %c0_143 = arith.constant 0 : index
    %104 = vector.load %arg6[%c0_142, %c528, %c0_143] : memref<1x784x384xbf16, #tpu.memory_space<vmem>>, vector<1x16x384xbf16>
    tpu.vector_store %arg6[%c0_142, %c528, %c0_143], %103 {strides = array<i32>} : memref<1x784x384xbf16, #tpu.memory_space<vmem>>, vector<1x16x384xbf16>,
    %c0_144 = arith.constant 0 : index
    %c0_145 = arith.constant 0 : index
    %c94 = arith.constant 94 : index
    %105 = vector.load %arg5[%c0_144, %c0_145, %c94] : memref<1x16x640xf32, #tpu.memory_space<vmem>>, vector<1x16x384xf32>
    %106 = arith.truncf %105 : vector<1x16x384xf32> to vector<1x16x384xbf16>
    %c0_146 = arith.constant 0 : index
    %c544 = arith.constant 544 : index
    %c0_147 = arith.constant 0 : index
    %107 = vector.load %arg6[%c0_146, %c544, %c0_147] : memref<1x784x384xbf16, #tpu.memory_space<vmem>>, vector<1x16x384xbf16>
    tpu.vector_store %arg6[%c0_146, %c544, %c0_147], %106 {strides = array<i32>} : memref<1x784x384xbf16, #tpu.memory_space<vmem>>, vector<1x16x384xbf16>,
    %c0_148 = arith.constant 0 : index
    %c0_149 = arith.constant 0 : index
    %c110 = arith.constant 110 : index
    %108 = vector.load %arg5[%c0_148, %c0_149, %c110] : memref<1x16x640xf32, #tpu.memory_space<vmem>>, vector<1x16x384xf32>
    %109 = arith.truncf %108 : vector<1x16x384xf32> to vector<1x16x384xbf16>
    %c0_150 = arith.constant 0 : index
    %c560 = arith.constant 560 : index
    %c0_151 = arith.constant 0 : index
    %110 = vector.load %arg6[%c0_150, %c560, %c0_151] : memref<1x784x384xbf16, #tpu.memory_space<vmem>>, vector<1x16x384xbf16>
    tpu.vector_store %arg6[%c0_150, %c560, %c0_151], %109 {strides = array<i32>} : memref<1x784x384xbf16, #tpu.memory_space<vmem>>, vector<1x16x384xbf16>,
    %c0_152 = arith.constant 0 : index
    %c0_153 = arith.constant 0 : index
    %c111 = arith.constant 111 : index
    %111 = vector.load %arg5[%c0_152, %c0_153, %c111] : memref<1x16x640xf32, #tpu.memory_space<vmem>>, vector<1x16x384xf32>
    %112 = arith.truncf %111 : vector<1x16x384xf32> to vector<1x16x384xbf16>
    %c0_154 = arith.constant 0 : index
    %c576 = arith.constant 576 : index
    %c0_155 = arith.constant 0 : index
    %113 = vector.load %arg6[%c0_154, %c576, %c0_155] : memref<1x784x384xbf16, #tpu.memory_space<vmem>>, vector<1x16x384xbf16>
    tpu.vector_store %arg6[%c0_154, %c576, %c0_155], %112 {strides = array<i32>} : memref<1x784x384xbf16, #tpu.memory_space<vmem>>, vector<1x16x384xbf16>,
    %c0_156 = arith.constant 0 : index
    %c0_157 = arith.constant 0 : index
    %c112_158 = arith.constant 112 : index
    %114 = vector.load %arg5[%c0_156, %c0_157, %c112_158] : memref<1x16x640xf32, #tpu.memory_space<vmem>>, vector<1x16x384xf32>
    %115 = arith.truncf %114 : vector<1x16x384xf32> to vector<1x16x384xbf16>
    %c0_159 = arith.constant 0 : index
    %c592 = arith.constant 592 : index
    %c0_160 = arith.constant 0 : index
    %116 = vector.load %arg6[%c0_159, %c592, %c0_160] : memref<1x784x384xbf16, #tpu.memory_space<vmem>>, vector<1x16x384xbf16>
    tpu.vector_store %arg6[%c0_159, %c592, %c0_160], %115 {strides = array<i32>} : memref<1x784x384xbf16, #tpu.memory_space<vmem>>, vector<1x16x384xbf16>,
    %c0_161 = arith.constant 0 : index
    %c0_162 = arith.constant 0 : index
    %c113 = arith.constant 113 : index
    %117 = vector.load %arg5[%c0_161, %c0_162, %c113] : memref<1x16x640xf32, #tpu.memory_space<vmem>>, vector<1x16x384xf32>
    %118 = arith.truncf %117 : vector<1x16x384xf32> to vector<1x16x384xbf16>
    %c0_163 = arith.constant 0 : index
    %c608 = arith.constant 608 : index
    %c0_164 = arith.constant 0 : index
    %119 = vector.load %arg6[%c0_163, %c608, %c0_164] : memref<1x784x384xbf16, #tpu.memory_space<vmem>>, vector<1x16x384xbf16>
    tpu.vector_store %arg6[%c0_163, %c608, %c0_164], %118 {strides = array<i32>} : memref<1x784x384xbf16, #tpu.memory_space<vmem>>, vector<1x16x384xbf16>,
    %c0_165 = arith.constant 0 : index
    %c0_166 = arith.constant 0 : index
    %c114 = arith.constant 114 : index
    %120 = vector.load %arg5[%c0_165, %c0_166, %c114] : memref<1x16x640xf32, #tpu.memory_space<vmem>>, vector<1x16x384xf32>
    %121 = arith.truncf %120 : vector<1x16x384xf32> to vector<1x16x384xbf16>
    %c0_167 = arith.constant 0 : index
    %c624 = arith.constant 624 : index
    %c0_168 = arith.constant 0 : index
    %122 = vector.load %arg6[%c0_167, %c624, %c0_168] : memref<1x784x384xbf16, #tpu.memory_space<vmem>>, vector<1x16x384xbf16>
    tpu.vector_store %arg6[%c0_167, %c624, %c0_168], %121 {strides = array<i32>} : memref<1x784x384xbf16, #tpu.memory_space<vmem>>, vector<1x16x384xbf16>,
    %c0_169 = arith.constant 0 : index
    %c0_170 = arith.constant 0 : index
    %c115 = arith.constant 115 : index
    %123 = vector.load %arg5[%c0_169, %c0_170, %c115] : memref<1x16x640xf32, #tpu.memory_space<vmem>>, vector<1x16x384xf32>
    %124 = arith.truncf %123 : vector<1x16x384xf32> to vector<1x16x384xbf16>
    %c0_171 = arith.constant 0 : index
    %c640 = arith.constant 640 : index
    %c0_172 = arith.constant 0 : index
    %125 = vector.load %arg6[%c0_171, %c640, %c0_172] : memref<1x784x384xbf16, #tpu.memory_space<vmem>>, vector<1x16x384xbf16>
    tpu.vector_store %arg6[%c0_171, %c640, %c0_172], %124 {strides = array<i32>} : memref<1x784x384xbf16, #tpu.memory_space<vmem>>, vector<1x16x384xbf16>,
    %c0_173 = arith.constant 0 : index
    %c0_174 = arith.constant 0 : index
    %c116 = arith.constant 116 : index
    %126 = vector.load %arg5[%c0_173, %c0_174, %c116] : memref<1x16x640xf32, #tpu.memory_space<vmem>>, vector<1x16x384xf32>
    %127 = arith.truncf %126 : vector<1x16x384xf32> to vector<1x16x384xbf16>
    %c0_175 = arith.constant 0 : index
    %c656 = arith.constant 656 : index
    %c0_176 = arith.constant 0 : index
    %128 = vector.load %arg6[%c0_175, %c656, %c0_176] : memref<1x784x384xbf16, #tpu.memory_space<vmem>>, vector<1x16x384xbf16>
    tpu.vector_store %arg6[%c0_175, %c656, %c0_176], %127 {strides = array<i32>} : memref<1x784x384xbf16, #tpu.memory_space<vmem>>, vector<1x16x384xbf16>,
    %c0_177 = arith.constant 0 : index
    %c0_178 = arith.constant 0 : index
    %c132 = arith.constant 132 : index
    %129 = vector.load %arg5[%c0_177, %c0_178, %c132] : memref<1x16x640xf32, #tpu.memory_space<vmem>>, vector<1x16x384xf32>
    %130 = arith.truncf %129 : vector<1x16x384xf32> to vector<1x16x384xbf16>
    %c0_179 = arith.constant 0 : index
    %c672 = arith.constant 672 : index
    %c0_180 = arith.constant 0 : index
    %131 = vector.load %arg6[%c0_179, %c672, %c0_180] : memref<1x784x384xbf16, #tpu.memory_space<vmem>>, vector<1x16x384xbf16>
    tpu.vector_store %arg6[%c0_179, %c672, %c0_180], %130 {strides = array<i32>} : memref<1x784x384xbf16, #tpu.memory_space<vmem>>, vector<1x16x384xbf16>,
    %c0_181 = arith.constant 0 : index
    %c0_182 = arith.constant 0 : index
    %c133 = arith.constant 133 : index
    %132 = vector.load %arg5[%c0_181, %c0_182, %c133] : memref<1x16x640xf32, #tpu.memory_space<vmem>>, vector<1x16x384xf32>
    %133 = arith.truncf %132 : vector<1x16x384xf32> to vector<1x16x384xbf16>
    %c0_183 = arith.constant 0 : index
    %c688 = arith.constant 688 : index
    %c0_184 = arith.constant 0 : index
    %134 = vector.load %arg6[%c0_183, %c688, %c0_184] : memref<1x784x384xbf16, #tpu.memory_space<vmem>>, vector<1x16x384xbf16>
    tpu.vector_store %arg6[%c0_183, %c688, %c0_184], %133 {strides = array<i32>} : memref<1x784x384xbf16, #tpu.memory_space<vmem>>, vector<1x16x384xbf16>,
    %c0_185 = arith.constant 0 : index
    %c0_186 = arith.constant 0 : index
    %c134 = arith.constant 134 : index
    %135 = vector.load %arg5[%c0_185, %c0_186, %c134] : memref<1x16x640xf32, #tpu.memory_space<vmem>>, vector<1x16x384xf32>
    %136 = arith.truncf %135 : vector<1x16x384xf32> to vector<1x16x384xbf16>
    %c0_187 = arith.constant 0 : index
    %c704 = arith.constant 704 : index
    %c0_188 = arith.constant 0 : index
    %137 = vector.load %arg6[%c0_187, %c704, %c0_188] : memref<1x784x384xbf16, #tpu.memory_space<vmem>>, vector<1x16x384xbf16>
    tpu.vector_store %arg6[%c0_187, %c704, %c0_188], %136 {strides = array<i32>} : memref<1x784x384xbf16, #tpu.memory_space<vmem>>, vector<1x16x384xbf16>,
    %c0_189 = arith.constant 0 : index
    %c0_190 = arith.constant 0 : index
    %c135 = arith.constant 135 : index
    %138 = vector.load %arg5[%c0_189, %c0_190, %c135] : memref<1x16x640xf32, #tpu.memory_space<vmem>>, vector<1x16x384xf32>
    %139 = arith.truncf %138 : vector<1x16x384xf32> to vector<1x16x384xbf16>
    %c0_191 = arith.constant 0 : index
    %c720 = arith.constant 720 : index
    %c0_192 = arith.constant 0 : index
    %140 = vector.load %arg6[%c0_191, %c720, %c0_192] : memref<1x784x384xbf16, #tpu.memory_space<vmem>>, vector<1x16x384xbf16>
    tpu.vector_store %arg6[%c0_191, %c720, %c0_192], %139 {strides = array<i32>} : memref<1x784x384xbf16, #tpu.memory_space<vmem>>, vector<1x16x384xbf16>,
    %c0_193 = arith.constant 0 : index
    %c0_194 = arith.constant 0 : index
    %c136 = arith.constant 136 : index
    %141 = vector.load %arg5[%c0_193, %c0_194, %c136] : memref<1x16x640xf32, #tpu.memory_space<vmem>>, vector<1x16x384xf32>
    %142 = arith.truncf %141 : vector<1x16x384xf32> to vector<1x16x384xbf16>
    %c0_195 = arith.constant 0 : index
    %c736 = arith.constant 736 : index
    %c0_196 = arith.constant 0 : index
    %143 = vector.load %arg6[%c0_195, %c736, %c0_196] : memref<1x784x384xbf16, #tpu.memory_space<vmem>>, vector<1x16x384xbf16>
    tpu.vector_store %arg6[%c0_195, %c736, %c0_196], %142 {strides = array<i32>} : memref<1x784x384xbf16, #tpu.memory_space<vmem>>, vector<1x16x384xbf16>,
    %c0_197 = arith.constant 0 : index
    %c0_198 = arith.constant 0 : index
    %c137 = arith.constant 137 : index
    %144 = vector.load %arg5[%c0_197, %c0_198, %c137] : memref<1x16x640xf32, #tpu.memory_space<vmem>>, vector<1x16x384xf32>
    %145 = arith.truncf %144 : vector<1x16x384xf32> to vector<1x16x384xbf16>
    %c0_199 = arith.constant 0 : index
    %c752 = arith.constant 752 : index
    %c0_200 = arith.constant 0 : index
    %146 = vector.load %arg6[%c0_199, %c752, %c0_200] : memref<1x784x384xbf16, #tpu.memory_space<vmem>>, vector<1x16x384xbf16>
    tpu.vector_store %arg6[%c0_199, %c752, %c0_200], %145 {strides = array<i32>} : memref<1x784x384xbf16, #tpu.memory_space<vmem>>, vector<1x16x384xbf16>,
    %c0_201 = arith.constant 0 : index
    %c0_202 = arith.constant 0 : index
    %c138 = arith.constant 138 : index
    %147 = vector.load %arg5[%c0_201, %c0_202, %c138] : memref<1x16x640xf32, #tpu.memory_space<vmem>>, vector<1x16x384xf32>
    %148 = arith.truncf %147 : vector<1x16x384xf32> to vector<1x16x384xbf16>
    %c0_203 = arith.constant 0 : index
    %c768 = arith.constant 768 : index
    %c0_204 = arith.constant 0 : index
    %149 = vector.load %arg6[%c0_203, %c768, %c0_204] : memref<1x784x384xbf16, #tpu.memory_space<vmem>>, vector<1x16x384xbf16>
    tpu.vector_store %arg6[%c0_203, %c768, %c0_204], %148 {strides = array<i32>} : memref<1x784x384xbf16, #tpu.memory_space<vmem>>, vector<1x16x384xbf16>,
    %c0_205 = arith.constant 0 : index
    %c0_206 = arith.constant 0 : index
    %150 = vector.load %arg2[%c0_205, %c0_206] : memref<2x784xbf16, #tpu.memory_space<vmem>>, vector<2x784xbf16>
    %c0_207 = arith.constant 0 : index
    %c0_208 = arith.constant 0 : index
    %151 = vector.load %arg3[%c0_207, %c0_208] : memref<2x1xf32, #tpu.memory_space<vmem>>, vector<2x1xf32>
    %c0_209 = arith.constant 0 : index
    %c0_210 = arith.constant 0 : index
    %c0_211 = arith.constant 0 : index
    %152 = vector.load %arg6[%c0_209, %c0_210, %c0_211] : memref<1x784x384xbf16, #tpu.memory_space<vmem>>, vector<1x784x384xbf16>
    %153 = vector.shape_cast %152 : vector<1x784x384xbf16> to vector<784x384xbf16>
    %cst = arith.constant dense<0.000000e+00> : vector<2x384xf32>
    %154 = tpu.matmul %150, %153, %cst {dimension_numbers = #tpu.dot_dimension_numbers<[1], [0], [0], [1], [0, 0, 1, 1], [], []>} : vector<2x784xbf16>, vector<784x384xbf16>, vector<2x384xf32> -> vector<2x384xf32>
    %155 = vector.broadcast %151 : vector<2x1xf32> to vector<2x384xf32>
    %156 = arith.addf %154, %155 : vector<2x384xf32>
    %157 = math.tanh %156 : vector<2x384xf32>
    %c0_212 = arith.constant 0 : index
    %c0_213 = arith.constant 0 : index
    %c0_214 = arith.constant 0 : index
    %158 = vector.load %arg4[%c0_212, %c0_213, %c0_214] : memref<1x2x384xf32, #tpu.memory_space<vmem>>, vector<1x2x384xf32>
    %159 = vector.shape_cast %158 : vector<1x2x384xf32> to vector<2x384xf32>
    %160 = vector.shape_cast %157 : vector<2x384xf32> to vector<1x2x384xf32>
    tpu.vector_store %arg4[%c0_212, %c0_213, %c0_214], %160 {strides = array<i32>} : memref<1x2x384xf32, #tpu.memory_space<vmem>>, vector<1x2x384xf32>,
    return
  }
  func.func @transform_0(%arg0: i32) -> (i32, i32, i32) {
    %c0_i32 = arith.constant 0 : i32
    %c0_i32_0 = arith.constant 0 : i32
    %c0_i32_1 = arith.constant 0 : i32
    return %arg0, %c0_i32, %c0_i32_0 : i32, i32, i32
  }
  func.func @transform_1(%arg0: i32) -> (i32, i32) {
    %c0_i32 = arith.constant 0 : i32
    %c0_i32_0 = arith.constant 0 : i32
    %c0_i32_1 = arith.constant 0 : i32
    return %c0_i32, %c0_i32_0 : i32, i32
  }
  func.func @transform_2(%arg0: i32) -> (i32, i32) {
    %c0_i32 = arith.constant 0 : i32
    %c0_i32_0 = arith.constant 0 : i32
    %c0_i32_1 = arith.constant 0 : i32
    return %c0_i32, %c0_i32_0 : i32, i32
  }
  func.func @transform_3(%arg0: i32) -> (i32, i32, i32) {
    %c0_i32 = arith.constant 0 : i32
    %c0_i32_0 = arith.constant 0 : i32
    %c0_i32_1 = arith.constant 0 : i32
    return %arg0, %c0_i32, %c0_i32_0 : i32, i32, i32
  }
}

</mosaic_0001>

<llo_original>
// kernel: tpu_custom_call.1
$region0: #{tpu_custom_call.1}
  #allocation0 [shape = 'u32[]', space=smem, size = 0x4, offset = 0x4, fixed_abs, tag = 'smem constant byte address 0x4 - core index']
  #allocation1 [shape = 'u32[144,128]{1,0:T(1,128)}', space=vmem, size = 0x12000, scoped, tag = 'internal scratch']
  #allocation2 [shape = 'f32[1,16,640]{2,1,0:T(8,128)}', space=vmem, size = 0xa000, scoped, tag = 'scratch operand']
  #allocation3 [shape = 'bf16[1,784,384]{2,1,0:T(16,128)(2,1)}', space=vmem, size = 0x93000, scoped, tag = 'scratch operand']
  %s0 = inlined_call_operand.hbm [shape: bf16[2,16,640], index: 0, kind: input, shape index: {}]
  %s1 = inlined_call_operand.vmem [shape: bf16[2,784], index: 1, kind: input, shape index: {}]
  %s2 = inlined_call_operand.vmem [shape: f32[2,1], index: 2, kind: input, shape index: {}]
  %s3 = inlined_call_operand.hbm [shape: f32[2,2,384], index: 3, kind: output, shape index: {}]
  %s4 = sld [smem:[#allocation0]]
  $region49: #{tpu_custom_call.1} parent=0
    _
  %s6 = ssub.s32 1, %s4
  %s7 = scalar_select 0, %s6, %s4
  $region1: #{tpu_custom_call.1} parent=0
    #allocation4 [shape = 'u8[40960]{0}', space=vmem, size = 0xa000, scoped, tag = 'input window, operand 0']
    #allocation5 [shape = 's32[2]{0}', space=sflag, size = 0x8, scoped, tag = 'scoped memory for tpu_custom_call.1']
    #allocation6 [shape = 's32[2]{0}', space=sflag, size = 0x8, scoped, tag = 'scoped memory for tpu_custom_call.1']
    #allocation7 [shape = 'u8[6144]{0}', space=vmem, size = 0x1800, scoped, tag = 'output window, operand 0']
    %8 = vsyncpa [#allocation5], 0
    %s9 = scalar_lea.sflag [#allocation5], 1
    %10 = vsyncpa %s9, 0
    %11 = vsyncpa [#allocation6], 0
    %s12 = scalar_lea.sflag [#allocation6], 1
    %13 = vsyncpa %s12, 0
    loop: start=0, step=1, limit=4
    $region2: #{tpu_custom_call.1} parent=1 // loop_pre_header
      _
    $region3: #{tpu_custom_call.1} parent=1 // loop_header
      %s15 = sphi 0, %s19
      %p16 = scmp.ge.s32.totalorder %s15, 4
      %s25 = sphi 0, %s27
      %s28 = sphi 0, %s25
      %s29 = sphi 0, %s28
      %s45 = sphi 0, %s29
      %s49 = sphi 0, %s49
      %s51 = sphi 0, %s49
      %s52 = sphi 0, %s51
      %s66 = sphi 0, %s52
      %s70 = sphi 0, %s70
      %s72 = sphi 0, %s70
      %s73 = sphi 0, %s72
      %s87 = sphi 0, %s73
      %s93 = sphi 0, %s95
      %s96 = sphi 0, %s93
      %s97 = sphi 0, %s96
      %s113 = sphi 0, %s97
    $region4: #{tpu_custom_call.1} parent=1 // loop_header_branch
      %18 = sbr.rel (%p16) target = $region8
    $region5: #{tpu_custom_call.1} parent=1 // loop_body
      %s20 = ssub.s32 %s15, 1
      %s21 = ssub.s32 %s15, 2
      %s22 = sadd.s32 %s15, 1
      %s23 = ssub.s32 %s15, %s22
      %p24 = scmp.eq.s32.totalorder %s23, 0
      %s26 = sadd.s32 %s25, 1
      %s27 = scalar_select %p24, %s25, %s26
      %p30 = pneg %p24
      %p31 = scmp.eq.s32.totalorder %s15, 1
      %p32 = por %p30, %p31
      %p33 = scmp.ne.s32.totalorder %s25, %s28
      %p34 = scmp.eq.s32.totalorder %s15, 0
      %p35 = por %p33, %p34
      %p36 = scmp.ne.s32.totalorder %s25, %s28
      %p37 = scmp.eq.s32.totalorder %s20, 1
      %p38 = por %p36, %p37
      %p39 = scmp.ne.s32.totalorder %s28, %s29
      %p40 = scmp.eq.s32.totalorder %s20, 0
      %p41 = por %p39, %p40
      %p42 = scmp.ne.s32.totalorder %s28, %s29
      %p43 = scmp.eq.s32.totalorder %s21, 1
      %p44 = por %p42, %p43
      %p46 = scmp.ne.s32.totalorder %s29, %s45
      %p47 = scmp.eq.s32.totalorder %s21, 0
      %p48 = por %p46, %p47
      %s50 = sadd.s32 %s49, 1
      %p53 = scmp.eq.s32.totalorder %s15, 1
      %p54 = scmp.ne.s32.totalorder %s49, %s51
      %p55 = scmp.eq.s32.totalorder %s15, 0
      %p56 = por %p54, %p55
      %p57 = scmp.ne.s32.totalorder %s49, %s51
      %p58 = scmp.eq.s32.totalorder %s20, 1
      %p59 = por %p57, %p58
      %p60 = scmp.ne.s32.totalorder %s51, %s52
      %p61 = scmp.eq.s32.totalorder %s20, 0
      %p62 = por %p60, %p61
      %p63 = scmp.ne.s32.totalorder %s51, %s52
      %p64 = scmp.eq.s32.totalorder %s21, 1
      %p65 = por %p63, %p64
      %p67 = scmp.ne.s32.totalorder %s52, %s66
      %p68 = scmp.eq.s32.totalorder %s21, 0
      %p69 = por %p67, %p68
      %s71 = sadd.s32 %s70, 1
      %p74 = scmp.eq.s32.totalorder %s15, 1
      %p75 = scmp.ne.s32.totalorder %s70, %s72
      %p76 = scmp.eq.s32.totalorder %s15, 0
      %p77 = por %p75, %p76
      %p78 = scmp.ne.s32.totalorder %s70, %s72
      %p79 = scmp.eq.s32.totalorder %s20, 1
      %p80 = por %p78, %p79
      %p81 = scmp.ne.s32.totalorder %s72, %s73
      %p82 = scmp.eq.s32.totalorder %s20, 0
      %p83 = por %p81, %p82
      %p84 = scmp.ne.s32.totalorder %s72, %s73
      %p85 = scmp.eq.s32.totalorder %s21, 1
      %p86 = por %p84, %p85
      %p88 = scmp.ne.s32.totalorder %s73, %s87
      %p89 = scmp.eq.s32.totalorder %s21, 0
      %p90 = por %p88, %p89
      %s91 = ssub.s32 %s15, %s22
      %p92 = scmp.eq.s32.totalorder %s91, 0
      %s94 = sadd.s32 %s93, 1
      %s95 = scalar_select %p92, %s93, %s94
      %p98 = pneg %p92
      %p99 = scmp.eq.s32.totalorder %s15, 1
      %p100 = por %p98, %p99
      %p101 = scmp.ne.s32.totalorder %s93, %s96
      %p102 = scmp.eq.s32.totalorder %s15, 0
      %p103 = por %p101, %p102
      %p104 = scmp.ne.s32.totalorder %s93, %s96
      %p105 = scmp.eq.s32.totalorder %s20, 1
      %p106 = por %p104, %p105
      %p107 = scmp.ne.s32.totalorder %s96, %s97
      %p108 = scmp.eq.s32.totalorder %s20, 0
      %p109 = por %p107, %p108
      %p110 = scmp.ne.s32.totalorder %s96, %s97
      %p111 = scmp.eq.s32.totalorder %s21, 1
      %p112 = por %p110, %p111
      %p114 = scmp.ne.s32.totalorder %s97, %s113
      %p115 = scmp.eq.s32.totalorder %s21, 0
      %p116 = por %p114, %p115
      %p117 = scmp.le.s32.totalorder 1, %s15
      %p118 = scmp.lt.s32.totalorder %s15, 3
      %p119 = pnand %p117, %p118
      %p120 = pneg %p119
      // Predicated region
      $region9: #{tpu_custom_call.1} parent=5 // pred_check
        _
      $region10: #{tpu_custom_call.1} parent=5 // pred_check_branch
        %122 = sbr.rel (%p119) target = $region12
      $region11: #{tpu_custom_call.1} parent=5 // pred_region
        %s123 = ssub.s32 %s15, 1
        // Predicated region
        $region13: #{tpu_custom_call.1} parent=11 // pred_check
          %p124 = pneg %p62
        $region14: #{tpu_custom_call.1} parent=11 // pred_check_branch
          %126 = sbr.rel (%p124) target = $region16
        $region15: #{tpu_custom_call.1} parent=11 // pred_region
          _
        $region16: #{tpu_custom_call.1} parent=11 // pred_fallthru
          _
        // Predicated region
        $region17: #{tpu_custom_call.1} parent=11 // pred_check
          %p127 = pneg %p83
        $region18: #{tpu_custom_call.1} parent=11 // pred_check_branch
          %129 = sbr.rel (%p127) target = $region20
        $region19: #{tpu_custom_call.1} parent=11 // pred_region
          _
        $region20: #{tpu_custom_call.1} parent=11 // pred_fallthru
          _
      $region12: #{tpu_custom_call.1} parent=5 // pred_fallthru
        _
      %p130 = scmp.lt.s32.totalorder %s15, 2
      // Predicated region
      $region21: #{tpu_custom_call.1} parent=5 // pred_check
        %p131 = pneg %p130
      $region22: #{tpu_custom_call.1} parent=5 // pred_check_branch
        %133 = sbr.rel (%p131) target = $region24
      $region23: #{tpu_custom_call.1} parent=5 // pred_region
        // Predicated region
        $region25: #{tpu_custom_call.1} parent=23 // pred_check
          %p134 = pneg %p35
        $region26: #{tpu_custom_call.1} parent=23 // pred_check_branch
          %136 = sbr.rel (%p134) target = $region28
        $region27: #{tpu_custom_call.1} parent=23 // pred_region
          %s137 = sand.u32 %s25, 1
          %s138 = scalar_lea.sflag [#allocation5], %s137
          %s139 = sand.u32 %s25, 1
          %s140 = smul.addr %s139, 40
          %s141 = scalar_lea.vmem [#allocation4], %s140
          %s143 = ssub.s32 640, 640
          %144 = vsyncadd %s138, %s143
          %s145 = smul.addr %s15, 10
          %s146 = smul.addr %s145, 64
          %s147 = scalar_lea.hbm %s0, %s146
          %s148 = sshll.u32 %s141, 4
          %s149 = int_to_ptr.vmem [resolvable:$true] %s148
          %154 = dma.hbm_to_vmem [thread:$0]  %s147, 640, %s149, %s138, 320, 320, 20
        $region28: #{tpu_custom_call.1} parent=23 // pred_fallthru
          _
      $region24: #{tpu_custom_call.1} parent=5 // pred_fallthru
        _
      %p155 = scmp.le.s32.totalorder 1, %s15
      %p156 = scmp.lt.s32.totalorder %s15, 3
      %p157 = pnand %p155, %p156
      %p158 = pneg %p157
      // Predicated region
      $region29: #{tpu_custom_call.1} parent=5 // pred_check
        _
      $region30: #{tpu_custom_call.1} parent=5 // pred_check_branch
        %160 = sbr.rel (%p157) target = $region32
      $region31: #{tpu_custom_call.1} parent=5 // pred_region
        %s161 = ssub.s32 %s15, 1
        %s162 = sand.u32 %s28, 1
        %s163 = scalar_lea.sflag [#allocation5], %s162
        %s164 = sand.u32 %s28, 1
        %s165 = smul.addr %s164, 40
        %s166 = scalar_lea.vmem [#allocation4], %s165
        // Predicated region
        $region33: #{tpu_custom_call.1} parent=31 // pred_check
          %p167 = pneg %p41
        $region34: #{tpu_custom_call.1} parent=31 // pred_check_branch
          %169 = sbr.rel (%p167) target = $region36
        $region35: #{tpu_custom_call.1} parent=31 // pred_region
          %170 = dma.done %s163, 640
        $region36: #{tpu_custom_call.1} parent=31 // pred_fallthru
          _
        %s171 = sand.u32 %s28, 1
        %s172 = scalar_lea.sflag [#allocation5], %s171
        %s173 = sand.u32 %s28, 1
        %s174 = smul.addr %s173, 40
        %s175 = scalar_lea.vmem [#allocation4], %s174
        %p176 = pneg %p41
        %p177 = pneg %p38
        %p178 = pneg %p62
        %p179 = pneg %p59
        %p180 = pneg %p83
        %p181 = pneg %p80
        %p182 = pneg %p109
        %p183 = pneg %p106
        %s184 = sand.u32 %s96, 1
        %s185 = scalar_lea.sflag [#allocation6], %s184
        %s186 = sand.u32 %s96, 1
        %s187 = smul.addr %s186, 6
        %s188 = scalar_lea.vmem [#allocation7], %s187
        %v190 = vld [vmem:[%s166] sm:$0xff]
        %v191 = vld [vmem:[%s166 + $0x8] sm:$0xff]
        %v192 = vld [vmem:[%s166 + $0x10] sm:$0xf]
        %v193 = vld [vmem:[%s166 + $0x14] sm:$0xff]
        %v194 = vld [vmem:[%s166 + $0x1c] sm:$0xff]
        %v195 = vld [vmem:[%s166 + $0x24] sm:$0xf]
        %v196 = vunpack.c.l.bf16 %v190
        %v197 = vunpack.c.h.bf16 %v190
        %v198 = vunpack.c.l.bf16 %v191
        %v199 = vunpack.c.h.bf16 %v191
        %v200 = vunpack.c.l.bf16 %v192
        %v201 = vunpack.c.l.bf16 %v193
        %v202 = vunpack.c.h.bf16 %v193
        %v203 = vunpack.c.l.bf16 %v194
        %v204 = vunpack.c.h.bf16 %v194
        %v205 = vunpack.c.l.bf16 %v195
        %206 = vst [vmem:[#allocation2] sm:$0xff] %v196
        %207 = vst [vmem:[#allocation2 + $0x8] sm:$0xff] %v197
        %208 = vst [vmem:[#allocation2 + $0x10] sm:$0xff] %v198
        %209 = vst [vmem:[#allocation2 + $0x18] sm:$0xff] %v199
        %210 = vst [vmem:[#allocation2 + $0x20] sm:$0xff] %v200
        %211 = vst [vmem:[#allocation2 + $0x28] sm:$0xff] %v201
        %212 = vst [vmem:[#allocation2 + $0x30] sm:$0xff] %v202
        %213 = vst [vmem:[#allocation2 + $0x38] sm:$0xff] %v203
        %214 = vst [vmem:[#allocation2 + $0x40] sm:$0xff] %v204
        %215 = vst [vmem:[#allocation2 + $0x48] sm:$0xff] %v205
        %v216 = vld [vmem:[#allocation2] sm:$0xff]
        %v217 = vld [vmem:[#allocation2 + $0x8] sm:$0xff]
        %v218 = vld [vmem:[#allocation2 + $0x10] sm:$0xff]
        %v219 = vld [vmem:[#allocation2 + $0x28] sm:$0xff]
        %v220 = vld [vmem:[#allocation2 + $0x30] sm:$0xff]
        %v221 = vld [vmem:[#allocation2 + $0x38] sm:$0xff]
        %v222 = vpack.c.bf16 %v219, %v216
        %v223 = vpack.c.bf16 %v220, %v217
        %v224 = vpack.c.bf16 %v221, %v218
        %225 = vst [vmem:[#allocation3] sm:$0xff] %v222
        %226 = vst [vmem:[#allocation3 + $0x8] sm:$0xff] %v223
        %227 = vst [vmem:[#allocation3 + $0x10] sm:$0xff] %v224
        %v228 = vld [vmem:[#allocation2] sm:$0xff]
        %v229 = vld [vmem:[#allocation2 + $0x8] sm:$0xff]
        %v230 = vld [vmem:[#allocation2 + $0x10] sm:$0xff]
        %v231 = vld [vmem:[#allocation2 + $0x18] sm:$0xff]
        %v232 = vld [vmem:[#allocation2 + $0x28] sm:$0xff]
        %v233 = vld [vmem:[#allocation2 + $0x30] sm:$0xff]
        %v234 = vld [vmem:[#allocation2 + $0x38] sm:$0xff]
        %v235 = vld [vmem:[#allocation2 + $0x40] sm:$0xff]
        %v236 = vpack.c.bf16 %v232, %v228
        %v237 = vpack.c.bf16 %v233, %v229
        %v238 = vpack.c.bf16 %v234, %v230
        %v239 = vpack.c.bf16 %v235, %v231
        %244 = vrot.lane.b32.xlu0 %v236, 127
        %v245 = vpop.permute.xlu0 %244
        %246 = vrot.lane.b32.xlu0 %v237, 127
        %v247 = vpop.permute.xlu0 %246
        %248 = vrot.lane.b32.xlu0 %v238, 127
        %v249 = vpop.permute.xlu0 %248
        %250 = vrot.lane.b32.xlu0 %v239, 127
        %v251 = vpop.permute.xlu0 %250
        %vm252 = vcmask 1039360
        %v253 = vsel %vm252, %v245, %v247
        %v254 = vsel %vm252, %v247, %v249
        %v255 = vsel %vm252, %v249, %v251
        %259 = vst [vmem:[#allocation3 + $0x18] sm:$0xff] %v253
        %260 = vst [vmem:[#allocation3 + $0x20] sm:$0xff] %v254
        %261 = vst [vmem:[#allocation3 + $0x28] sm:$0xff] %v255
        %v262 = vld [vmem:[#allocation2] sm:$0xff]
        %v263 = vld [vmem:[#allocation2 + $0x8] sm:$0xff]
        %v264 = vld [vmem:[#allocation2 + $0x10] sm:$0xff]
        %v265 = vld [vmem:[#allocation2 + $0x18] sm:$0xff]
        %v266 = vld [vmem:[#allocation2 + $0x28] sm:$0xff]
        %v267 = vld [vmem:[#allocation2 + $0x30] sm:$0xff]
        %v268 = vld [vmem:[#allocation2 + $0x38] sm:$0xff]
        %v269 = vld [vmem:[#allocation2 + $0x40] sm:$0xff]
        %v270 = vpack.c.bf16 %v266, %v262
        %v271 = vpack.c.bf16 %v267, %v263
        %v272 = vpack.c.bf16 %v268, %v264
        %v273 = vpack.c.bf16 %v269, %v265
        %278 = vrot.lane.b32.xlu0 %v270, 126
        %v279 = vpop.permute.xlu0 %278
        %280 = vrot.lane.b32.xlu0 %v271, 126
        %v281 = vpop.permute.xlu0 %280
        %282 = vrot.lane.b32.xlu0 %v272, 126
        %v283 = vpop.permute.xlu0 %282
        %284 = vrot.lane.b32.xlu0 %v273, 126
        %v285 = vpop.permute.xlu0 %284
        %vm286 = vcmask 1031168
        %v287 = vsel %vm286, %v279, %v281
        %v288 = vsel %vm286, %v281, %v283
        %v289 = vsel %vm286, %v283, %v285
        %293 = vst [vmem:[#allocation3 + $0x30] sm:$0xff] %v287
        %294 = vst [vmem:[#allocation3 + $0x38] sm:$0xff] %v288
        %295 = vst [vmem:[#allocation3 + $0x40] sm:$0xff] %v289
        %v296 = vld [vmem:[#allocation2] sm:$0xff]
        %v297 = vld [vmem:[#allocation2 + $0x8] sm:$0xff]
        %v298 = vld [vmem:[#allocation2 + $0x10] sm:$0xff]
        %v299 = vld [vmem:[#allocation2 + $0x18] sm:$0xff]
        %v300 = vld [vmem:[#allocation2 + $0x28] sm:$0xff]
        %v301 = vld [vmem:[#allocation2 + $0x30] sm:$0xff]
        %v302 = vld [vmem:[#allocation2 + $0x38] sm:$0xff]
        %v303 = vld [vmem:[#allocation2 + $0x40] sm:$0xff]
        %v304 = vpack.c.bf16 %v300, %v296
        %v305 = vpack.c.bf16 %v301, %v297
        %v306 = vpack.c.bf16 %v302, %v298
        %v307 = vpack.c.bf16 %v303, %v299
        %312 = vrot.lane.b32.xlu0 %v304, 125
        %v313 = vpop.permute.xlu0 %312
        %314 = vrot.lane.b32.xlu0 %v305, 125
        %v315 = vpop.permute.xlu0 %314
        %316 = vrot.lane.b32.xlu0 %v306, 125
        %v317 = vpop.permute.xlu0 %316
        %318 = vrot.lane.b32.xlu0 %v307, 125
        %v319 = vpop.permute.xlu0 %318
        %vm320 = vcmask 1022976
        %v321 = vsel %vm320, %v313, %v315
        %v322 = vsel %vm320, %v315, %v317
        %v323 = vsel %vm320, %v317, %v319
        %327 = vst [vmem:[#allocation3 + $0x48] sm:$0xff] %v321
        %328 = vst [vmem:[#allocation3 + $0x50] sm:$0xff] %v322
        %329 = vst [vmem:[#allocation3 + $0x58] sm:$0xff] %v323
        %v330 = vld [vmem:[#allocation2] sm:$0xff]
        %v331 = vld [vmem:[#allocation2 + $0x8] sm:$0xff]
        %v332 = vld [vmem:[#allocation2 + $0x10] sm:$0xff]
        %v333 = vld [vmem:[#allocation2 + $0x18] sm:$0xff]
        %v334 = vld [vmem:[#allocation2 + $0x28] sm:$0xff]
        %v335 = vld [vmem:[#allocation2 + $0x30] sm:$0xff]
        %v336 = vld [vmem:[#allocation2 + $0x38] sm:$0xff]
        %v337 = vld [vmem:[#allocation2 + $0x40] sm:$0xff]
        %v338 = vpack.c.bf16 %v334, %v330
        %v339 = vpack.c.bf16 %v335, %v331
        %v340 = vpack.c.bf16 %v336, %v332
        %v341 = vpack.c.bf16 %v337, %v333
        %346 = vrot.lane.b32.xlu0 %v338, 124
        %v347 = vpop.permute.xlu0 %346
        %348 = vrot.lane.b32.xlu0 %v339, 124
        %v349 = vpop.permute.xlu0 %348
        %350 = vrot.lane.b32.xlu0 %v340, 124
        %v351 = vpop.permute.xlu0 %350
        %352 = vrot.lane.b32.xlu0 %v341, 124
        %v353 = vpop.permute.xlu0 %352
        %vm354 = vcmask 1014784
        %v355 = vsel %vm354, %v347, %v349
        %v356 = vsel %vm354, %v349, %v351
        %v357 = vsel %vm354, %v351, %v353
        %361 = vst [vmem:[#allocation3 + $0x60] sm:$0xff] %v355
        %362 = vst [vmem:[#allocation3 + $0x68] sm:$0xff] %v356
        %363 = vst [vmem:[#allocation3 + $0x70] sm:$0xff] %v357
        %v364 = vld [vmem:[#allocation2] sm:$0xff]
        %v365 = vld [vmem:[#allocation2 + $0x8] sm:$0xff]
        %v366 = vld [vmem:[#allocation2 + $0x10] sm:$0xff]
        %v367 = vld [vmem:[#allocation2 + $0x18] sm:$0xff]
        %v368 = vld [vmem:[#allocation2 + $0x28] sm:$0xff]
        %v369 = vld [vmem:[#allocation2 + $0x30] sm:$0xff]
        %v370 = vld [vmem:[#allocation2 + $0x38] sm:$0xff]
        %v371 = vld [vmem:[#allocation2 + $0x40] sm:$0xff]
        %v372 = vpack.c.bf16 %v368, %v364
        %v373 = vpack.c.bf16 %v369, %v365
        %v374 = vpack.c.bf16 %v370, %v366
        %v375 = vpack.c.bf16 %v371, %v367
        %380 = vrot.lane.b32.xlu0 %v372, 123
        %v381 = vpop.permute.xlu0 %380
        %382 = vrot.lane.b32.xlu0 %v373, 123
        %v383 = vpop.permute.xlu0 %382
        %384 = vrot.lane.b32.xlu0 %v374, 123
        %v385 = vpop.permute.xlu0 %384
        %386 = vrot.lane.b32.xlu0 %v375, 123
        %v387 = vpop.permute.xlu0 %386
        %vm388 = vcmask 1006592
        %v389 = vsel %vm388, %v381, %v383
        %v390 = vsel %vm388, %v383, %v385
        %v391 = vsel %vm388, %v385, %v387
        %395 = vst [vmem:[#allocation3 + $0x78] sm:$0xff] %v389
        %396 = vst [vmem:[#allocation3 + $0x80] sm:$0xff] %v390
        %397 = vst [vmem:[#allocation3 + $0x88] sm:$0xff] %v391
        %v398 = vld [vmem:[#allocation2] sm:$0xff]
        %v399 = vld [vmem:[#allocation2 + $0x8] sm:$0xff]
        %v400 = vld [vmem:[#allocation2 + $0x10] sm:$0xff]
        %v401 = vld [vmem:[#allocation2 + $0x18] sm:$0xff]
        %v402 = vld [vmem:[#allocation2 + $0x28] sm:$0xff]
        %v403 = vld [vmem:[#allocation2 + $0x30] sm:$0xff]
        %v404 = vld [vmem:[#allocation2 + $0x38] sm:$0xff]
        %v405 = vld [vmem:[#allocation2 + $0x40] sm:$0xff]
        %v406 = vpack.c.bf16 %v402, %v398
        %v407 = vpack.c.bf16 %v403, %v399
        %v408 = vpack.c.bf16 %v404, %v400
        %v409 = vpack.c.bf16 %v405, %v401
        %414 = vrot.lane.b32.xlu0 %v406, 122
        %v415 = vpop.permute.xlu0 %414
        %416 = vrot.lane.b32.xlu0 %v407, 122
        %v417 = vpop.permute.xlu0 %416
        %418 = vrot.lane.b32.xlu0 %v408, 122
        %v419 = vpop.permute.xlu0 %418
        %420 = vrot.lane.b32.xlu0 %v409, 122
        %v421 = vpop.permute.xlu0 %420
        %vm422 = vcmask 998400
        %v423 = vsel %vm422, %v415, %v417
        %v424 = vsel %vm422, %v417, %v419
        %v425 = vsel %vm422, %v419, %v421
        %429 = vst [vmem:[#allocation3 + $0x90] sm:$0xff] %v423
        %430 = vst [vmem:[#allocation3 + $0x98] sm:$0xff] %v424
        %431 = vst [vmem:[#allocation3 + $0xa0] sm:$0xff] %v425
        %v432 = vld [vmem:[#allocation2] sm:$0xff]
        %v433 = vld [vmem:[#allocation2 + $0x8] sm:$0xff]
        %v434 = vld [vmem:[#allocation2 + $0x10] sm:$0xff]
        %v435 = vld [vmem:[#allocation2 + $0x18] sm:$0xff]
        %v436 = vld [vmem:[#allocation2 + $0x28] sm:$0xff]
        %v437 = vld [vmem:[#allocation2 + $0x30] sm:$0xff]
        %v438 = vld [vmem:[#allocation2 + $0x38] sm:$0xff]
        %v439 = vld [vmem:[#allocation2 + $0x40] sm:$0xff]
        %v440 = vpack.c.bf16 %v436, %v432
        %v441 = vpack.c.bf16 %v437, %v433
        %v442 = vpack.c.bf16 %v438, %v434
        %v443 = vpack.c.bf16 %v439, %v435
        %448 = vrot.lane.b32.xlu0 %v440, 106
        %v449 = vpop.permute.xlu0 %448
        %450 = vrot.lane.b32.xlu0 %v441, 106
        %v451 = vpop.permute.xlu0 %450
        %452 = vrot.lane.b32.xlu0 %v442, 106
        %v453 = vpop.permute.xlu0 %452
        %454 = vrot.lane.b32.xlu0 %v443, 106
        %v455 = vpop.permute.xlu0 %454
        %vm456 = vcmask 867328
        %v457 = vsel %vm456, %v449, %v451
        %v458 = vsel %vm456, %v451, %v453
        %v459 = vsel %vm456, %v453, %v455
        %463 = vst [vmem:[#allocation3 + $0xa8] sm:$0xff] %v457
        %464 = vst [vmem:[#allocation3 + $0xb0] sm:$0xff] %v458
        %465 = vst [vmem:[#allocation3 + $0xb8] sm:$0xff] %v459
        %v466 = vld [vmem:[#allocation2] sm:$0xff]
        %v467 = vld [vmem:[#allocation2 + $0x8] sm:$0xff]
        %v468 = vld [vmem:[#allocation2 + $0x10] sm:$0xff]
        %v469 = vld [vmem:[#allocation2 + $0x18] sm:$0xff]
        %v470 = vld [vmem:[#allocation2 + $0x28] sm:$0xff]
        %v471 = vld [vmem:[#allocation2 + $0x30] sm:$0xff]
        %v472 = vld [vmem:[#allocation2 + $0x38] sm:$0xff]
        %v473 = vld [vmem:[#allocation2 + $0x40] sm:$0xff]
        %v474 = vpack.c.bf16 %v470, %v466
        %v475 = vpack.c.bf16 %v471, %v467
        %v476 = vpack.c.bf16 %v472, %v468
        %v477 = vpack.c.bf16 %v473, %v469
        %482 = vrot.lane.b32.xlu0 %v474, 105
        %v483 = vpop.permute.xlu0 %482
        %484 = vrot.lane.b32.xlu0 %v475, 105
        %v485 = vpop.permute.xlu0 %484
        %486 = vrot.lane.b32.xlu0 %v476, 105
        %v487 = vpop.permute.xlu0 %486
        %488 = vrot.lane.b32.xlu0 %v477, 105
        %v489 = vpop.permute.xlu0 %488
        %vm490 = vcmask 859136
        %v491 = vsel %vm490, %v483, %v485
        %v492 = vsel %vm490, %v485, %v487
        %v493 = vsel %vm490, %v487, %v489
        %497 = vst [vmem:[#allocation3 + $0xc0] sm:$0xff] %v491
        %498 = vst [vmem:[#allocation3 + $0xc8] sm:$0xff] %v492
        %499 = vst [vmem:[#allocation3 + $0xd0] sm:$0xff] %v493
        %v500 = vld [vmem:[#allocation2] sm:$0xff]
        %v501 = vld [vmem:[#allocation2 + $0x8] sm:$0xff]
        %v502 = vld [vmem:[#allocation2 + $0x10] sm:$0xff]
        %v503 = vld [vmem:[#allocation2 + $0x18] sm:$0xff]
        %v504 = vld [vmem:[#allocation2 + $0x28] sm:$0xff]
        %v505 = vld [vmem:[#allocation2 + $0x30] sm:$0xff]
        %v506 = vld [vmem:[#allocation2 + $0x38] sm:$0xff]
        %v507 = vld [vmem:[#allocation2 + $0x40] sm:$0xff]
        %v508 = vpack.c.bf16 %v504, %v500
        %v509 = vpack.c.bf16 %v505, %v501
        %v510 = vpack.c.bf16 %v506, %v502
        %v511 = vpack.c.bf16 %v507, %v503
        %516 = vrot.lane.b32.xlu0 %v508, 104
        %v517 = vpop.permute.xlu0 %516
        %518 = vrot.lane.b32.xlu0 %v509, 104
        %v519 = vpop.permute.xlu0 %518
        %520 = vrot.lane.b32.xlu0 %v510, 104
        %v521 = vpop.permute.xlu0 %520
        %522 = vrot.lane.b32.xlu0 %v511, 104
        %v523 = vpop.permute.xlu0 %522
        %vm524 = vcmask 850944
        %v525 = vsel %vm524, %v517, %v519
        %v526 = vsel %vm524, %v519, %v521
        %v527 = vsel %vm524, %v521, %v523
        %531 = vst [vmem:[#allocation3 + $0xd8] sm:$0xff] %v525
        %532 = vst [vmem:[#allocation3 + $0xe0] sm:$0xff] %v526
        %533 = vst [vmem:[#allocation3 + $0xe8] sm:$0xff] %v527
        %v534 = vld [vmem:[#allocation2] sm:$0xff]
        %v535 = vld [vmem:[#allocation2 + $0x8] sm:$0xff]
        %v536 = vld [vmem:[#allocation2 + $0x10] sm:$0xff]
        %v537 = vld [vmem:[#allocation2 + $0x18] sm:$0xff]
        %v538 = vld [vmem:[#allocation2 + $0x28] sm:$0xff]
        %v539 = vld [vmem:[#allocation2 + $0x30] sm:$0xff]
        %v540 = vld [vmem:[#allocation2 + $0x38] sm:$0xff]
        %v541 = vld [vmem:[#allocation2 + $0x40] sm:$0xff]
        %v542 = vpack.c.bf16 %v538, %v534
        %v543 = vpack.c.bf16 %v539, %v535
        %v544 = vpack.c.bf16 %v540, %v536
        %v545 = vpack.c.bf16 %v541, %v537
        %550 = vrot.lane.b32.xlu0 %v542, 103
        %v551 = vpop.permute.xlu0 %550
        %552 = vrot.lane.b32.xlu0 %v543, 103
        %v553 = vpop.permute.xlu0 %552
        %554 = vrot.lane.b32.xlu0 %v544, 103
        %v555 = vpop.permute.xlu0 %554
        %556 = vrot.lane.b32.xlu0 %v545, 103
        %v557 = vpop.permute.xlu0 %556
        %vm558 = vcmask 842752
        %v559 = vsel %vm558, %v551, %v553
        %v560 = vsel %vm558, %v553, %v555
        %v561 = vsel %vm558, %v555, %v557
        %565 = vst [vmem:[#allocation3 + $0xf0] sm:$0xff] %v559
        %566 = vst [vmem:[#allocation3 + $0xf8] sm:$0xff] %v560
        %567 = vst [vmem:[#allocation3 + $0x100] sm:$0xff] %v561
        %v568 = vld [vmem:[#allocation2] sm:$0xff]
        %v569 = vld [vmem:[#allocation2 + $0x8] sm:$0xff]
        %v570 = vld [vmem:[#allocation2 + $0x10] sm:$0xff]
        %v571 = vld [vmem:[#allocation2 + $0x18] sm:$0xff]
        %v572 = vld [vmem:[#allocation2 + $0x28] sm:$0xff]
        %v573 = vld [vmem:[#allocation2 + $0x30] sm:$0xff]
        %v574 = vld [vmem:[#allocation2 + $0x38] sm:$0xff]
        %v575 = vld [vmem:[#allocation2 + $0x40] sm:$0xff]
        %v576 = vpack.c.bf16 %v572, %v568
        %v577 = vpack.c.bf16 %v573, %v569
        %v578 = vpack.c.bf16 %v574, %v570
        %v579 = vpack.c.bf16 %v575, %v571
        %584 = vrot.lane.b32.xlu0 %v576, 102
        %v585 = vpop.permute.xlu0 %584
        %586 = vrot.lane.b32.xlu0 %v577, 102
        %v587 = vpop.permute.xlu0 %586
        %588 = vrot.lane.b32.xlu0 %v578, 102
        %v589 = vpop.permute.xlu0 %588
        %590 = vrot.lane.b32.xlu0 %v579, 102
        %v591 = vpop.permute.xlu0 %590
        %vm592 = vcmask 834560
        %v593 = vsel %vm592, %v585, %v587
        %v594 = vsel %vm592, %v587, %v589
        %v595 = vsel %vm592, %v589, %v591
        %599 = vst [vmem:[#allocation3 + $0x108] sm:$0xff] %v593
        %600 = vst [vmem:[#allocation3 + $0x110] sm:$0xff] %v594
        %601 = vst [vmem:[#allocation3 + $0x118] sm:$0xff] %v595
        %v602 = vld [vmem:[#allocation2] sm:$0xff]
        %v603 = vld [vmem:[#allocation2 + $0x8] sm:$0xff]
        %v604 = vld [vmem:[#allocation2 + $0x10] sm:$0xff]
        %v605 = vld [vmem:[#allocation2 + $0x18] sm:$0xff]
        %v606 = vld [vmem:[#allocation2 + $0x28] sm:$0xff]
        %v607 = vld [vmem:[#allocation2 + $0x30] sm:$0xff]
        %v608 = vld [vmem:[#allocation2 + $0x38] sm:$0xff]
        %v609 = vld [vmem:[#allocation2 + $0x40] sm:$0xff]
        %v610 = vpack.c.bf16 %v606, %v602
        %v611 = vpack.c.bf16 %v607, %v603
        %v612 = vpack.c.bf16 %v608, %v604
        %v613 = vpack.c.bf16 %v609, %v605
        %618 = vrot.lane.b32.xlu0 %v610, 101
        %v619 = vpop.permute.xlu0 %618
        %620 = vrot.lane.b32.xlu0 %v611, 101
        %v621 = vpop.permute.xlu0 %620
        %622 = vrot.lane.b32.xlu0 %v612, 101
        %v623 = vpop.permute.xlu0 %622
        %624 = vrot.lane.b32.xlu0 %v613, 101
        %v625 = vpop.permute.xlu0 %624
        %vm626 = vcmask 826368
        %v627 = vsel %vm626, %v619, %v621
        %v628 = vsel %vm626, %v621, %v623
        %v629 = vsel %vm626, %v623, %v625
        %633 = vst [vmem:[#allocation3 + $0x120] sm:$0xff] %v627
        %634 = vst [vmem:[#allocation3 + $0x128] sm:$0xff] %v628
        %635 = vst [vmem:[#allocation3 + $0x130] sm:$0xff] %v629
        %v636 = vld [vmem:[#allocation2] sm:$0xff]
        %v637 = vld [vmem:[#allocation2 + $0x8] sm:$0xff]
        %v638 = vld [vmem:[#allocation2 + $0x10] sm:$0xff]
        %v639 = vld [vmem:[#allocation2 + $0x18] sm:$0xff]
        %v640 = vld [vmem:[#allocation2 + $0x28] sm:$0xff]
        %v641 = vld [vmem:[#allocation2 + $0x30] sm:$0xff]
        %v642 = vld [vmem:[#allocation2 + $0x38] sm:$0xff]
        %v643 = vld [vmem:[#allocation2 + $0x40] sm:$0xff]
        %v644 = vpack.c.bf16 %v640, %v636
        %v645 = vpack.c.bf16 %v641, %v637
        %v646 = vpack.c.bf16 %v642, %v638
        %v647 = vpack.c.bf16 %v643, %v639
        %652 = vrot.lane.b32.xlu0 %v644, 100
        %v653 = vpop.permute.xlu0 %652
        %654 = vrot.lane.b32.xlu0 %v645, 100
        %v655 = vpop.permute.xlu0 %654
        %656 = vrot.lane.b32.xlu0 %v646, 100
        %v657 = vpop.permute.xlu0 %656
        %658 = vrot.lane.b32.xlu0 %v647, 100
        %v659 = vpop.permute.xlu0 %658
        %vm660 = vcmask 818176
        %v661 = vsel %vm660, %v653, %v655
        %v662 = vsel %vm660, %v655, %v657
        %v663 = vsel %vm660, %v657, %v659
        %667 = vst [vmem:[#allocation3 + $0x138] sm:$0xff] %v661
        %668 = vst [vmem:[#allocation3 + $0x140] sm:$0xff] %v662
        %669 = vst [vmem:[#allocation3 + $0x148] sm:$0xff] %v663
        %v670 = vld [vmem:[#allocation2] sm:$0xff]
        %v671 = vld [vmem:[#allocation2 + $0x8] sm:$0xff]
        %v672 = vld [vmem:[#allocation2 + $0x10] sm:$0xff]
        %v673 = vld [vmem:[#allocation2 + $0x18] sm:$0xff]
        %v674 = vld [vmem:[#allocation2 + $0x28] sm:$0xff]
        %v675 = vld [vmem:[#allocation2 + $0x30] sm:$0xff]
        %v676 = vld [vmem:[#allocation2 + $0x38] sm:$0xff]
        %v677 = vld [vmem:[#allocation2 + $0x40] sm:$0xff]
        %v678 = vpack.c.bf16 %v674, %v670
        %v679 = vpack.c.bf16 %v675, %v671
        %v680 = vpack.c.bf16 %v676, %v672
        %v681 = vpack.c.bf16 %v677, %v673
        %686 = vrot.lane.b32.xlu0 %v678, 84
        %v687 = vpop.permute.xlu0 %686
        %688 = vrot.lane.b32.xlu0 %v679, 84
        %v689 = vpop.permute.xlu0 %688
        %690 = vrot.lane.b32.xlu0 %v680, 84
        %v691 = vpop.permute.xlu0 %690
        %692 = vrot.lane.b32.xlu0 %v681, 84
        %v693 = vpop.permute.xlu0 %692
        %vm694 = vcmask 687104
        %v695 = vsel %vm694, %v687, %v689
        %v696 = vsel %vm694, %v689, %v691
        %v697 = vsel %vm694, %v691, %v693
        %701 = vst [vmem:[#allocation3 + $0x150] sm:$0xff] %v695
        %702 = vst [vmem:[#allocation3 + $0x158] sm:$0xff] %v696
        %703 = vst [vmem:[#allocation3 + $0x160] sm:$0xff] %v697
        %v704 = vld [vmem:[#allocation2] sm:$0xff]
        %v705 = vld [vmem:[#allocation2 + $0x8] sm:$0xff]
        %v706 = vld [vmem:[#allocation2 + $0x10] sm:$0xff]
        %v707 = vld [vmem:[#allocation2 + $0x18] sm:$0xff]
        %v708 = vld [vmem:[#allocation2 + $0x28] sm:$0xff]
        %v709 = vld [vmem:[#allocation2 + $0x30] sm:$0xff]
        %v710 = vld [vmem:[#allocation2 + $0x38] sm:$0xff]
        %v711 = vld [vmem:[#allocation2 + $0x40] sm:$0xff]
        %v712 = vpack.c.bf16 %v708, %v704
        %v713 = vpack.c.bf16 %v709, %v705
        %v714 = vpack.c.bf16 %v710, %v706
        %v715 = vpack.c.bf16 %v711, %v707
        %720 = vrot.lane.b32.xlu0 %v712, 83
        %v721 = vpop.permute.xlu0 %720
        %722 = vrot.lane.b32.xlu0 %v713, 83
        %v723 = vpop.permute.xlu0 %722
        %724 = vrot.lane.b32.xlu0 %v714, 83
        %v725 = vpop.permute.xlu0 %724
        %726 = vrot.lane.b32.xlu0 %v715, 83
        %v727 = vpop.permute.xlu0 %726
        %vm728 = vcmask 678912
        %v729 = vsel %vm728, %v721, %v723
        %v730 = vsel %vm728, %v723, %v725
        %v731 = vsel %vm728, %v725, %v727
        %735 = vst [vmem:[#allocation3 + $0x168] sm:$0xff] %v729
        %736 = vst [vmem:[#allocation3 + $0x170] sm:$0xff] %v730
        %737 = vst [vmem:[#allocation3 + $0x178] sm:$0xff] %v731
        %v738 = vld [vmem:[#allocation2] sm:$0xff]
        %v739 = vld [vmem:[#allocation2 + $0x8] sm:$0xff]
        %v740 = vld [vmem:[#allocation2 + $0x10] sm:$0xff]
        %v741 = vld [vmem:[#allocation2 + $0x18] sm:$0xff]
        %v742 = vld [vmem:[#allocation2 + $0x28] sm:$0xff]
        %v743 = vld [vmem:[#allocation2 + $0x30] sm:$0xff]
        %v744 = vld [vmem:[#allocation2 + $0x38] sm:$0xff]
        %v745 = vld [vmem:[#allocation2 + $0x40] sm:$0xff]
        %v746 = vpack.c.bf16 %v742, %v738
        %v747 = vpack.c.bf16 %v743, %v739
        %v748 = vpack.c.bf16 %v744, %v740
        %v749 = vpack.c.bf16 %v745, %v741
        %754 = vrot.lane.b32.xlu0 %v746, 82
        %v755 = vpop.permute.xlu0 %754
        %756 = vrot.lane.b32.xlu0 %v747, 82
        %v757 = vpop.permute.xlu0 %756
        %758 = vrot.lane.b32.xlu0 %v748, 82
        %v759 = vpop.permute.xlu0 %758
        %760 = vrot.lane.b32.xlu0 %v749, 82
        %v761 = vpop.permute.xlu0 %760
        %vm762 = vcmask 670720
        %v763 = vsel %vm762, %v755, %v757
        %v764 = vsel %vm762, %v757, %v759
        %v765 = vsel %vm762, %v759, %v761
        %769 = vst [vmem:[#allocation3 + $0x180] sm:$0xff] %v763
        %770 = vst [vmem:[#allocation3 + $0x188] sm:$0xff] %v764
        %771 = vst [vmem:[#allocation3 + $0x190] sm:$0xff] %v765
        %v772 = vld [vmem:[#allocation2] sm:$0xff]
        %v773 = vld [vmem:[#allocation2 + $0x8] sm:$0xff]
        %v774 = vld [vmem:[#allocation2 + $0x10] sm:$0xff]
        %v775 = vld [vmem:[#allocation2 + $0x18] sm:$0xff]
        %v776 = vld [vmem:[#allocation2 + $0x28] sm:$0xff]
        %v777 = vld [vmem:[#allocation2 + $0x30] sm:$0xff]
        %v778 = vld [vmem:[#allocation2 + $0x38] sm:$0xff]
        %v779 = vld [vmem:[#allocation2 + $0x40] sm:$0xff]
        %v780 = vpack.c.bf16 %v776, %v772
        %v781 = vpack.c.bf16 %v777, %v773
        %v782 = vpack.c.bf16 %v778, %v774
        %v783 = vpack.c.bf16 %v779, %v775
        %788 = vrot.lane.b32.xlu0 %v780, 81
        %v789 = vpop.permute.xlu0 %788
        %790 = vrot.lane.b32.xlu0 %v781, 81
        %v791 = vpop.permute.xlu0 %790
        %792 = vrot.lane.b32.xlu0 %v782, 81
        %v793 = vpop.permute.xlu0 %792
        %794 = vrot.lane.b32.xlu0 %v783, 81
        %v795 = vpop.permute.xlu0 %794
        %vm796 = vcmask 662528
        %v797 = vsel %vm796, %v789, %v791
        %v798 = vsel %vm796, %v791, %v793
        %v799 = vsel %vm796, %v793, %v795
        %803 = vst [vmem:[#allocation3 + $0x198] sm:$0xff] %v797
        %804 = vst [vmem:[#allocation3 + $0x1a0] sm:$0xff] %v798
        %805 = vst [vmem:[#allocation3 + $0x1a8] sm:$0xff] %v799
        %v806 = vld [vmem:[#allocation2] sm:$0xff]
        %v807 = vld [vmem:[#allocation2 + $0x8] sm:$0xff]
        %v808 = vld [vmem:[#allocation2 + $0x10] sm:$0xff]
        %v809 = vld [vmem:[#allocation2 + $0x18] sm:$0xff]
        %v810 = vld [vmem:[#allocation2 + $0x28] sm:$0xff]
        %v811 = vld [vmem:[#allocation2 + $0x30] sm:$0xff]
        %v812 = vld [vmem:[#allocation2 + $0x38] sm:$0xff]
        %v813 = vld [vmem:[#allocation2 + $0x40] sm:$0xff]
        %v814 = vpack.c.bf16 %v810, %v806
        %v815 = vpack.c.bf16 %v811, %v807
        %v816 = vpack.c.bf16 %v812, %v808
        %v817 = vpack.c.bf16 %v813, %v809
        %822 = vrot.lane.b32.xlu0 %v814, 80
        %v823 = vpop.permute.xlu0 %822
        %824 = vrot.lane.b32.xlu0 %v815, 80
        %v825 = vpop.permute.xlu0 %824
        %826 = vrot.lane.b32.xlu0 %v816, 80
        %v827 = vpop.permute.xlu0 %826
        %828 = vrot.lane.b32.xlu0 %v817, 80
        %v829 = vpop.permute.xlu0 %828
        %vm830 = vcmask 654336
        %v831 = vsel %vm830, %v823, %v825
        %v832 = vsel %vm830, %v825, %v827
        %v833 = vsel %vm830, %v827, %v829
        %837 = vst [vmem:[#allocation3 + $0x1b0] sm:$0xff] %v831
        %838 = vst [vmem:[#allocation3 + $0x1b8] sm:$0xff] %v832
        %839 = vst [vmem:[#allocation3 + $0x1c0] sm:$0xff] %v833
        %v840 = vld [vmem:[#allocation2] sm:$0xff]
        %v841 = vld [vmem:[#allocation2 + $0x8] sm:$0xff]
        %v842 = vld [vmem:[#allocation2 + $0x10] sm:$0xff]
        %v843 = vld [vmem:[#allocation2 + $0x18] sm:$0xff]
        %v844 = vld [vmem:[#allocation2 + $0x28] sm:$0xff]
        %v845 = vld [vmem:[#allocation2 + $0x30] sm:$0xff]
        %v846 = vld [vmem:[#allocation2 + $0x38] sm:$0xff]
        %v847 = vld [vmem:[#allocation2 + $0x40] sm:$0xff]
        %v848 = vpack.c.bf16 %v844, %v840
        %v849 = vpack.c.bf16 %v845, %v841
        %v850 = vpack.c.bf16 %v846, %v842
        %v851 = vpack.c.bf16 %v847, %v843
        %856 = vrot.lane.b32.xlu0 %v848, 79
        %v857 = vpop.permute.xlu0 %856
        %858 = vrot.lane.b32.xlu0 %v849, 79
        %v859 = vpop.permute.xlu0 %858
        %860 = vrot.lane.b32.xlu0 %v850, 79
        %v861 = vpop.permute.xlu0 %860
        %862 = vrot.lane.b32.xlu0 %v851, 79
        %v863 = vpop.permute.xlu0 %862
        %vm864 = vcmask 646144
        %v865 = vsel %vm864, %v857, %v859
        %v866 = vsel %vm864, %v859, %v861
        %v867 = vsel %vm864, %v861, %v863
        %871 = vst [vmem:[#allocation3 + $0x1c8] sm:$0xff] %v865
        %872 = vst [vmem:[#allocation3 + $0x1d0] sm:$0xff] %v866
        %873 = vst [vmem:[#allocation3 + $0x1d8] sm:$0xff] %v867
        %v874 = vld [vmem:[#allocation2] sm:$0xff]
        %v875 = vld [vmem:[#allocation2 + $0x8] sm:$0xff]
        %v876 = vld [vmem:[#allocation2 + $0x10] sm:$0xff]
        %v877 = vld [vmem:[#allocation2 + $0x18] sm:$0xff]
        %v878 = vld [vmem:[#allocation2 + $0x28] sm:$0xff]
        %v879 = vld [vmem:[#allocation2 + $0x30] sm:$0xff]
        %v880 = vld [vmem:[#allocation2 + $0x38] sm:$0xff]
        %v881 = vld [vmem:[#allocation2 + $0x40] sm:$0xff]
        %v882 = vpack.c.bf16 %v878, %v874
        %v883 = vpack.c.bf16 %v879, %v875
        %v884 = vpack.c.bf16 %v880, %v876
        %v885 = vpack.c.bf16 %v881, %v877
        %890 = vrot.lane.b32.xlu0 %v882, 78
        %v891 = vpop.permute.xlu0 %890
        %892 = vrot.lane.b32.xlu0 %v883, 78
        %v893 = vpop.permute.xlu0 %892
        %894 = vrot.lane.b32.xlu0 %v884, 78
        %v895 = vpop.permute.xlu0 %894
        %896 = vrot.lane.b32.xlu0 %v885, 78
        %v897 = vpop.permute.xlu0 %896
        %vm898 = vcmask 637952
        %v899 = vsel %vm898, %v891, %v893
        %v900 = vsel %vm898, %v893, %v895
        %v901 = vsel %vm898, %v895, %v897
        %905 = vst [vmem:[#allocation3 + $0x1e0] sm:$0xff] %v899
        %906 = vst [vmem:[#allocation3 + $0x1e8] sm:$0xff] %v900
        %907 = vst [vmem:[#allocation3 + $0x1f0] sm:$0xff] %v901
        %v908 = vld [vmem:[#allocation2] sm:$0xff]
        %v909 = vld [vmem:[#allocation2 + $0x8] sm:$0xff]
        %v910 = vld [vmem:[#allocation2 + $0x10] sm:$0xff]
        %v911 = vld [vmem:[#allocation2 + $0x18] sm:$0xff]
        %v912 = vld [vmem:[#allocation2 + $0x28] sm:$0xff]
        %v913 = vld [vmem:[#allocation2 + $0x30] sm:$0xff]
        %v914 = vld [vmem:[#allocation2 + $0x38] sm:$0xff]
        %v915 = vld [vmem:[#allocation2 + $0x40] sm:$0xff]
        %v916 = vpack.c.bf16 %v912, %v908
        %v917 = vpack.c.bf16 %v913, %v909
        %v918 = vpack.c.bf16 %v914, %v910
        %v919 = vpack.c.bf16 %v915, %v911
        %924 = vrot.lane.b32.xlu0 %v916, 62
        %v925 = vpop.permute.xlu0 %924
        %926 = vrot.lane.b32.xlu0 %v917, 62
        %v927 = vpop.permute.xlu0 %926
        %928 = vrot.lane.b32.xlu0 %v918, 62
        %v929 = vpop.permute.xlu0 %928
        %930 = vrot.lane.b32.xlu0 %v919, 62
        %v931 = vpop.permute.xlu0 %930
        %vm932 = vcmask 506880
        %v933 = vsel %vm932, %v925, %v927
        %v934 = vsel %vm932, %v927, %v929
        %v935 = vsel %vm932, %v929, %v931
        %939 = vst [vmem:[#allocation3 + $0x1f8] sm:$0xff] %v933
        %940 = vst [vmem:[#allocation3 + $0x200] sm:$0xff] %v934
        %941 = vst [vmem:[#allocation3 + $0x208] sm:$0xff] %v935
        %v942 = vld [vmem:[#allocation2] sm:$0xff]
        %v943 = vld [vmem:[#allocation2 + $0x8] sm:$0xff]
        %v944 = vld [vmem:[#allocation2 + $0x10] sm:$0xff]
        %v945 = vld [vmem:[#allocation2 + $0x18] sm:$0xff]
        %v946 = vld [vmem:[#allocation2 + $0x28] sm:$0xff]
        %v947 = vld [vmem:[#allocation2 + $0x30] sm:$0xff]
        %v948 = vld [vmem:[#allocation2 + $0x38] sm:$0xff]
        %v949 = vld [vmem:[#allocation2 + $0x40] sm:$0xff]
        %v950 = vpack.c.bf16 %v946, %v942
        %v951 = vpack.c.bf16 %v947, %v943
        %v952 = vpack.c.bf16 %v948, %v944
        %v953 = vpack.c.bf16 %v949, %v945
        %958 = vrot.lane.b32.xlu0 %v950, 61
        %v959 = vpop.permute.xlu0 %958
        %960 = vrot.lane.b32.xlu0 %v951, 61
        %v961 = vpop.permute.xlu0 %960
        %962 = vrot.lane.b32.xlu0 %v952, 61
        %v963 = vpop.permute.xlu0 %962
        %964 = vrot.lane.b32.xlu0 %v953, 61
        %v965 = vpop.permute.xlu0 %964
        %vm966 = vcmask 498688
        %v967 = vsel %vm966, %v959, %v961
        %v968 = vsel %vm966, %v961, %v963
        %v969 = vsel %vm966, %v963, %v965
        %973 = vst [vmem:[#allocation3 + $0x210] sm:$0xff] %v967
        %974 = vst [vmem:[#allocation3 + $0x218] sm:$0xff] %v968
        %975 = vst [vmem:[#allocation3 + $0x220] sm:$0xff] %v969
        %v976 = vld [vmem:[#allocation2] sm:$0xff]
        %v977 = vld [vmem:[#allocation2 + $0x8] sm:$0xff]
        %v978 = vld [vmem:[#allocation2 + $0x10] sm:$0xff]
        %v979 = vld [vmem:[#allocation2 + $0x18] sm:$0xff]
        %v980 = vld [vmem:[#allocation2 + $0x28] sm:$0xff]
        %v981 = vld [vmem:[#allocation2 + $0x30] sm:$0xff]
        %v982 = vld [vmem:[#allocation2 + $0x38] sm:$0xff]
        %v983 = vld [vmem:[#allocation2 + $0x40] sm:$0xff]
        %v984 = vpack.c.bf16 %v980, %v976
        %v985 = vpack.c.bf16 %v981, %v977
        %v986 = vpack.c.bf16 %v982, %v978
        %v987 = vpack.c.bf16 %v983, %v979
        %992 = vrot.lane.b32.xlu0 %v984, 60
        %v993 = vpop.permute.xlu0 %992
        %994 = vrot.lane.b32.xlu0 %v985, 60
        %v995 = vpop.permute.xlu0 %994
        %996 = vrot.lane.b32.xlu0 %v986, 60
        %v997 = vpop.permute.xlu0 %996
        %998 = vrot.lane.b32.xlu0 %v987, 60
        %v999 = vpop.permute.xlu0 %998
        %vm1000 = vcmask 490496
        %v1001 = vsel %vm1000, %v993, %v995
        %v1002 = vsel %vm1000, %v995, %v997
        %v1003 = vsel %vm1000, %v997, %v999
        %1007 = vst [vmem:[#allocation3 + $0x228] sm:$0xff] %v1001
        %1008 = vst [vmem:[#allocation3 + $0x230] sm:$0xff] %v1002
        %1009 = vst [vmem:[#allocation3 + $0x238] sm:$0xff] %v1003
        %v1010 = vld [vmem:[#allocation2] sm:$0xff]
        %v1011 = vld [vmem:[#allocation2 + $0x8] sm:$0xff]
        %v1012 = vld [vmem:[#allocation2 + $0x10] sm:$0xff]
        %v1013 = vld [vmem:[#allocation2 + $0x18] sm:$0xff]
        %v1014 = vld [vmem:[#allocation2 + $0x28] sm:$0xff]
        %v1015 = vld [vmem:[#allocation2 + $0x30] sm:$0xff]
        %v1016 = vld [vmem:[#allocation2 + $0x38] sm:$0xff]
        %v1017 = vld [vmem:[#allocation2 + $0x40] sm:$0xff]
        %v1018 = vpack.c.bf16 %v1014, %v1010
        %v1019 = vpack.c.bf16 %v1015, %v1011
        %v1020 = vpack.c.bf16 %v1016, %v1012
        %v1021 = vpack.c.bf16 %v1017, %v1013
        %1026 = vrot.lane.b32.xlu0 %v1018, 59
        %v1027 = vpop.permute.xlu0 %1026
        %1028 = vrot.lane.b32.xlu0 %v1019, 59
        %v1029 = vpop.permute.xlu0 %1028
        %1030 = vrot.lane.b32.xlu0 %v1020, 59
        %v1031 = vpop.permute.xlu0 %1030
        %1032 = vrot.lane.b32.xlu0 %v1021, 59
        %v1033 = vpop.permute.xlu0 %1032
        %vm1034 = vcmask 482304
        %v1035 = vsel %vm1034, %v1027, %v1029
        %v1036 = vsel %vm1034, %v1029, %v1031
        %v1037 = vsel %vm1034, %v1031, %v1033
        %1041 = vst [vmem:[#allocation3 + $0x240] sm:$0xff] %v1035
        %1042 = vst [vmem:[#allocation3 + $0x248] sm:$0xff] %v1036
        %1043 = vst [vmem:[#allocation3 + $0x250] sm:$0xff] %v1037
        %v1044 = vld [vmem:[#allocation2] sm:$0xff]
        %v1045 = vld [vmem:[#allocation2 + $0x8] sm:$0xff]
        %v1046 = vld [vmem:[#allocation2 + $0x10] sm:$0xff]
        %v1047 = vld [vmem:[#allocation2 + $0x18] sm:$0xff]
        %v1048 = vld [vmem:[#allocation2 + $0x28] sm:$0xff]
        %v1049 = vld [vmem:[#allocation2 + $0x30] sm:$0xff]
        %v1050 = vld [vmem:[#allocation2 + $0x38] sm:$0xff]
        %v1051 = vld [vmem:[#allocation2 + $0x40] sm:$0xff]
        %v1052 = vpack.c.bf16 %v1048, %v1044
        %v1053 = vpack.c.bf16 %v1049, %v1045
        %v1054 = vpack.c.bf16 %v1050, %v1046
        %v1055 = vpack.c.bf16 %v1051, %v1047
        %1060 = vrot.lane.b32.xlu0 %v1052, 58
        %v1061 = vpop.permute.xlu0 %1060
        %1062 = vrot.lane.b32.xlu0 %v1053, 58
        %v1063 = vpop.permute.xlu0 %1062
        %1064 = vrot.lane.b32.xlu0 %v1054, 58
        %v1065 = vpop.permute.xlu0 %1064
        %1066 = vrot.lane.b32.xlu0 %v1055, 58
        %v1067 = vpop.permute.xlu0 %1066
        %vm1068 = vcmask 474112
        %v1069 = vsel %vm1068, %v1061, %v1063
        %v1070 = vsel %vm1068, %v1063, %v1065
        %v1071 = vsel %vm1068, %v1065, %v1067
        %1075 = vst [vmem:[#allocation3 + $0x258] sm:$0xff] %v1069
        %1076 = vst [vmem:[#allocation3 + $0x260] sm:$0xff] %v1070
        %1077 = vst [vmem:[#allocation3 + $0x268] sm:$0xff] %v1071
        %v1078 = vld [vmem:[#allocation2] sm:$0xff]
        %v1079 = vld [vmem:[#allocation2 + $0x8] sm:$0xff]
        %v1080 = vld [vmem:[#allocation2 + $0x10] sm:$0xff]
        %v1081 = vld [vmem:[#allocation2 + $0x18] sm:$0xff]
        %v1082 = vld [vmem:[#allocation2 + $0x28] sm:$0xff]
        %v1083 = vld [vmem:[#allocation2 + $0x30] sm:$0xff]
        %v1084 = vld [vmem:[#allocation2 + $0x38] sm:$0xff]
        %v1085 = vld [vmem:[#allocation2 + $0x40] sm:$0xff]
        %v1086 = vpack.c.bf16 %v1082, %v1078
        %v1087 = vpack.c.bf16 %v1083, %v1079
        %v1088 = vpack.c.bf16 %v1084, %v1080
        %v1089 = vpack.c.bf16 %v1085, %v1081
        %1094 = vrot.lane.b32.xlu0 %v1086, 57
        %v1095 = vpop.permute.xlu0 %1094
        %1096 = vrot.lane.b32.xlu0 %v1087, 57
        %v1097 = vpop.permute.xlu0 %1096
        %1098 = vrot.lane.b32.xlu0 %v1088, 57
        %v1099 = vpop.permute.xlu0 %1098
        %1100 = vrot.lane.b32.xlu0 %v1089, 57
        %v1101 = vpop.permute.xlu0 %1100
        %vm1102 = vcmask 465920
        %v1103 = vsel %vm1102, %v1095, %v1097
        %v1104 = vsel %vm1102, %v1097, %v1099
        %v1105 = vsel %vm1102, %v1099, %v1101
        %1109 = vst [vmem:[#allocation3 + $0x270] sm:$0xff] %v1103
        %1110 = vst [vmem:[#allocation3 + $0x278] sm:$0xff] %v1104
        %1111 = vst [vmem:[#allocation3 + $0x280] sm:$0xff] %v1105
        %v1112 = vld [vmem:[#allocation2] sm:$0xff]
        %v1113 = vld [vmem:[#allocation2 + $0x8] sm:$0xff]
        %v1114 = vld [vmem:[#allocation2 + $0x10] sm:$0xff]
        %v1115 = vld [vmem:[#allocation2 + $0x18] sm:$0xff]
        %v1116 = vld [vmem:[#allocation2 + $0x28] sm:$0xff]
        %v1117 = vld [vmem:[#allocation2 + $0x30] sm:$0xff]
        %v1118 = vld [vmem:[#allocation2 + $0x38] sm:$0xff]
        %v1119 = vld [vmem:[#allocation2 + $0x40] sm:$0xff]
        %v1120 = vpack.c.bf16 %v1116, %v1112
        %v1121 = vpack.c.bf16 %v1117, %v1113
        %v1122 = vpack.c.bf16 %v1118, %v1114
        %v1123 = vpack.c.bf16 %v1119, %v1115
        %1128 = vrot.lane.b32.xlu0 %v1120, 56
        %v1129 = vpop.permute.xlu0 %1128
        %1130 = vrot.lane.b32.xlu0 %v1121, 56
        %v1131 = vpop.permute.xlu0 %1130
        %1132 = vrot.lane.b32.xlu0 %v1122, 56
        %v1133 = vpop.permute.xlu0 %1132
        %1134 = vrot.lane.b32.xlu0 %v1123, 56
        %v1135 = vpop.permute.xlu0 %1134
        %vm1136 = vcmask 457728
        %v1137 = vsel %vm1136, %v1129, %v1131
        %v1138 = vsel %vm1136, %v1131, %v1133
        %v1139 = vsel %vm1136, %v1133, %v1135
        %1143 = vst [vmem:[#allocation3 + $0x288] sm:$0xff] %v1137
        %1144 = vst [vmem:[#allocation3 + $0x290] sm:$0xff] %v1138
        %1145 = vst [vmem:[#allocation3 + $0x298] sm:$0xff] %v1139
        %v1146 = vld [vmem:[#allocation2] sm:$0xff]
        %v1147 = vld [vmem:[#allocation2 + $0x8] sm:$0xff]
        %v1148 = vld [vmem:[#allocation2 + $0x10] sm:$0xff]
        %v1149 = vld [vmem:[#allocation2 + $0x18] sm:$0xff]
        %v1150 = vld [vmem:[#allocation2 + $0x28] sm:$0xff]
        %v1151 = vld [vmem:[#allocation2 + $0x30] sm:$0xff]
        %v1152 = vld [vmem:[#allocation2 + $0x38] sm:$0xff]
        %v1153 = vld [vmem:[#allocation2 + $0x40] sm:$0xff]
        %v1154 = vpack.c.bf16 %v1150, %v1146
        %v1155 = vpack.c.bf16 %v1151, %v1147
        %v1156 = vpack.c.bf16 %v1152, %v1148
        %v1157 = vpack.c.bf16 %v1153, %v1149
        %1162 = vrot.lane.b32.xlu0 %v1154, 40
        %v1163 = vpop.permute.xlu0 %1162
        %1164 = vrot.lane.b32.xlu0 %v1155, 40
        %v1165 = vpop.permute.xlu0 %1164
        %1166 = vrot.lane.b32.xlu0 %v1156, 40
        %v1167 = vpop.permute.xlu0 %1166
        %1168 = vrot.lane.b32.xlu0 %v1157, 40
        %v1169 = vpop.permute.xlu0 %1168
        %vm1170 = vcmask 326656
        %v1171 = vsel %vm1170, %v1163, %v1165
        %v1172 = vsel %vm1170, %v1165, %v1167
        %v1173 = vsel %vm1170, %v1167, %v1169
        %1177 = vst [vmem:[#allocation3 + $0x2a0] sm:$0xff] %v1171
        %1178 = vst [vmem:[#allocation3 + $0x2a8] sm:$0xff] %v1172
        %1179 = vst [vmem:[#allocation3 + $0x2b0] sm:$0xff] %v1173
        %v1180 = vld [vmem:[#allocation2] sm:$0xff]
        %v1181 = vld [vmem:[#allocation2 + $0x8] sm:$0xff]
        %v1182 = vld [vmem:[#allocation2 + $0x10] sm:$0xff]
        %v1183 = vld [vmem:[#allocation2 + $0x18] sm:$0xff]
        %v1184 = vld [vmem:[#allocation2 + $0x28] sm:$0xff]
        %v1185 = vld [vmem:[#allocation2 + $0x30] sm:$0xff]
        %v1186 = vld [vmem:[#allocation2 + $0x38] sm:$0xff]
        %v1187 = vld [vmem:[#allocation2 + $0x40] sm:$0xff]
        %v1188 = vpack.c.bf16 %v1184, %v1180
        %v1189 = vpack.c.bf16 %v1185, %v1181
        %v1190 = vpack.c.bf16 %v1186, %v1182
        %v1191 = vpack.c.bf16 %v1187, %v1183
        %1196 = vrot.lane.b32.xlu0 %v1188, 39
        %v1197 = vpop.permute.xlu0 %1196
        %1198 = vrot.lane.b32.xlu0 %v1189, 39
        %v1199 = vpop.permute.xlu0 %1198
        %1200 = vrot.lane.b32.xlu0 %v1190, 39
        %v1201 = vpop.permute.xlu0 %1200
        %1202 = vrot.lane.b32.xlu0 %v1191, 39
        %v1203 = vpop.permute.xlu0 %1202
        %vm1204 = vcmask 318464
        %v1205 = vsel %vm1204, %v1197, %v1199
        %v1206 = vsel %vm1204, %v1199, %v1201
        %v1207 = vsel %vm1204, %v1201, %v1203
        %1211 = vst [vmem:[#allocation3 + $0x2b8] sm:$0xff] %v1205
        %1212 = vst [vmem:[#allocation3 + $0x2c0] sm:$0xff] %v1206
        %1213 = vst [vmem:[#allocation3 + $0x2c8] sm:$0xff] %v1207
        %v1214 = vld [vmem:[#allocation2] sm:$0xff]
        %v1215 = vld [vmem:[#allocation2 + $0x8] sm:$0xff]
        %v1216 = vld [vmem:[#allocation2 + $0x10] sm:$0xff]
        %v1217 = vld [vmem:[#allocation2 + $0x18] sm:$0xff]
        %v1218 = vld [vmem:[#allocation2 + $0x28] sm:$0xff]
        %v1219 = vld [vmem:[#allocation2 + $0x30] sm:$0xff]
        %v1220 = vld [vmem:[#allocation2 + $0x38] sm:$0xff]
        %v1221 = vld [vmem:[#allocation2 + $0x40] sm:$0xff]
        %v1222 = vpack.c.bf16 %v1218, %v1214
        %v1223 = vpack.c.bf16 %v1219, %v1215
        %v1224 = vpack.c.bf16 %v1220, %v1216
        %v1225 = vpack.c.bf16 %v1221, %v1217
        %1230 = vrot.lane.b32.xlu0 %v1222, 38
        %v1231 = vpop.permute.xlu0 %1230
        %1232 = vrot.lane.b32.xlu0 %v1223, 38
        %v1233 = vpop.permute.xlu0 %1232
        %1234 = vrot.lane.b32.xlu0 %v1224, 38
        %v1235 = vpop.permute.xlu0 %1234
        %1236 = vrot.lane.b32.xlu0 %v1225, 38
        %v1237 = vpop.permute.xlu0 %1236
        %vm1238 = vcmask 310272
        %v1239 = vsel %vm1238, %v1231, %v1233
        %v1240 = vsel %vm1238, %v1233, %v1235
        %v1241 = vsel %vm1238, %v1235, %v1237
        %1245 = vst [vmem:[#allocation3 + $0x2d0] sm:$0xff] %v1239
        %1246 = vst [vmem:[#allocation3 + $0x2d8] sm:$0xff] %v1240
        %1247 = vst [vmem:[#allocation3 + $0x2e0] sm:$0xff] %v1241
        %v1248 = vld [vmem:[#allocation2] sm:$0xff]
        %v1249 = vld [vmem:[#allocation2 + $0x8] sm:$0xff]
        %v1250 = vld [vmem:[#allocation2 + $0x10] sm:$0xff]
        %v1251 = vld [vmem:[#allocation2 + $0x18] sm:$0xff]
        %v1252 = vld [vmem:[#allocation2 + $0x28] sm:$0xff]
        %v1253 = vld [vmem:[#allocation2 + $0x30] sm:$0xff]
        %v1254 = vld [vmem:[#allocation2 + $0x38] sm:$0xff]
        %v1255 = vld [vmem:[#allocation2 + $0x40] sm:$0xff]
        %v1256 = vpack.c.bf16 %v1252, %v1248
        %v1257 = vpack.c.bf16 %v1253, %v1249
        %v1258 = vpack.c.bf16 %v1254, %v1250
        %v1259 = vpack.c.bf16 %v1255, %v1251
        %1264 = vrot.lane.b32.xlu0 %v1256, 37
        %v1265 = vpop.permute.xlu0 %1264
        %1266 = vrot.lane.b32.xlu0 %v1257, 37
        %v1267 = vpop.permute.xlu0 %1266
        %1268 = vrot.lane.b32.xlu0 %v1258, 37
        %v1269 = vpop.permute.xlu0 %1268
        %1270 = vrot.lane.b32.xlu0 %v1259, 37
        %v1271 = vpop.permute.xlu0 %1270
        %vm1272 = vcmask 302080
        %v1273 = vsel %vm1272, %v1265, %v1267
        %v1274 = vsel %vm1272, %v1267, %v1269
        %v1275 = vsel %vm1272, %v1269, %v1271
        %1279 = vst [vmem:[#allocation3 + $0x2e8] sm:$0xff] %v1273
        %1280 = vst [vmem:[#allocation3 + $0x2f0] sm:$0xff] %v1274
        %1281 = vst [vmem:[#allocation3 + $0x2f8] sm:$0xff] %v1275
        %v1282 = vld [vmem:[#allocation2] sm:$0xff]
        %v1283 = vld [vmem:[#allocation2 + $0x8] sm:$0xff]
        %v1284 = vld [vmem:[#allocation2 + $0x10] sm:$0xff]
        %v1285 = vld [vmem:[#allocation2 + $0x18] sm:$0xff]
        %v1286 = vld [vmem:[#allocation2 + $0x28] sm:$0xff]
        %v1287 = vld [vmem:[#allocation2 + $0x30] sm:$0xff]
        %v1288 = vld [vmem:[#allocation2 + $0x38] sm:$0xff]
        %v1289 = vld [vmem:[#allocation2 + $0x40] sm:$0xff]
        %v1290 = vpack.c.bf16 %v1286, %v1282
        %v1291 = vpack.c.bf16 %v1287, %v1283
        %v1292 = vpack.c.bf16 %v1288, %v1284
        %v1293 = vpack.c.bf16 %v1289, %v1285
        %1298 = vrot.lane.b32.xlu0 %v1290, 36
        %v1299 = vpop.permute.xlu0 %1298
        %1300 = vrot.lane.b32.xlu0 %v1291, 36
        %v1301 = vpop.permute.xlu0 %1300
        %1302 = vrot.lane.b32.xlu0 %v1292, 36
        %v1303 = vpop.permute.xlu0 %1302
        %1304 = vrot.lane.b32.xlu0 %v1293, 36
        %v1305 = vpop.permute.xlu0 %1304
        %vm1306 = vcmask 293888
        %v1307 = vsel %vm1306, %v1299, %v1301
        %v1308 = vsel %vm1306, %v1301, %v1303
        %v1309 = vsel %vm1306, %v1303, %v1305
        %1313 = vst [vmem:[#allocation3 + $0x300] sm:$0xff] %v1307
        %1314 = vst [vmem:[#allocation3 + $0x308] sm:$0xff] %v1308
        %1315 = vst [vmem:[#allocation3 + $0x310] sm:$0xff] %v1309
        %v1316 = vld [vmem:[#allocation2] sm:$0xff]
        %v1317 = vld [vmem:[#allocation2 + $0x8] sm:$0xff]
        %v1318 = vld [vmem:[#allocation2 + $0x10] sm:$0xff]
        %v1319 = vld [vmem:[#allocation2 + $0x18] sm:$0xff]
        %v1320 = vld [vmem:[#allocation2 + $0x28] sm:$0xff]
        %v1321 = vld [vmem:[#allocation2 + $0x30] sm:$0xff]
        %v1322 = vld [vmem:[#allocation2 + $0x38] sm:$0xff]
        %v1323 = vld [vmem:[#allocation2 + $0x40] sm:$0xff]
        %v1324 = vpack.c.bf16 %v1320, %v1316
        %v1325 = vpack.c.bf16 %v1321, %v1317
        %v1326 = vpack.c.bf16 %v1322, %v1318
        %v1327 = vpack.c.bf16 %v1323, %v1319
        %1332 = vrot.lane.b32.xlu0 %v1324, 35
        %v1333 = vpop.permute.xlu0 %1332
        %1334 = vrot.lane.b32.xlu0 %v1325, 35
        %v1335 = vpop.permute.xlu0 %1334
        %1336 = vrot.lane.b32.xlu0 %v1326, 35
        %v1337 = vpop.permute.xlu0 %1336
        %1338 = vrot.lane.b32.xlu0 %v1327, 35
        %v1339 = vpop.permute.xlu0 %1338
        %vm1340 = vcmask 285696
        %v1341 = vsel %vm1340, %v1333, %v1335
        %v1342 = vsel %vm1340, %v1335, %v1337
        %v1343 = vsel %vm1340, %v1337, %v1339
        %1347 = vst [vmem:[#allocation3 + $0x318] sm:$0xff] %v1341
        %1348 = vst [vmem:[#allocation3 + $0x320] sm:$0xff] %v1342
        %1349 = vst [vmem:[#allocation3 + $0x328] sm:$0xff] %v1343
        %v1350 = vld [vmem:[#allocation2] sm:$0xff]
        %v1351 = vld [vmem:[#allocation2 + $0x8] sm:$0xff]
        %v1352 = vld [vmem:[#allocation2 + $0x10] sm:$0xff]
        %v1353 = vld [vmem:[#allocation2 + $0x18] sm:$0xff]
        %v1354 = vld [vmem:[#allocation2 + $0x28] sm:$0xff]
        %v1355 = vld [vmem:[#allocation2 + $0x30] sm:$0xff]
        %v1356 = vld [vmem:[#allocation2 + $0x38] sm:$0xff]
        %v1357 = vld [vmem:[#allocation2 + $0x40] sm:$0xff]
        %v1358 = vpack.c.bf16 %v1354, %v1350
        %v1359 = vpack.c.bf16 %v1355, %v1351
        %v1360 = vpack.c.bf16 %v1356, %v1352
        %v1361 = vpack.c.bf16 %v1357, %v1353
        %1366 = vrot.lane.b32.xlu0 %v1358, 34
        %v1367 = vpop.permute.xlu0 %1366
        %1368 = vrot.lane.b32.xlu0 %v1359, 34
        %v1369 = vpop.permute.xlu0 %1368
        %1370 = vrot.lane.b32.xlu0 %v1360, 34
        %v1371 = vpop.permute.xlu0 %1370
        %1372 = vrot.lane.b32.xlu0 %v1361, 34
        %v1373 = vpop.permute.xlu0 %1372
        %vm1374 = vcmask 277504
        %v1375 = vsel %vm1374, %v1367, %v1369
        %v1376 = vsel %vm1374, %v1369, %v1371
        %v1377 = vsel %vm1374, %v1371, %v1373
        %1381 = vst [vmem:[#allocation3 + $0x330] sm:$0xff] %v1375
        %1382 = vst [vmem:[#allocation3 + $0x338] sm:$0xff] %v1376
        %1383 = vst [vmem:[#allocation3 + $0x340] sm:$0xff] %v1377
        %v1384 = vld [vmem:[#allocation2] sm:$0xff]
        %v1385 = vld [vmem:[#allocation2 + $0x8] sm:$0xff]
        %v1386 = vld [vmem:[#allocation2 + $0x10] sm:$0xff]
        %v1387 = vld [vmem:[#allocation2 + $0x18] sm:$0xff]
        %v1388 = vld [vmem:[#allocation2 + $0x28] sm:$0xff]
        %v1389 = vld [vmem:[#allocation2 + $0x30] sm:$0xff]
        %v1390 = vld [vmem:[#allocation2 + $0x38] sm:$0xff]
        %v1391 = vld [vmem:[#allocation2 + $0x40] sm:$0xff]
        %v1392 = vpack.c.bf16 %v1388, %v1384
        %v1393 = vpack.c.bf16 %v1389, %v1385
        %v1394 = vpack.c.bf16 %v1390, %v1386
        %v1395 = vpack.c.bf16 %v1391, %v1387
        %1400 = vrot.lane.b32.xlu0 %v1392, 18
        %v1401 = vpop.permute.xlu0 %1400
        %1402 = vrot.lane.b32.xlu0 %v1393, 18
        %v1403 = vpop.permute.xlu0 %1402
        %1404 = vrot.lane.b32.xlu0 %v1394, 18
        %v1405 = vpop.permute.xlu0 %1404
        %1406 = vrot.lane.b32.xlu0 %v1395, 18
        %v1407 = vpop.permute.xlu0 %1406
        %vm1408 = vcmask 146432
        %v1409 = vsel %vm1408, %v1401, %v1403
        %v1410 = vsel %vm1408, %v1403, %v1405
        %v1411 = vsel %vm1408, %v1405, %v1407
        %1415 = vst [vmem:[#allocation3 + $0x348] sm:$0xff] %v1409
        %1416 = vst [vmem:[#allocation3 + $0x350] sm:$0xff] %v1410
        %1417 = vst [vmem:[#allocation3 + $0x358] sm:$0xff] %v1411
        %v1418 = vld [vmem:[#allocation2] sm:$0xff]
        %v1419 = vld [vmem:[#allocation2 + $0x8] sm:$0xff]
        %v1420 = vld [vmem:[#allocation2 + $0x10] sm:$0xff]
        %v1421 = vld [vmem:[#allocation2 + $0x18] sm:$0xff]
        %v1422 = vld [vmem:[#allocation2 + $0x28] sm:$0xff]
        %v1423 = vld [vmem:[#allocation2 + $0x30] sm:$0xff]
        %v1424 = vld [vmem:[#allocation2 + $0x38] sm:$0xff]
        %v1425 = vld [vmem:[#allocation2 + $0x40] sm:$0xff]
        %v1426 = vpack.c.bf16 %v1422, %v1418
        %v1427 = vpack.c.bf16 %v1423, %v1419
        %v1428 = vpack.c.bf16 %v1424, %v1420
        %v1429 = vpack.c.bf16 %v1425, %v1421
        %1434 = vrot.lane.b32.xlu0 %v1426, 17
        %v1435 = vpop.permute.xlu0 %1434
        %1436 = vrot.lane.b32.xlu0 %v1427, 17
        %v1437 = vpop.permute.xlu0 %1436
        %1438 = vrot.lane.b32.xlu0 %v1428, 17
        %v1439 = vpop.permute.xlu0 %1438
        %1440 = vrot.lane.b32.xlu0 %v1429, 17
        %v1441 = vpop.permute.xlu0 %1440
        %vm1442 = vcmask 138240
        %v1443 = vsel %vm1442, %v1435, %v1437
        %v1444 = vsel %vm1442, %v1437, %v1439
        %v1445 = vsel %vm1442, %v1439, %v1441
        %1449 = vst [vmem:[#allocation3 + $0x360] sm:$0xff] %v1443
        %1450 = vst [vmem:[#allocation3 + $0x368] sm:$0xff] %v1444
        %1451 = vst [vmem:[#allocation3 + $0x370] sm:$0xff] %v1445
        %v1452 = vld [vmem:[#allocation2] sm:$0xff]
        %v1453 = vld [vmem:[#allocation2 + $0x8] sm:$0xff]
        %v1454 = vld [vmem:[#allocation2 + $0x10] sm:$0xff]
        %v1455 = vld [vmem:[#allocation2 + $0x18] sm:$0xff]
        %v1456 = vld [vmem:[#allocation2 + $0x28] sm:$0xff]
        %v1457 = vld [vmem:[#allocation2 + $0x30] sm:$0xff]
        %v1458 = vld [vmem:[#allocation2 + $0x38] sm:$0xff]
        %v1459 = vld [vmem:[#allocation2 + $0x40] sm:$0xff]
        %v1460 = vpack.c.bf16 %v1456, %v1452
        %v1461 = vpack.c.bf16 %v1457, %v1453
        %v1462 = vpack.c.bf16 %v1458, %v1454
        %v1463 = vpack.c.bf16 %v1459, %v1455
        %1468 = vrot.lane.b32.xlu0 %v1460, 16
        %v1469 = vpop.permute.xlu0 %1468
        %1470 = vrot.lane.b32.xlu0 %v1461, 16
        %v1471 = vpop.permute.xlu0 %1470
        %1472 = vrot.lane.b32.xlu0 %v1462, 16
        %v1473 = vpop.permute.xlu0 %1472
        %1474 = vrot.lane.b32.xlu0 %v1463, 16
        %v1475 = vpop.permute.xlu0 %1474
        %vm1476 = vcmask 130048
        %v1477 = vsel %vm1476, %v1469, %v1471
        %v1478 = vsel %vm1476, %v1471, %v1473
        %v1479 = vsel %vm1476, %v1473, %v1475
        %1483 = vst [vmem:[#allocation3 + $0x378] sm:$0xff] %v1477
        %1484 = vst [vmem:[#allocation3 + $0x380] sm:$0xff] %v1478
        %1485 = vst [vmem:[#allocation3 + $0x388] sm:$0xff] %v1479
        %v1486 = vld [vmem:[#allocation2] sm:$0xff]
        %v1487 = vld [vmem:[#allocation2 + $0x8] sm:$0xff]
        %v1488 = vld [vmem:[#allocation2 + $0x10] sm:$0xff]
        %v1489 = vld [vmem:[#allocation2 + $0x18] sm:$0xff]
        %v1490 = vld [vmem:[#allocation2 + $0x28] sm:$0xff]
        %v1491 = vld [vmem:[#allocation2 + $0x30] sm:$0xff]
        %v1492 = vld [vmem:[#allocation2 + $0x38] sm:$0xff]
        %v1493 = vld [vmem:[#allocation2 + $0x40] sm:$0xff]
        %v1494 = vpack.c.bf16 %v1490, %v1486
        %v1495 = vpack.c.bf16 %v1491, %v1487
        %v1496 = vpack.c.bf16 %v1492, %v1488
        %v1497 = vpack.c.bf16 %v1493, %v1489
        %1502 = vrot.lane.b32.xlu0 %v1494, 15
        %v1503 = vpop.permute.xlu0 %1502
        %1504 = vrot.lane.b32.xlu0 %v1495, 15
        %v1505 = vpop.permute.xlu0 %1504
        %1506 = vrot.lane.b32.xlu0 %v1496, 15
        %v1507 = vpop.permute.xlu0 %1506
        %1508 = vrot.lane.b32.xlu0 %v1497, 15
        %v1509 = vpop.permute.xlu0 %1508
        %vm1510 = vcmask 121856
        %v1511 = vsel %vm1510, %v1503, %v1505
        %v1512 = vsel %vm1510, %v1505, %v1507
        %v1513 = vsel %vm1510, %v1507, %v1509
        %1517 = vst [vmem:[#allocation3 + $0x390] sm:$0xff] %v1511
        %1518 = vst [vmem:[#allocation3 + $0x398] sm:$0xff] %v1512
        %1519 = vst [vmem:[#allocation3 + $0x3a0] sm:$0xff] %v1513
        %v1520 = vld [vmem:[#allocation2] sm:$0xff]
        %v1521 = vld [vmem:[#allocation2 + $0x8] sm:$0xff]
        %v1522 = vld [vmem:[#allocation2 + $0x10] sm:$0xff]
        %v1523 = vld [vmem:[#allocation2 + $0x18] sm:$0xff]
        %v1524 = vld [vmem:[#allocation2 + $0x28] sm:$0xff]
        %v1525 = vld [vmem:[#allocation2 + $0x30] sm:$0xff]
        %v1526 = vld [vmem:[#allocation2 + $0x38] sm:$0xff]
        %v1527 = vld [vmem:[#allocation2 + $0x40] sm:$0xff]
        %v1528 = vpack.c.bf16 %v1524, %v1520
        %v1529 = vpack.c.bf16 %v1525, %v1521
        %v1530 = vpack.c.bf16 %v1526, %v1522
        %v1531 = vpack.c.bf16 %v1527, %v1523
        %1536 = vrot.lane.b32.xlu0 %v1528, 14
        %v1537 = vpop.permute.xlu0 %1536
        %1538 = vrot.lane.b32.xlu0 %v1529, 14
        %v1539 = vpop.permute.xlu0 %1538
        %1540 = vrot.lane.b32.xlu0 %v1530, 14
        %v1541 = vpop.permute.xlu0 %1540
        %1542 = vrot.lane.b32.xlu0 %v1531, 14
        %v1543 = vpop.permute.xlu0 %1542
        %vm1544 = vcmask 113664
        %v1545 = vsel %vm1544, %v1537, %v1539
        %v1546 = vsel %vm1544, %v1539, %v1541
        %v1547 = vsel %vm1544, %v1541, %v1543
        %1551 = vst [vmem:[#allocation3 + $0x3a8] sm:$0xff] %v1545
        %1552 = vst [vmem:[#allocation3 + $0x3b0] sm:$0xff] %v1546
        %1553 = vst [vmem:[#allocation3 + $0x3b8] sm:$0xff] %v1547
        %v1554 = vld [vmem:[#allocation2] sm:$0xff]
        %v1555 = vld [vmem:[#allocation2 + $0x8] sm:$0xff]
        %v1556 = vld [vmem:[#allocation2 + $0x10] sm:$0xff]
        %v1557 = vld [vmem:[#allocation2 + $0x18] sm:$0xff]
        %v1558 = vld [vmem:[#allocation2 + $0x28] sm:$0xff]
        %v1559 = vld [vmem:[#allocation2 + $0x30] sm:$0xff]
        %v1560 = vld [vmem:[#allocation2 + $0x38] sm:$0xff]
        %v1561 = vld [vmem:[#allocation2 + $0x40] sm:$0xff]
        %v1562 = vpack.c.bf16 %v1558, %v1554
        %v1563 = vpack.c.bf16 %v1559, %v1555
        %v1564 = vpack.c.bf16 %v1560, %v1556
        %v1565 = vpack.c.bf16 %v1561, %v1557
        %1570 = vrot.lane.b32.xlu0 %v1562, 13
        %v1571 = vpop.permute.xlu0 %1570
        %1572 = vrot.lane.b32.xlu0 %v1563, 13
        %v1573 = vpop.permute.xlu0 %1572
        %1574 = vrot.lane.b32.xlu0 %v1564, 13
        %v1575 = vpop.permute.xlu0 %1574
        %1576 = vrot.lane.b32.xlu0 %v1565, 13
        %v1577 = vpop.permute.xlu0 %1576
        %vm1578 = vcmask 105472
        %v1579 = vsel %vm1578, %v1571, %v1573
        %v1580 = vsel %vm1578, %v1573, %v1575
        %v1581 = vsel %vm1578, %v1575, %v1577
        %1585 = vst [vmem:[#allocation3 + $0x3c0] sm:$0xff] %v1579
        %1586 = vst [vmem:[#allocation3 + $0x3c8] sm:$0xff] %v1580
        %1587 = vst [vmem:[#allocation3 + $0x3d0] sm:$0xff] %v1581
        %v1588 = vld [vmem:[#allocation2] sm:$0xff]
        %v1589 = vld [vmem:[#allocation2 + $0x8] sm:$0xff]
        %v1590 = vld [vmem:[#allocation2 + $0x10] sm:$0xff]
        %v1591 = vld [vmem:[#allocation2 + $0x18] sm:$0xff]
        %v1592 = vld [vmem:[#allocation2 + $0x28] sm:$0xff]
        %v1593 = vld [vmem:[#allocation2 + $0x30] sm:$0xff]
        %v1594 = vld [vmem:[#allocation2 + $0x38] sm:$0xff]
        %v1595 = vld [vmem:[#allocation2 + $0x40] sm:$0xff]
        %v1596 = vpack.c.bf16 %v1592, %v1588
        %v1597 = vpack.c.bf16 %v1593, %v1589
        %v1598 = vpack.c.bf16 %v1594, %v1590
        %v1599 = vpack.c.bf16 %v1595, %v1591
        %1604 = vrot.lane.b32.xlu0 %v1596, 12
        %v1605 = vpop.permute.xlu0 %1604
        %1606 = vrot.lane.b32.xlu0 %v1597, 12
        %v1607 = vpop.permute.xlu0 %1606
        %1608 = vrot.lane.b32.xlu0 %v1598, 12
        %v1609 = vpop.permute.xlu0 %1608
        %1610 = vrot.lane.b32.xlu0 %v1599, 12
        %v1611 = vpop.permute.xlu0 %1610
        %vm1612 = vcmask 97280
        %v1613 = vsel %vm1612, %v1605, %v1607
        %v1614 = vsel %vm1612, %v1607, %v1609
        %v1615 = vsel %vm1612, %v1609, %v1611
        %1619 = vst [vmem:[#allocation3 + $0x3d8] sm:$0xff] %v1613
        %1620 = vst [vmem:[#allocation3 + $0x3e0] sm:$0xff] %v1614
        %1621 = vst [vmem:[#allocation3 + $0x3e8] sm:$0xff] %v1615
        %v1622 = vld [vmem:[#allocation2 + $0x8] sm:$0xff]
        %v1623 = vld [vmem:[#allocation2 + $0x10] sm:$0xff]
        %v1624 = vld [vmem:[#allocation2 + $0x18] sm:$0xff]
        %v1625 = vld [vmem:[#allocation2 + $0x20] sm:$0xff]
        %v1626 = vld [vmem:[#allocation2 + $0x30] sm:$0xff]
        %v1627 = vld [vmem:[#allocation2 + $0x38] sm:$0xff]
        %v1628 = vld [vmem:[#allocation2 + $0x40] sm:$0xff]
        %v1629 = vld [vmem:[#allocation2 + $0x48] sm:$0xff]
        %v1630 = vpack.c.bf16 %v1626, %v1622
        %v1631 = vpack.c.bf16 %v1627, %v1623
        %v1632 = vpack.c.bf16 %v1628, %v1624
        %v1633 = vpack.c.bf16 %v1629, %v1625
        %1638 = vrot.lane.b32.xlu0 %v1630, 124
        %v1639 = vpop.permute.xlu0 %1638
        %1640 = vrot.lane.b32.xlu0 %v1631, 124
        %v1641 = vpop.permute.xlu0 %1640
        %1642 = vrot.lane.b32.xlu0 %v1632, 124
        %v1643 = vpop.permute.xlu0 %1642
        %1644 = vrot.lane.b32.xlu0 %v1633, 124
        %v1645 = vpop.permute.xlu0 %1644
        %v1646 = vsel %vm354, %v1639, %v1641
        %v1647 = vsel %vm354, %v1641, %v1643
        %v1648 = vsel %vm354, %v1643, %v1645
        %1652 = vst [vmem:[#allocation3 + $0x3f0] sm:$0xff] %v1646
        %1653 = vst [vmem:[#allocation3 + $0x3f8] sm:$0xff] %v1647
        %1654 = vst [vmem:[#allocation3 + $0x400] sm:$0xff] %v1648
        %v1655 = vld [vmem:[#allocation2 + $0x8] sm:$0xff]
        %v1656 = vld [vmem:[#allocation2 + $0x10] sm:$0xff]
        %v1657 = vld [vmem:[#allocation2 + $0x18] sm:$0xff]
        %v1658 = vld [vmem:[#allocation2 + $0x20] sm:$0xff]
        %v1659 = vld [vmem:[#allocation2 + $0x30] sm:$0xff]
        %v1660 = vld [vmem:[#allocation2 + $0x38] sm:$0xff]
        %v1661 = vld [vmem:[#allocation2 + $0x40] sm:$0xff]
        %v1662 = vld [vmem:[#allocation2 + $0x48] sm:$0xff]
        %v1663 = vpack.c.bf16 %v1659, %v1655
        %v1664 = vpack.c.bf16 %v1660, %v1656
        %v1665 = vpack.c.bf16 %v1661, %v1657
        %v1666 = vpack.c.bf16 %v1662, %v1658
        %1671 = vrot.lane.b32.xlu0 %v1663, 123
        %v1672 = vpop.permute.xlu0 %1671
        %1673 = vrot.lane.b32.xlu0 %v1664, 123
        %v1674 = vpop.permute.xlu0 %1673
        %1675 = vrot.lane.b32.xlu0 %v1665, 123
        %v1676 = vpop.permute.xlu0 %1675
        %1677 = vrot.lane.b32.xlu0 %v1666, 123
        %v1678 = vpop.permute.xlu0 %1677
        %v1679 = vsel %vm388, %v1672, %v1674
        %v1680 = vsel %vm388, %v1674, %v1676
        %v1681 = vsel %vm388, %v1676, %v1678
        %1685 = vst [vmem:[#allocation3 + $0x408] sm:$0xff] %v1679
        %1686 = vst [vmem:[#allocation3 + $0x410] sm:$0xff] %v1680
        %1687 = vst [vmem:[#allocation3 + $0x418] sm:$0xff] %v1681
        %v1688 = vld [vmem:[#allocation2 + $0x8] sm:$0xff]
        %v1689 = vld [vmem:[#allocation2 + $0x10] sm:$0xff]
        %v1690 = vld [vmem:[#allocation2 + $0x18] sm:$0xff]
        %v1691 = vld [vmem:[#allocation2 + $0x20] sm:$0xff]
        %v1692 = vld [vmem:[#allocation2 + $0x30] sm:$0xff]
        %v1693 = vld [vmem:[#allocation2 + $0x38] sm:$0xff]
        %v1694 = vld [vmem:[#allocation2 + $0x40] sm:$0xff]
        %v1695 = vld [vmem:[#allocation2 + $0x48] sm:$0xff]
        %v1696 = vpack.c.bf16 %v1692, %v1688
        %v1697 = vpack.c.bf16 %v1693, %v1689
        %v1698 = vpack.c.bf16 %v1694, %v1690
        %v1699 = vpack.c.bf16 %v1695, %v1691
        %1704 = vrot.lane.b32.xlu0 %v1696, 122
        %v1705 = vpop.permute.xlu0 %1704
        %1706 = vrot.lane.b32.xlu0 %v1697, 122
        %v1707 = vpop.permute.xlu0 %1706
        %1708 = vrot.lane.b32.xlu0 %v1698, 122
        %v1709 = vpop.permute.xlu0 %1708
        %1710 = vrot.lane.b32.xlu0 %v1699, 122
        %v1711 = vpop.permute.xlu0 %1710
        %v1712 = vsel %vm422, %v1705, %v1707
        %v1713 = vsel %vm422, %v1707, %v1709
        %v1714 = vsel %vm422, %v1709, %v1711
        %1718 = vst [vmem:[#allocation3 + $0x420] sm:$0xff] %v1712
        %1719 = vst [vmem:[#allocation3 + $0x428] sm:$0xff] %v1713
        %1720 = vst [vmem:[#allocation3 + $0x430] sm:$0xff] %v1714
        %v1721 = vld [vmem:[#allocation2 + $0x8] sm:$0xff]
        %v1722 = vld [vmem:[#allocation2 + $0x10] sm:$0xff]
        %v1723 = vld [vmem:[#allocation2 + $0x18] sm:$0xff]
        %v1724 = vld [vmem:[#allocation2 + $0x20] sm:$0xff]
        %v1725 = vld [vmem:[#allocation2 + $0x30] sm:$0xff]
        %v1726 = vld [vmem:[#allocation2 + $0x38] sm:$0xff]
        %v1727 = vld [vmem:[#allocation2 + $0x40] sm:$0xff]
        %v1728 = vld [vmem:[#allocation2 + $0x48] sm:$0xff]
        %v1729 = vpack.c.bf16 %v1725, %v1721
        %v1730 = vpack.c.bf16 %v1726, %v1722
        %v1731 = vpack.c.bf16 %v1727, %v1723
        %v1732 = vpack.c.bf16 %v1728, %v1724
        %1737 = vrot.lane.b32.xlu0 %v1729, 121
        %v1738 = vpop.permute.xlu0 %1737
        %1739 = vrot.lane.b32.xlu0 %v1730, 121
        %v1740 = vpop.permute.xlu0 %1739
        %1741 = vrot.lane.b32.xlu0 %v1731, 121
        %v1742 = vpop.permute.xlu0 %1741
        %1743 = vrot.lane.b32.xlu0 %v1732, 121
        %v1744 = vpop.permute.xlu0 %1743
        %vm1745 = vcmask 990208
        %v1746 = vsel %vm1745, %v1738, %v1740
        %v1747 = vsel %vm1745, %v1740, %v1742
        %v1748 = vsel %vm1745, %v1742, %v1744
        %1752 = vst [vmem:[#allocation3 + $0x438] sm:$0xff] %v1746
        %1753 = vst [vmem:[#allocation3 + $0x440] sm:$0xff] %v1747
        %1754 = vst [vmem:[#allocation3 + $0x448] sm:$0xff] %v1748
        %v1755 = vld [vmem:[#allocation2 + $0x8] sm:$0xff]
        %v1756 = vld [vmem:[#allocation2 + $0x10] sm:$0xff]
        %v1757 = vld [vmem:[#allocation2 + $0x18] sm:$0xff]
        %v1758 = vld [vmem:[#allocation2 + $0x20] sm:$0xff]
        %v1759 = vld [vmem:[#allocation2 + $0x30] sm:$0xff]
        %v1760 = vld [vmem:[#allocation2 + $0x38] sm:$0xff]
        %v1761 = vld [vmem:[#allocation2 + $0x40] sm:$0xff]
        %v1762 = vld [vmem:[#allocation2 + $0x48] sm:$0xff]
        %v1763 = vpack.c.bf16 %v1759, %v1755
        %v1764 = vpack.c.bf16 %v1760, %v1756
        %v1765 = vpack.c.bf16 %v1761, %v1757
        %v1766 = vpack.c.bf16 %v1762, %v1758
        %1771 = vrot.lane.b32.xlu0 %v1763, 120
        %v1772 = vpop.permute.xlu0 %1771
        %1773 = vrot.lane.b32.xlu0 %v1764, 120
        %v1774 = vpop.permute.xlu0 %1773
        %1775 = vrot.lane.b32.xlu0 %v1765, 120
        %v1776 = vpop.permute.xlu0 %1775
        %1777 = vrot.lane.b32.xlu0 %v1766, 120
        %v1778 = vpop.permute.xlu0 %1777
        %vm1779 = vcmask 982016
        %v1780 = vsel %vm1779, %v1772, %v1774
        %v1781 = vsel %vm1779, %v1774, %v1776
        %v1782 = vsel %vm1779, %v1776, %v1778
        %1786 = vst [vmem:[#allocation3 + $0x450] sm:$0xff] %v1780
        %1787 = vst [vmem:[#allocation3 + $0x458] sm:$0xff] %v1781
        %1788 = vst [vmem:[#allocation3 + $0x460] sm:$0xff] %v1782
        %v1789 = vld [vmem:[#allocation2 + $0x8] sm:$0xff]
        %v1790 = vld [vmem:[#allocation2 + $0x10] sm:$0xff]
        %v1791 = vld [vmem:[#allocation2 + $0x18] sm:$0xff]
        %v1792 = vld [vmem:[#allocation2 + $0x20] sm:$0xff]
        %v1793 = vld [vmem:[#allocation2 + $0x30] sm:$0xff]
        %v1794 = vld [vmem:[#allocation2 + $0x38] sm:$0xff]
        %v1795 = vld [vmem:[#allocation2 + $0x40] sm:$0xff]
        %v1796 = vld [vmem:[#allocation2 + $0x48] sm:$0xff]
        %v1797 = vpack.c.bf16 %v1793, %v1789
        %v1798 = vpack.c.bf16 %v1794, %v1790
        %v1799 = vpack.c.bf16 %v1795, %v1791
        %v1800 = vpack.c.bf16 %v1796, %v1792
        %1805 = vrot.lane.b32.xlu0 %v1797, 119
        %v1806 = vpop.permute.xlu0 %1805
        %1807 = vrot.lane.b32.xlu0 %v1798, 119
        %v1808 = vpop.permute.xlu0 %1807
        %1809 = vrot.lane.b32.xlu0 %v1799, 119
        %v1810 = vpop.permute.xlu0 %1809
        %1811 = vrot.lane.b32.xlu0 %v1800, 119
        %v1812 = vpop.permute.xlu0 %1811
        %vm1813 = vcmask 973824
        %v1814 = vsel %vm1813, %v1806, %v1808
        %v1815 = vsel %vm1813, %v1808, %v1810
        %v1816 = vsel %vm1813, %v1810, %v1812
        %1820 = vst [vmem:[#allocation3 + $0x468] sm:$0xff] %v1814
        %1821 = vst [vmem:[#allocation3 + $0x470] sm:$0xff] %v1815
        %1822 = vst [vmem:[#allocation3 + $0x478] sm:$0xff] %v1816
        %v1823 = vld [vmem:[#allocation2 + $0x8] sm:$0xff]
        %v1824 = vld [vmem:[#allocation2 + $0x10] sm:$0xff]
        %v1825 = vld [vmem:[#allocation2 + $0x18] sm:$0xff]
        %v1826 = vld [vmem:[#allocation2 + $0x20] sm:$0xff]
        %v1827 = vld [vmem:[#allocation2 + $0x30] sm:$0xff]
        %v1828 = vld [vmem:[#allocation2 + $0x38] sm:$0xff]
        %v1829 = vld [vmem:[#allocation2 + $0x40] sm:$0xff]
        %v1830 = vld [vmem:[#allocation2 + $0x48] sm:$0xff]
        %v1831 = vpack.c.bf16 %v1827, %v1823
        %v1832 = vpack.c.bf16 %v1828, %v1824
        %v1833 = vpack.c.bf16 %v1829, %v1825
        %v1834 = vpack.c.bf16 %v1830, %v1826
        %1839 = vrot.lane.b32.xlu0 %v1831, 118
        %v1840 = vpop.permute.xlu0 %1839
        %1841 = vrot.lane.b32.xlu0 %v1832, 118
        %v1842 = vpop.permute.xlu0 %1841
        %1843 = vrot.lane.b32.xlu0 %v1833, 118
        %v1844 = vpop.permute.xlu0 %1843
        %1845 = vrot.lane.b32.xlu0 %v1834, 118
        %v1846 = vpop.permute.xlu0 %1845
        %vm1847 = vcmask 965632
        %v1848 = vsel %vm1847, %v1840, %v1842
        %v1849 = vsel %vm1847, %v1842, %v1844
        %v1850 = vsel %vm1847, %v1844, %v1846
        %1854 = vst [vmem:[#allocation3 + $0x480] sm:$0xff] %v1848
        %1855 = vst [vmem:[#allocation3 + $0x488] sm:$0xff] %v1849
        %1856 = vst [vmem:[#allocation3 + $0x490] sm:$0xff] %v1850
        %v1857 = vld [vmem:[%s1] sm:$0x7f]
        %v1858 = vld [vmem:[%s2] sm:$0x3]
        %v1859 = vld [vmem:[#allocation3] sm:$0xff]
        %v1860 = vld [vmem:[#allocation3 + $0x8] sm:$0xff]
        %v1861 = vld [vmem:[#allocation3 + $0x10] sm:$0xff]
        %v1862 = vld [vmem:[#allocation3 + $0x18] sm:$0xff]
        %v1863 = vld [vmem:[#allocation3 + $0x20] sm:$0xff]
        %v1864 = vld [vmem:[#allocation3 + $0x28] sm:$0xff]
        %v1865 = vld [vmem:[#allocation3 + $0x30] sm:$0xff]
        %v1866 = vld [vmem:[#allocation3 + $0x38] sm:$0xff]
        %v1867 = vld [vmem:[#allocation3 + $0x40] sm:$0xff]
        %v1868 = vld [vmem:[#allocation3 + $0x48] sm:$0xff]
        %v1869 = vld [vmem:[#allocation3 + $0x50] sm:$0xff]
        %v1870 = vld [vmem:[#allocation3 + $0x58] sm:$0xff]
        %v1871 = vld [vmem:[#allocation3 + $0x60] sm:$0xff]
        %v1872 = vld [vmem:[#allocation3 + $0x68] sm:$0xff]
        %v1873 = vld [vmem:[#allocation3 + $0x70] sm:$0xff]
        %v1874 = vld [vmem:[#allocation3 + $0x78] sm:$0xff]
        %v1875 = vld [vmem:[#allocation3 + $0x80] sm:$0xff]
        %v1876 = vld [vmem:[#allocation3 + $0x88] sm:$0xff]
        %v1877 = vld [vmem:[#allocation3 + $0x90] sm:$0xff]
        %v1878 = vld [vmem:[#allocation3 + $0x98] sm:$0xff]
        %v1879 = vld [vmem:[#allocation3 + $0xa0] sm:$0xff]
        %v1880 = vld [vmem:[#allocation3 + $0xa8] sm:$0xff]
        %v1881 = vld [vmem:[#allocation3 + $0xb0] sm:$0xff]
        %v1882 = vld [vmem:[#allocation3 + $0xb8] sm:$0xff]
        %v1883 = vld [vmem:[#allocation3 + $0xc0] sm:$0xff]
        %v1884 = vld [vmem:[#allocation3 + $0xc8] sm:$0xff]
        %v1885 = vld [vmem:[#allocation3 + $0xd0] sm:$0xff]
        %v1886 = vld [vmem:[#allocation3 + $0xd8] sm:$0xff]
        %v1887 = vld [vmem:[#allocation3 + $0xe0] sm:$0xff]
        %v1888 = vld [vmem:[#allocation3 + $0xe8] sm:$0xff]
        %v1889 = vld [vmem:[#allocation3 + $0xf0] sm:$0xff]
        %v1890 = vld [vmem:[#allocation3 + $0xf8] sm:$0xff]
        %v1891 = vld [vmem:[#allocation3 + $0x100] sm:$0xff]
        %v1892 = vld [vmem:[#allocation3 + $0x108] sm:$0xff]
        %v1893 = vld [vmem:[#allocation3 + $0x110] sm:$0xff]
        %v1894 = vld [vmem:[#allocation3 + $0x118] sm:$0xff]
        %v1895 = vld [vmem:[#allocation3 + $0x120] sm:$0xff]
        %v1896 = vld [vmem:[#allocation3 + $0x128] sm:$0xff]
        %v1897 = vld [vmem:[#allocation3 + $0x130] sm:$0xff]
        %v1898 = vld [vmem:[#allocation3 + $0x138] sm:$0xff]
        %v1899 = vld [vmem:[#allocation3 + $0x140] sm:$0xff]
        %v1900 = vld [vmem:[#allocation3 + $0x148] sm:$0xff]
        %v1901 = vld [vmem:[#allocation3 + $0x150] sm:$0xff]
        %v1902 = vld [vmem:[#allocation3 + $0x158] sm:$0xff]
        %v1903 = vld [vmem:[#allocation3 + $0x160] sm:$0xff]
        %v1904 = vld [vmem:[#allocation3 + $0x168] sm:$0xff]
        %v1905 = vld [vmem:[#allocation3 + $0x170] sm:$0xff]
        %v1906 = vld [vmem:[#allocation3 + $0x178] sm:$0xff]
        %v1907 = vld [vmem:[#allocation3 + $0x180] sm:$0xff]
        %v1908 = vld [vmem:[#allocation3 + $0x188] sm:$0xff]
        %v1909 = vld [vmem:[#allocation3 + $0x190] sm:$0xff]
        %v1910 = vld [vmem:[#allocation3 + $0x198] sm:$0xff]
        %v1911 = vld [vmem:[#allocation3 + $0x1a0] sm:$0xff]
        %v1912 = vld [vmem:[#allocation3 + $0x1a8] sm:$0xff]
        %v1913 = vld [vmem:[#allocation3 + $0x1b0] sm:$0xff]
        %v1914 = vld [vmem:[#allocation3 + $0x1b8] sm:$0xff]
        %v1915 = vld [vmem:[#allocation3 + $0x1c0] sm:$0xff]
        %v1916 = vld [vmem:[#allocation3 + $0x1c8] sm:$0xff]
        %v1917 = vld [vmem:[#allocation3 + $0x1d0] sm:$0xff]
        %v1918 = vld [vmem:[#allocation3 + $0x1d8] sm:$0xff]
        %v1919 = vld [vmem:[#allocation3 + $0x1e0] sm:$0xff]
        %v1920 = vld [vmem:[#allocation3 + $0x1e8] sm:$0xff]
        %v1921 = vld [vmem:[#allocation3 + $0x1f0] sm:$0xff]
        %v1922 = vld [vmem:[#allocation3 + $0x1f8] sm:$0xff]
        %v1923 = vld [vmem:[#allocation3 + $0x200] sm:$0xff]
        %v1924 = vld [vmem:[#allocation3 + $0x208] sm:$0xff]
        %v1925 = vld [vmem:[#allocation3 + $0x210] sm:$0xff]
        %v1926 = vld [vmem:[#allocation3 + $0x218] sm:$0xff]
        %v1927 = vld [vmem:[#allocation3 + $0x220] sm:$0xff]
        %v1928 = vld [vmem:[#allocation3 + $0x228] sm:$0xff]
        %v1929 = vld [vmem:[#allocation3 + $0x230] sm:$0xff]
        %v1930 = vld [vmem:[#allocation3 + $0x238] sm:$0xff]
        %v1931 = vld [vmem:[#allocation3 + $0x240] sm:$0xff]
        %v1932 = vld [vmem:[#allocation3 + $0x248] sm:$0xff]
        %v1933 = vld [vmem:[#allocation3 + $0x250] sm:$0xff]
        %v1934 = vld [vmem:[#allocation3 + $0x258] sm:$0xff]
        %v1935 = vld [vmem:[#allocation3 + $0x260] sm:$0xff]
        %v1936 = vld [vmem:[#allocation3 + $0x268] sm:$0xff]
        %v1937 = vld [vmem:[#allocation3 + $0x270] sm:$0xff]
        %v1938 = vld [vmem:[#allocation3 + $0x278] sm:$0xff]
        %v1939 = vld [vmem:[#allocation3 + $0x280] sm:$0xff]
        %v1940 = vld [vmem:[#allocation3 + $0x288] sm:$0xff]
        %v1941 = vld [vmem:[#allocation3 + $0x290] sm:$0xff]
        %v1942 = vld [vmem:[#allocation3 + $0x298] sm:$0xff]
        %v1943 = vld [vmem:[#allocation3 + $0x2a0] sm:$0xff]
        %v1944 = vld [vmem:[#allocation3 + $0x2a8] sm:$0xff]
        %v1945 = vld [vmem:[#allocation3 + $0x2b0] sm:$0xff]
        %v1946 = vld [vmem:[#allocation3 + $0x2b8] sm:$0xff]
        %v1947 = vld [vmem:[#allocation3 + $0x2c0] sm:$0xff]
        %v1948 = vld [vmem:[#allocation3 + $0x2c8] sm:$0xff]
        %v1949 = vld [vmem:[#allocation3 + $0x2d0] sm:$0xff]
        %v1950 = vld [vmem:[#allocation3 + $0x2d8] sm:$0xff]
        %v1951 = vld [vmem:[#allocation3 + $0x2e0] sm:$0xff]
        %v1952 = vld [vmem:[#allocation3 + $0x2e8] sm:$0xff]
        %v1953 = vld [vmem:[#allocation3 + $0x2f0] sm:$0xff]
        %v1954 = vld [vmem:[#allocation3 + $0x2f8] sm:$0xff]
        %v1955 = vld [vmem:[#allocation3 + $0x300] sm:$0xff]
        %v1956 = vld [vmem:[#allocation3 + $0x308] sm:$0xff]
        %v1957 = vld [vmem:[#allocation3 + $0x310] sm:$0xff]
        %v1958 = vld [vmem:[#allocation3 + $0x318] sm:$0xff]
        %v1959 = vld [vmem:[#allocation3 + $0x320] sm:$0xff]
        %v1960 = vld [vmem:[#allocation3 + $0x328] sm:$0xff]
        %v1961 = vld [vmem:[#allocation3 + $0x330] sm:$0xff]
        %v1962 = vld [vmem:[#allocation3 + $0x338] sm:$0xff]
        %v1963 = vld [vmem:[#allocation3 + $0x340] sm:$0xff]
        %v1964 = vld [vmem:[#allocation3 + $0x348] sm:$0xff]
        %v1965 = vld [vmem:[#allocation3 + $0x350] sm:$0xff]
        %v1966 = vld [vmem:[#allocation3 + $0x358] sm:$0xff]
        %v1967 = vld [vmem:[#allocation3 + $0x360] sm:$0xff]
        %v1968 = vld [vmem:[#allocation3 + $0x368] sm:$0xff]
        %v1969 = vld [vmem:[#allocation3 + $0x370] sm:$0xff]
        %v1970 = vld [vmem:[#allocation3 + $0x378] sm:$0xff]
        %v1971 = vld [vmem:[#allocation3 + $0x380] sm:$0xff]
        %v1972 = vld [vmem:[#allocation3 + $0x388] sm:$0xff]
        %v1973 = vld [vmem:[#allocation3 + $0x390] sm:$0xff]
        %v1974 = vld [vmem:[#allocation3 + $0x398] sm:$0xff]
        %v1975 = vld [vmem:[#allocation3 + $0x3a0] sm:$0xff]
        %v1976 = vld [vmem:[#allocation3 + $0x3a8] sm:$0xff]
        %v1977 = vld [vmem:[#allocation3 + $0x3b0] sm:$0xff]
        %v1978 = vld [vmem:[#allocation3 + $0x3b8] sm:$0xff]
        %v1979 = vld [vmem:[#allocation3 + $0x3c0] sm:$0xff]
        %v1980 = vld [vmem:[#allocation3 + $0x3c8] sm:$0xff]
        %v1981 = vld [vmem:[#allocation3 + $0x3d0] sm:$0xff]
        %v1982 = vld [vmem:[#allocation3 + $0x3d8] sm:$0xff]
        %v1983 = vld [vmem:[#allocation3 + $0x3e0] sm:$0xff]
        %v1984 = vld [vmem:[#allocation3 + $0x3e8] sm:$0xff]
        %v1985 = vld [vmem:[#allocation3 + $0x3f0] sm:$0xff]
        %v1986 = vld [vmem:[#allocation3 + $0x3f8] sm:$0xff]
        %v1987 = vld [vmem:[#allocation3 + $0x400] sm:$0xff]
        %v1988 = vld [vmem:[#allocation3 + $0x408] sm:$0xff]
        %v1989 = vld [vmem:[#allocation3 + $0x410] sm:$0xff]
        %v1990 = vld [vmem:[#allocation3 + $0x418] sm:$0xff]
        %v1991 = vld [vmem:[#allocation3 + $0x420] sm:$0xff]
        %v1992 = vld [vmem:[#allocation3 + $0x428] sm:$0xff]
        %v1993 = vld [vmem:[#allocation3 + $0x430] sm:$0xff]
        %v1994 = vld [vmem:[#allocation3 + $0x438] sm:$0xff]
        %v1995 = vld [vmem:[#allocation3 + $0x440] sm:$0xff]
        %v1996 = vld [vmem:[#allocation3 + $0x448] sm:$0xff]
        %v1997 = vld [vmem:[#allocation3 + $0x450] sm:$0xff]
        %v1998 = vld [vmem:[#allocation3 + $0x458] sm:$0xff]
        %v1999 = vld [vmem:[#allocation3 + $0x460] sm:$0xff]
        %v2000 = vld [vmem:[#allocation3 + $0x468] sm:$0xff]
        %v2001 = vld [vmem:[#allocation3 + $0x470] sm:$0xff]
        %v2002 = vld [vmem:[#allocation3 + $0x478] sm:$0xff]
        %v2003 = vld [vmem:[#allocation3 + $0x480] sm:$0xff]
        %v2004 = vld [vmem:[#allocation3 + $0x488] sm:$0xff]
        %v2005 = vld [vmem:[#allocation3 + $0x490] sm:$0xff]
        %2007 = vset.pattern.permute.xlu0 0
        %2008 = vperm.xlu0 %2007, %v1858
        %v2009 = vpop.permute.xlu0 %2008
        %v2012 = vcombine.high %v1857, %v1857
        %v2014 = vunpack.c.l.s4 1966171168
        %v2015 = vunpack.c.0.s8 %v2014
        %v2016 = vlaneseq
        %v2017 = vshrl.u32 %v2016, 7
        %v2018 = vsub.s32 %v2015, %v2017
        %v2019 = vrot.slane %v1857, %v2018
        %v2021 = vunpack.c.l.s4 1966171168
        %v2022 = vunpack.c.0.s8 %v2021
        %v2023 = vlaneseq
        %v2024 = vshrl.u32 %v2023, 7
        %v2025 = vsub.s32 %v2022, %v2024
        %v2026 = vrot.slane %v2012, %v2025
        %v2027 = vcombine.high %v2019, %v2019
        %v2028 = vcombine.high %v2026, %v2026
        %v2030 = vunpack.c.l.s4 1966171168
        %v2031 = vunpack.c.0.s8 %v2030
        %v2032 = vlaneseq
        %v2033 = vshrl.u32 %v2032, 7
        %v2034 = vsub.s32 %v2031, %v2033
        %v2035 = vrot.slane %v2019, %v2034
        %v2037 = vunpack.c.l.s4 1966171168
        %v2038 = vunpack.c.0.s8 %v2037
        %v2039 = vlaneseq
        %v2040 = vshrl.u32 %v2039, 7
        %v2041 = vsub.s32 %v2038, %v2040
        %v2042 = vrot.slane %v2026, %v2041
        %v2044 = vunpack.c.l.s4 1966171168
        %v2045 = vunpack.c.0.s8 %v2044
        %v2046 = vlaneseq
        %v2047 = vshrl.u32 %v2046, 7
        %v2048 = vsub.s32 %v2045, %v2047
        %v2049 = vrot.slane %v2027, %v2048
        %v2051 = vunpack.c.l.s4 1966171168
        %v2052 = vunpack.c.0.s8 %v2051
        %v2053 = vlaneseq
        %v2054 = vshrl.u32 %v2053, 7
        %v2055 = vsub.s32 %v2052, %v2054
        %v2056 = vrot.slane %v2028, %v2055
        %v2057 = vcombine.high %v2035, %v2035
        %v2058 = vcombine.high %v2042, %v2042
        %v2059 = vcombine.high %v2049, %v2049
        %vm2066 = vcmask 130048
        %v2068 = vsel %vm2066, %v2058, 0
        %2070 = vmatprep.subr.bf16.mxu0 %v1860
        %2071 = vmatpush1.bf16.msra.mxu0 %v1859
        %2072 = vmatprep.subr.bf16.mxu0 %v1863
        %2073 = vmatpush1.bf16.msra.mxu0 %v1862
        %2074 = vmatprep.subr.bf16.mxu0 %v1866
        %2075 = vmatpush1.bf16.msra.mxu0 %v1865
        %2076 = vmatprep.subr.bf16.mxu0 %v1869
        %2077 = vmatpush1.bf16.msra.mxu0 %v1868
        %2078 = vmatprep.subr.bf16.mxu0 %v1872
        %2079 = vmatpush1.bf16.msra.mxu0 %v1871
        %2080 = vmatprep.subr.bf16.mxu0 %v1875
        %2081 = vmatpush1.bf16.msra.mxu0 %v1874
        %2082 = vmatprep.subr.bf16.mxu0 %v1878
        %2083 = vmatpush1.bf16.msra.mxu0 %v1877
        %2084 = vmatprep.subr.bf16.mxu0 %v1881
        %2085 = vmatpush1.bf16.msra.mxu0 %v1880
        %2086 = vmatprep.subr.bf16.mxu0 %v1884
        %2087 = vmatpush1.bf16.msra.mxu0 %v1883
        %2088 = vmatprep.subr.bf16.mxu0 %v1887
        %2089 = vmatpush1.bf16.msra.mxu0 %v1886
        %2090 = vmatprep.subr.bf16.mxu0 %v1890
        %2091 = vmatpush1.bf16.msra.mxu0 %v1889
        %2092 = vmatprep.subr.bf16.mxu0 %v1893
        %2093 = vmatpush1.bf16.msra.mxu0 %v1892
        %2094 = vmatprep.subr.bf16.mxu0 %v1896
        %2095 = vmatpush1.bf16.msra.mxu0 %v1895
        %2096 = vmatprep.subr.bf16.mxu0 %v1899
        %2097 = vmatpush1.bf16.msra.mxu0 %v1898
        %2098 = vmatprep.subr.bf16.mxu0 %v1902
        %2099 = vmatpush1.bf16.msra.mxu0 %v1901
        %2100 = vmatprep.subr.bf16.mxu0 %v1905
        %2101 = vmatpush1.bf16.msra.mxu0 %v1904
        %2102 = vmatprep.mubr.bf16.mxu0 %v2049
        %2103 = vmatmul.mubr.bf16.gmra.mrb[0].mxu0 %v2035
        %v2104 = vpop.f32.mrb[0].mxu0
        %v2105 = vadd.f32 %v2009, %v2104
        %v2106 = vpop.f32.mrb[0].mxu0
        %v2107 = vadd.f32 %v2009, %v2106
        %v2108 = vpop.f32.mrb[0].mxu0
        %v2109 = vpop.f32.mrb[0].mxu0
        %2110 = vdwg.mxu0
        %2111 = vmatprep.subr.bf16.mxu0 %v1908
        %2112 = vmatpush1.bf16.msra.mxu0 %v1907
        %2113 = vmatprep.subr.bf16.mxu0 %v1911
        %2114 = vmatpush1.bf16.msra.mxu0 %v1910
        %2115 = vmatprep.subr.bf16.mxu0 %v1914
        %2116 = vmatpush1.bf16.msra.mxu0 %v1913
        %2117 = vmatprep.subr.bf16.mxu0 %v1917
        %2118 = vmatpush1.bf16.msra.mxu0 %v1916
        %2119 = vmatprep.subr.bf16.mxu0 %v1920
        %2120 = vmatpush1.bf16.msra.mxu0 %v1919
        %2121 = vmatprep.subr.bf16.mxu0 %v1923
        %2122 = vmatpush1.bf16.msra.mxu0 %v1922
        %2123 = vmatprep.subr.bf16.mxu0 %v1926
        %2124 = vmatpush1.bf16.msra.mxu0 %v1925
        %2125 = vmatprep.subr.bf16.mxu0 %v1929
        %2126 = vmatpush1.bf16.msra.mxu0 %v1928
        %2127 = vmatprep.subr.bf16.mxu0 %v1932
        %2128 = vmatpush1.bf16.msra.mxu0 %v1931
        %2129 = vmatprep.subr.bf16.mxu0 %v1935
        %2130 = vmatpush1.bf16.msra.mxu0 %v1934
        %2131 = vmatprep.subr.bf16.mxu0 %v1938
        %2132 = vmatpush1.bf16.msra.mxu0 %v1937
        %2133 = vmatprep.subr.bf16.mxu0 %v1941
        %2134 = vmatpush1.bf16.msra.mxu0 %v1940
        %2135 = vmatprep.subr.bf16.mxu0 %v1944
        %2136 = vmatpush1.bf16.msra.mxu0 %v1943
        %2137 = vmatprep.subr.bf16.mxu0 %v1947
        %2138 = vmatpush1.bf16.msra.mxu0 %v1946
        %2139 = vmatprep.subr.bf16.mxu0 %v1950
        %2140 = vmatpush1.bf16.msra.mxu0 %v1949
        %2141 = vmatprep.subr.bf16.mxu0 %v1953
        %2142 = vmatpush1.bf16.msra.mxu0 %v1952
        %2143 = vmatprep.mubr.bf16.mxu0 %v2059
        %2144 = vmatmul.mubr.bf16.gmra.mrb[0].mxu0 %v2057
        %v2145 = vpop.f32.mrb[0].mxu0
        %v2146 = vadd.f32 %v2105, %v2145
        %v2147 = vpop.f32.mrb[0].mxu0
        %v2148 = vadd.f32 %v2107, %v2147
        %v2149 = vpop.f32.mrb[0].mxu0
        %v2150 = vpop.f32.mrb[0].mxu0
        %2151 = vdwg.mxu0
        %2152 = vmatprep.subr.bf16.mxu0 %v1956
        %2153 = vmatpush1.bf16.msra.mxu0 %v1955
        %2154 = vmatprep.subr.bf16.mxu0 %v1959
        %2155 = vmatpush1.bf16.msra.mxu0 %v1958
        %2156 = vmatprep.subr.bf16.mxu0 %v1962
        %2157 = vmatpush1.bf16.msra.mxu0 %v1961
        %2158 = vmatprep.subr.bf16.mxu0 %v1965
        %2159 = vmatpush1.bf16.msra.mxu0 %v1964
        %2160 = vmatprep.subr.bf16.mxu0 %v1968
        %2161 = vmatpush1.bf16.msra.mxu0 %v1967
        %2162 = vmatprep.subr.bf16.mxu0 %v1971
        %2163 = vmatpush1.bf16.msra.mxu0 %v1970
        %2164 = vmatprep.subr.bf16.mxu0 %v1974
        %2165 = vmatpush1.bf16.msra.mxu0 %v1973
        %2166 = vmatprep.subr.bf16.mxu0 %v1977
        %2167 = vmatpush1.bf16.msra.mxu0 %v1976
        %2168 = vmatprep.subr.bf16.mxu0 %v1980
        %2169 = vmatpush1.bf16.msra.mxu0 %v1979
        %2170 = vmatprep.subr.bf16.mxu0 %v1983
        %2171 = vmatpush1.bf16.msra.mxu0 %v1982
        %2172 = vmatprep.subr.bf16.mxu0 %v1986
        %2173 = vmatpush1.bf16.msra.mxu0 %v1985
        %2174 = vmatprep.subr.bf16.mxu0 %v1989
        %2175 = vmatpush1.bf16.msra.mxu0 %v1988
        %2176 = vmatprep.subr.bf16.mxu0 %v1992
        %2177 = vmatpush1.bf16.msra.mxu0 %v1991
        %2178 = vmatprep.subr.bf16.mxu0 %v1995
        %2179 = vmatpush1.bf16.msra.mxu0 %v1994
        %2180 = vmatprep.subr.bf16.mxu0 %v1998
        %2181 = vmatpush1.bf16.msra.mxu0 %v1997
        %2182 = vmatprep.subr.bf16.mxu0 %v2001
        %2183 = vmatpush1.bf16.msra.mxu0 %v2000
        %2184 = vmatprep.mubr.bf16.mxu0 %v2056
        %2185 = vmatmul.mubr.bf16.gmra.mrb[0].mxu0 %v2042
        %v2186 = vpop.f32.mrb[0].mxu0
        %v2187 = vadd.f32 %v2146, %v2186
        %v2188 = vpop.f32.mrb[0].mxu0
        %v2189 = vadd.f32 %v2148, %v2188
        %v2190 = vpop.f32.mrb[0].mxu0
        %v2191 = vpop.f32.mrb[0].mxu0
        %2192 = vdwg.mxu0
        %2193 = vmatprep.subr.bf16.mxu0 %v2004
        %2194 = vmatpush1.bf16.msra.mxu0 %v2003
        %2195 = vmatprep.subr.bf16.mxu0 0
        %2196 = vmatpush1.bf16.msra.mxu0 0
        %2197 = vmatprep.subr.bf16.mxu0 0
        %2198 = vmatpush1.bf16.msra.mxu0 0
        %2199 = vmatprep.subr.bf16.mxu0 0
        %2200 = vmatpush1.bf16.msra.mxu0 0
        %2201 = vmatprep.subr.bf16.mxu0 0
        %2202 = vmatpush1.bf16.msra.mxu0 0
        %2203 = vmatprep.subr.bf16.mxu0 0
        %2204 = vmatpush1.bf16.msra.mxu0 0
        %2205 = vmatprep.subr.bf16.mxu0 0
        %2206 = vmatpush1.bf16.msra.mxu0 0
        %2207 = vmatprep.subr.bf16.mxu0 0
        %2208 = vmatpush1.bf16.msra.mxu0 0
        %2209 = vmatprep.subr.bf16.mxu0 0
        %2210 = vmatpush1.bf16.msra.mxu0 0
        %2211 = vmatprep.subr.bf16.mxu0 0
        %2212 = vmatpush1.bf16.msra.mxu0 0
        %2213 = vmatprep.subr.bf16.mxu0 0
        %2214 = vmatpush1.bf16.msra.mxu0 0
        %2215 = vmatprep.subr.bf16.mxu0 0
        %2216 = vmatpush1.bf16.msra.mxu0 0
        %2217 = vmatprep.subr.bf16.mxu0 0
        %2218 = vmatpush1.bf16.msra.mxu0 0
        %2219 = vmatprep.subr.bf16.mxu0 0
        %2220 = vmatpush1.bf16.msra.mxu0 0
        %2221 = vmatprep.subr.bf16.mxu0 0
        %2222 = vmatpush1.bf16.msra.mxu0 0
        %2223 = vmatprep.subr.bf16.mxu0 0
        %2224 = vmatpush1.bf16.msra.mxu0 0
        %2225 = vmatprep.mubr.bf16.mxu0 0
        %2226 = vmatmul.mubr.bf16.gmra.mrb[0].mxu0 %v2068
        %v2227 = vpop.f32.mrb[0].mxu0
        %v2228 = vadd.f32 %v2187, %v2227
        %v2229 = vpop.f32.mrb[0].mxu0
        %v2230 = vadd.f32 %v2189, %v2229
        %v2231 = vpop.f32.mrb[0].mxu0
        %v2232 = vpop.f32.mrb[0].mxu0
        %2233 = vdwg.mxu0
        %2234 = vmatprep.subr.bf16.mxu0 0
        %2235 = vmatpush1.bf16.msra.mxu0 %v1861
        %2236 = vmatprep.subr.bf16.mxu0 0
        %2237 = vmatpush1.bf16.msra.mxu0 %v1864
        %2238 = vmatprep.subr.bf16.mxu0 0
        %2239 = vmatpush1.bf16.msra.mxu0 %v1867
        %2240 = vmatprep.subr.bf16.mxu0 0
        %2241 = vmatpush1.bf16.msra.mxu0 %v1870
        %2242 = vmatprep.subr.bf16.mxu0 0
        %2243 = vmatpush1.bf16.msra.mxu0 %v1873
        %2244 = vmatprep.subr.bf16.mxu0 0
        %2245 = vmatpush1.bf16.msra.mxu0 %v1876
        %2246 = vmatprep.subr.bf16.mxu0 0
        %2247 = vmatpush1.bf16.msra.mxu0 %v1879
        %2248 = vmatprep.subr.bf16.mxu0 0
        %2249 = vmatpush1.bf16.msra.mxu0 %v1882
        %2250 = vmatprep.subr.bf16.mxu0 0
        %2251 = vmatpush1.bf16.msra.mxu0 %v1885
        %2252 = vmatprep.subr.bf16.mxu0 0
        %2253 = vmatpush1.bf16.msra.mxu0 %v1888
        %2254 = vmatprep.subr.bf16.mxu0 0
        %2255 = vmatpush1.bf16.msra.mxu0 %v1891
        %2256 = vmatprep.subr.bf16.mxu0 0
        %2257 = vmatpush1.bf16.msra.mxu0 %v1894
        %2258 = vmatprep.subr.bf16.mxu0 0
        %2259 = vmatpush1.bf16.msra.mxu0 %v1897
        %2260 = vmatprep.subr.bf16.mxu0 0
        %2261 = vmatpush1.bf16.msra.mxu0 %v1900
        %2262 = vmatprep.subr.bf16.mxu0 0
        %2263 = vmatpush1.bf16.msra.mxu0 %v1903
        %2264 = vmatprep.subr.bf16.mxu0 0
        %2265 = vmatpush1.bf16.msra.mxu0 %v1906
        %2266 = vmatprep.mubr.bf16.mxu0 %v2049
        %2267 = vmatmul.mubr.bf16.gmra.mrb[0].mxu0 %v2035
        %v2268 = vpop.f32.mrb[0].mxu0
        %v2269 = vadd.f32 %v2009, %v2268
        %v2270 = vpop.f32.mrb[0].mxu0
        %v2271 = vpop.f32.mrb[0].mxu0
        %v2272 = vpop.f32.mrb[0].mxu0
        %2273 = vdwg.mxu0
        %2274 = vmatprep.subr.bf16.mxu0 0
        %2275 = vmatpush1.bf16.msra.mxu0 %v1909
        %2276 = vmatprep.subr.bf16.mxu0 0
        %2277 = vmatpush1.bf16.msra.mxu0 %v1912
        %2278 = vmatprep.subr.bf16.mxu0 0
        %2279 = vmatpush1.bf16.msra.mxu0 %v1915
        %2280 = vmatprep.subr.bf16.mxu0 0
        %2281 = vmatpush1.bf16.msra.mxu0 %v1918
        %2282 = vmatprep.subr.bf16.mxu0 0
        %2283 = vmatpush1.bf16.msra.mxu0 %v1921
        %2284 = vmatprep.subr.bf16.mxu0 0
        %2285 = vmatpush1.bf16.msra.mxu0 %v1924
        %2286 = vmatprep.subr.bf16.mxu0 0
        %2287 = vmatpush1.bf16.msra.mxu0 %v1927
        %2288 = vmatprep.subr.bf16.mxu0 0
        %2289 = vmatpush1.bf16.msra.mxu0 %v1930
        %2290 = vmatprep.subr.bf16.mxu0 0
        %2291 = vmatpush1.bf16.msra.mxu0 %v1933
        %2292 = vmatprep.subr.bf16.mxu0 0
        %2293 = vmatpush1.bf16.msra.mxu0 %v1936
        %2294 = vmatprep.subr.bf16.mxu0 0
        %2295 = vmatpush1.bf16.msra.mxu0 %v1939
        %2296 = vmatprep.subr.bf16.mxu0 0
        %2297 = vmatpush1.bf16.msra.mxu0 %v1942
        %2298 = vmatprep.subr.bf16.mxu0 0
        %2299 = vmatpush1.bf16.msra.mxu0 %v1945
        %2300 = vmatprep.subr.bf16.mxu0 0
        %2301 = vmatpush1.bf16.msra.mxu0 %v1948
        %2302 = vmatprep.subr.bf16.mxu0 0
        %2303 = vmatpush1.bf16.msra.mxu0 %v1951
        %2304 = vmatprep.subr.bf16.mxu0 0
        %2305 = vmatpush1.bf16.msra.mxu0 %v1954
        %2306 = vmatprep.mubr.bf16.mxu0 %v2059
        %2307 = vmatmul.mubr.bf16.gmra.mrb[0].mxu0 %v2057
        %v2308 = vpop.f32.mrb[0].mxu0
        %v2309 = vadd.f32 %v2269, %v2308
        %v2310 = vpop.f32.mrb[0].mxu0
        %v2311 = vpop.f32.mrb[0].mxu0
        %v2312 = vpop.f32.mrb[0].mxu0
        %2313 = vdwg.mxu0
        %2314 = vmatprep.subr.bf16.mxu0 0
        %2315 = vmatpush1.bf16.msra.mxu0 %v1957
        %2316 = vmatprep.subr.bf16.mxu0 0
        %2317 = vmatpush1.bf16.msra.mxu0 %v1960
        %2318 = vmatprep.subr.bf16.mxu0 0
        %2319 = vmatpush1.bf16.msra.mxu0 %v1963
        %2320 = vmatprep.subr.bf16.mxu0 0
        %2321 = vmatpush1.bf16.msra.mxu0 %v1966
        %2322 = vmatprep.subr.bf16.mxu0 0
        %2323 = vmatpush1.bf16.msra.mxu0 %v1969
        %2324 = vmatprep.subr.bf16.mxu0 0
        %2325 = vmatpush1.bf16.msra.mxu0 %v1972
        %2326 = vmatprep.subr.bf16.mxu0 0
        %2327 = vmatpush1.bf16.msra.mxu0 %v1975
        %2328 = vmatprep.subr.bf16.mxu0 0
        %2329 = vmatpush1.bf16.msra.mxu0 %v1978
        %2330 = vmatprep.subr.bf16.mxu0 0
        %2331 = vmatpush1.bf16.msra.mxu0 %v1981
        %2332 = vmatprep.subr.bf16.mxu0 0
        %2333 = vmatpush1.bf16.msra.mxu0 %v1984
        %2334 = vmatprep.subr.bf16.mxu0 0
        %2335 = vmatpush1.bf16.msra.mxu0 %v1987
        %2336 = vmatprep.subr.bf16.mxu0 0
        %2337 = vmatpush1.bf16.msra.mxu0 %v1990
        %2338 = vmatprep.subr.bf16.mxu0 0
        %2339 = vmatpush1.bf16.msra.mxu0 %v1993
        %2340 = vmatprep.subr.bf16.mxu0 0
        %2341 = vmatpush1.bf16.msra.mxu0 %v1996
        %2342 = vmatprep.subr.bf16.mxu0 0
        %2343 = vmatpush1.bf16.msra.mxu0 %v1999
        %2344 = vmatprep.subr.bf16.mxu0 0
        %2345 = vmatpush1.bf16.msra.mxu0 %v2002
        %2346 = vmatprep.mubr.bf16.mxu0 %v2056
        %2347 = vmatmul.mubr.bf16.gmra.mrb[0].mxu0 %v2042
        %v2348 = vpop.f32.mrb[0].mxu0
        %v2349 = vadd.f32 %v2309, %v2348
        %v2350 = vpop.f32.mrb[0].mxu0
        %v2351 = vpop.f32.mrb[0].mxu0
        %v2352 = vpop.f32.mrb[0].mxu0
        %2353 = vdwg.mxu0
        %2354 = vmatprep.subr.bf16.mxu0 0
        %2355 = vmatpush1.bf16.msra.mxu0 %v2005
        %2356 = vmatprep.subr.bf16.mxu0 0
        %2357 = vmatpush1.bf16.msra.mxu0 0
        %2358 = vmatprep.subr.bf16.mxu0 0
        %2359 = vmatpush1.bf16.msra.mxu0 0
        %2360 = vmatprep.subr.bf16.mxu0 0
        %2361 = vmatpush1.bf16.msra.mxu0 0
        %2362 = vmatprep.subr.bf16.mxu0 0
        %2363 = vmatpush1.bf16.msra.mxu0 0
        %2364 = vmatprep.subr.bf16.mxu0 0
        %2365 = vmatpush1.bf16.msra.mxu0 0
        %2366 = vmatprep.subr.bf16.mxu0 0
        %2367 = vmatpush1.bf16.msra.mxu0 0
        %2368 = vmatprep.subr.bf16.mxu0 0
        %2369 = vmatpush1.bf16.msra.mxu0 0
        %2370 = vmatprep.subr.bf16.mxu0 0
        %2371 = vmatpush1.bf16.msra.mxu0 0
        %2372 = vmatprep.subr.bf16.mxu0 0
        %2373 = vmatpush1.bf16.msra.mxu0 0
        %2374 = vmatprep.subr.bf16.mxu0 0
        %2375 = vmatpush1.bf16.msra.mxu0 0
        %2376 = vmatprep.subr.bf16.mxu0 0
        %2377 = vmatpush1.bf16.msra.mxu0 0
        %2378 = vmatprep.subr.bf16.mxu0 0
        %2379 = vmatpush1.bf16.msra.mxu0 0
        %2380 = vmatprep.subr.bf16.mxu0 0
        %2381 = vmatpush1.bf16.msra.mxu0 0
        %2382 = vmatprep.subr.bf16.mxu0 0
        %2383 = vmatpush1.bf16.msra.mxu0 0
        %2384 = vmatprep.subr.bf16.mxu0 0
        %2385 = vmatpush1.bf16.msra.mxu0 0
        %2386 = vmatprep.mubr.bf16.mxu0 0
        %2387 = vmatmul.mubr.bf16.gmra.mrb[0].mxu0 %v2068
        %v2388 = vpop.f32.mrb[0].mxu0
        %v2389 = vadd.f32 %v2349, %v2388
        %v2390 = vpop.f32.mrb[0].mxu0
        %v2391 = vpop.f32.mrb[0].mxu0
        %v2392 = vpop.f32.mrb[0].mxu0
        %2393 = vdwg.mxu0
        %v2394 = vtanh.pop %v2228
        %v2395 = vtanh.pop %v2230
        %v2396 = vtanh.pop %v2389
        %v2400 = vcombine.low %v2394, %v2395
        %v2402 = vunpack.c.l.s4 1983009808
        %v2403 = vunpack.c.0.s8 %v2402
        %v2404 = vlaneseq
        %v2405 = vshrl.u32 %v2404, 7
        %v2406 = vsub.s32 %v2403, %v2405
        %v2407 = vrot.slane %v2400, %v2406
        %v2409 = vunpack.c.l.s4 1983009808
        %v2410 = vunpack.c.0.s8 %v2409
        %v2411 = vlaneseq
        %v2412 = vshrl.u32 %v2411, 7
        %v2413 = vsub.s32 %v2410, %v2412
        %v2414 = vrot.slane %v2396, %v2413
        %v2415 = vcombine.low %v2407, %v2414
        %2417 = vst [vmem:[%s188] sm:$0x3f] %v2415
        %s2418 = sand.u32 %s96, 1
        %s2419 = scalar_lea.sflag [#allocation6], %s2418
        %s2420 = sand.u32 %s96, 1
        %s2421 = smul.addr %s2420, 6
        %s2422 = scalar_lea.vmem [#allocation7], %s2421
        // Predicated region
        $region37: #{tpu_custom_call.1} parent=31 // pred_check
          %p2423 = pneg %p106
        $region38: #{tpu_custom_call.1} parent=31 // pred_check_branch
          %2425 = sbr.rel (%p2423) target = $region40
        $region39: #{tpu_custom_call.1} parent=31 // pred_region
          %s2427 = ssub.s32 96, 96
          %2428 = vsyncadd %s2419, %s2427
          %s2429 = smul.addr %s20, 3
          %s2430 = smul.addr %s2429, 32
          %s2431 = scalar_lea.hbm %s3, %s2430
          %s2433 = sshll.u32 %s2422, 4
          %s2434 = int_to_ptr.vmem [resolvable:$true] %s2433
          %2436 = dma.vmem_to_hbm [thread:$0]  %s2434, 96, %s2431, %s2419
        $region40: #{tpu_custom_call.1} parent=31 // pred_fallthru
          _
      $region32: #{tpu_custom_call.1} parent=5 // pred_fallthru
        _
      %p2437 = scmp.le.s32.totalorder 2, %s15
      // Predicated region
      $region41: #{tpu_custom_call.1} parent=5 // pred_check
        %p2438 = pneg %p2437
      $region42: #{tpu_custom_call.1} parent=5 // pred_check_branch
        %2440 = sbr.rel (%p2438) target = $region44
      $region43: #{tpu_custom_call.1} parent=5 // pred_region
        %s2441 = ssub.s32 %s15, 2
        // Predicated region
        $region45: #{tpu_custom_call.1} parent=43 // pred_check
          %p2442 = pneg %p112
        $region46: #{tpu_custom_call.1} parent=43 // pred_check_branch
          %2444 = sbr.rel (%p2442) target = $region48
        $region47: #{tpu_custom_call.1} parent=43 // pred_region
          %s2445 = sand.u32 %s97, 1
          %s2446 = scalar_lea.sflag [#allocation6], %s2445
          %s2447 = sand.u32 %s97, 1
          %s2448 = smul.addr %s2447, 6
          %s2449 = scalar_lea.vmem [#allocation7], %s2448
          %2450 = dma.done %s2446, 96
        $region48: #{tpu_custom_call.1} parent=43 // pred_fallthru
          _
      $region44: #{tpu_custom_call.1} parent=5 // pred_fallthru
        _
    $region6: #{tpu_custom_call.1} parent=1 // loop_footer
      %s19 = sadd.s32 1, %s15
    $region7: #{tpu_custom_call.1} parent=1 // loop_footer_branch
      %14 = sbr.rel target = $region3
    $region8: #{tpu_custom_call.1} parent=1 // loop_exit
      _
    %2451 = vsyncpa [#allocation5], 1
    %s2452 = scalar_lea.sflag [#allocation5], 1
    %2453 = vsyncpa %s2452, 1
    %2454 = vsyncpa [#allocation6], 1
    %s2455 = scalar_lea.sflag [#allocation6], 1
    %2456 = vsyncpa %s2455, 1

</llo_original>
